<compile_context>
chip_gen: v6e
topology: v6e:2x2x1
jax: 0.10.0
libtpu: 0.0.40
codegen_flags: <defaults>
</compile_context>

<pallas_src>
import numpy as np
import jax
import jax.numpy as jnp
from jax import lax
from jax.experimental import pallas as pl
from jax.experimental.pallas import tpu as pltpu

NUM_JOINTS = 24                        # SMPL joints (incl. root)
NUM_BETAS = 10
NUM_POSE_BASIS = (NUM_JOINTS - 1) * 9  # 207
NUM_BLEND = NUM_BETAS + NUM_POSE_BASIS # 217  (fused [shape | pose] basis)
NUM_H36M = 17

# SMPL kinematic tree (parents[:24]); same values the module loads from the pkl.
SMPL_PARENTS = np.array(
    [-1, 0, 0, 0, 1, 2, 3, 4, 5, 6, 7, 8, 9, 9, 9, 12, 13, 14, 16, 17, 18, 19,
     20, 21], dtype=np.int64)


# ----------------------------------------------------------------------------
# Pallas kernels (grid over vertex tiles; batch lives in the matmul M dim)
# ----------------------------------------------------------------------------
def _rest_joints_kernel(betas_ref, sdirs_ref, vtemp_ref, jreg_ref, jpart_ref):
    # betas_ref: (B, 10)        bf16
    # sdirs_ref: (3, 10, TV)    bf16  shape blend dirs, coordinate-major tile
    # vtemp_ref: (3, TV)        f32   template vertices, coordinate-major tile
    # jreg_ref:  (24, TV)       bf16  J_regressor tile (lane-dense)
    # jpart_ref: (1, 3, B, 24)  f32   out: per-tile partial rest-joint sums
    betas = betas_ref[...]
    jreg = jreg_ref[...].astype(jnp.float32)
    for c in range(3):
        row = lax.dot_general(betas, sdirs_ref[c], (((1,), (0,)), ((), ())),
                              preferred_element_type=jnp.float32)     # (B, TV)
        row = row + vtemp_ref[c][None, :]
        jpart_ref[0, c] = lax.dot_general(
            row, jreg, (((1,), (1,)), ((), ())),
            preferred_element_type=jnp.float32)                       # (B, 24)


def _skinning_kernel(coef_ref, bdirs_ref, vtemp_ref, ak_ref, wT_ref, hreg_ref,
                     verts_ref, hpart_ref):
    # coef_ref:  (B, 217)       bf16  [betas | pose_feature]
    # bdirs_ref: (3, 217, TV)   bf16  [shapedirs | posedirs] tile, coord-major
    # vtemp_ref: (3, TV)        f32
    # ak_ref:    (12, B, 24)    f32   A_k[4c+i, b, j] = A_rel[b, j, c, i]
    # wT_ref:    (24, TV)       bf16  lbs_weights^T tile
    # hreg_ref:  (17, TV)       bf16  J_regressor_h36m tile (lane-dense)
    # verts_ref: (3, B, TV)     f32   out: skinned vertices tile (coord-major)
    # hpart_ref: (1, 3, B, 17)  f32   out: per-tile partial h36m joint sums
    coef = coef_ref[...]
    wT = wT_ref[...].astype(jnp.float32)
    hreg = hreg_ref[...].astype(jnp.float32)
    # Fused shape + pose blend:  v_posed[c] = v_template[c] + coef @ bdirs[c]
    vp = []
    for c in range(3):
        blend = lax.dot_general(coef, bdirs_ref[c], (((1,), (0,)), ((), ())),
                                preferred_element_type=jnp.float32)   # (B, TV)
        vp.append(blend + vtemp_ref[c][None, :])
    # LBS skinning: per-vertex 3x4 transform rows (batch-in-M dots), then
    # the affine combination and the h36m joint regression for this tile.
    for c in range(3):
        t0 = lax.dot_general(ak_ref[4 * c + 0], wT, (((1,), (0,)), ((), ())),
                             preferred_element_type=jnp.float32)
        t1 = lax.dot_general(ak_ref[4 * c + 1], wT, (((1,), (0,)), ((), ())),
                             preferred_element_type=jnp.float32)
        t2 = lax.dot_general(ak_ref[4 * c + 2], wT, (((1,), (0,)), ((), ())),
                             preferred_element_type=jnp.float32)
        t3 = lax.dot_general(ak_ref[4 * c + 3], wT, (((1,), (0,)), ((), ())),
                             preferred_element_type=jnp.float32)
        vc = t0 * vp[0] + t1 * vp[1] + t2 * vp[2] + t3                # (B, TV)
        verts_ref[c] = vc
        hpart_ref[0, c] = lax.dot_general(
            vc, hreg, (((1,), (1,)), ((), ())),
            preferred_element_type=jnp.float32)                       # (B, 17)


# ----------------------------------------------------------------------------
# One-time parameter preparation (hoisted out of the forward path)
# ----------------------------------------------------------------------------
def prepare_smpl_params(v_template, shapedirs, posedirs, J_regressor,
                        J_regressor_h36m, lbs_weights, parents, tile_v=512):
    """Pad V to a multiple of tile_v, transpose to coordinate-major /
    lane-dense layouts and cast constants to bf16 (kernels accumulate f32)."""
    assert tile_v % 128 == 0
    V = v_template.shape[0]
    V_pad = ((V + tile_v - 1) // tile_v) * tile_v
    pad = V_pad - V

    def pad_v(x, axis):
        widths = [(0, 0)] * x.ndim
        widths[axis] = (0, pad)
        return jnp.pad(x, widths)

    P = posedirs.shape[0]
    # Coordinate-major blend bases; padded vertices get zero columns so they
    # contribute nothing to the joint regressions / skinning.
    sdirs_cm = pad_v(jnp.transpose(shapedirs, (1, 2, 0)), 2)         # (3,10,Vp)
    pdirs_cm = pad_v(
        jnp.transpose(posedirs.reshape(P, V, 3), (2, 0, 1)), 2)      # (3,207,Vp)
    return dict(
        V=V, V_pad=V_pad, tile_v=tile_v, parents=np.asarray(parents),
        vtemp_k=pad_v(v_template.T, 1).astype(jnp.float32),          # (3, Vp)
        sdirs_k=sdirs_cm.astype(jnp.bfloat16),                       # (3, 10, Vp)
        bdirs_k=jnp.concatenate([sdirs_cm, pdirs_cm],
                                axis=1).astype(jnp.bfloat16),        # (3,217,Vp)
        jreg_k=pad_v(J_regressor, 1).astype(jnp.bfloat16),           # (24, Vp)
        hreg_k=pad_v(J_regressor_h36m, 1).astype(jnp.bfloat16),      # (17, Vp)
        wT_k=pad_v(lbs_weights.T, 1).astype(jnp.bfloat16),           # (24, Vp)
    )


# ----------------------------------------------------------------------------
# pallas_call wrappers
# ----------------------------------------------------------------------------
def rest_joints_call(betas, prep):
    B = betas.shape[0]
    V_pad, TV = prep["V_pad"], prep["tile_v"]
    n_t = V_pad // TV
    jpart = pl.pallas_call(
        _rest_joints_kernel,
        out_shape=jax.ShapeDtypeStruct((n_t, 3, B, NUM_JOINTS), jnp.float32),
        grid=(n_t,),
        in_specs=[
            pl.BlockSpec((B, NUM_BETAS), lambda t: (0, 0)),
            pl.BlockSpec((3, NUM_BETAS, TV), lambda t: (0, 0, t)),
            pl.BlockSpec((3, TV), lambda t: (0, t)),
            pl.BlockSpec((NUM_JOINTS, TV), lambda t: (0, t)),
        ],
        out_specs=pl.BlockSpec((1, 3, B, NUM_JOINTS), lambda t: (t, 0, 0, 0)),
        compiler_params=pltpu.CompilerParams(dimension_semantics=("parallel",)),
    )(betas.astype(jnp.bfloat16), prep["sdirs_k"], prep["vtemp_k"],
      prep["jreg_k"])
    # tiny reduction over V tiles outside the kernel keeps the grid parallel
    return jnp.transpose(jnp.sum(jpart, axis=0), (1, 2, 0))          # (B,24,3)


def skinning_call(coef, A_k, prep):
    B = coef.shape[0]
    V_pad, TV = prep["V_pad"], prep["tile_v"]
    n_t = V_pad // TV
    verts_k, hpart = pl.pallas_call(
        _skinning_kernel,
        out_shape=(jax.ShapeDtypeStruct((3, B, V_pad), jnp.float32),
                   jax.ShapeDtypeStruct((n_t, 3, B, NUM_H36M), jnp.float32)),
        grid=(n_t,),
        in_specs=[
            pl.BlockSpec((B, NUM_BLEND), lambda t: (0, 0)),
            pl.BlockSpec((3, NUM_BLEND, TV), lambda t: (0, 0, t)),
            pl.BlockSpec((3, TV), lambda t: (0, t)),
            pl.BlockSpec((12, B, NUM_JOINTS), lambda t: (0, 0, 0)),
            pl.BlockSpec((NUM_JOINTS, TV), lambda t: (0, t)),
            pl.BlockSpec((NUM_H36M, TV), lambda t: (0, t)),
        ],
        out_specs=(
            pl.BlockSpec((3, B, TV), lambda t: (0, 0, t)),
            pl.BlockSpec((1, 3, B, NUM_H36M), lambda t: (t, 0, 0, 0)),
        ),
        compiler_params=pltpu.CompilerParams(dimension_semantics=("parallel",)),
    )(coef.astype(jnp.bfloat16), prep["bdirs_k"], prep["vtemp_k"],
      A_k.astype(jnp.float32), prep["wT_k"], prep["hreg_k"])
    jv = jnp.transpose(jnp.sum(hpart, axis=0), (1, 2, 0))            # (B,17,3)
    return verts_k, jv


# ----------------------------------------------------------------------------
# Plain-JAX glue (tiny sequential parts of LBS)
# ----------------------------------------------------------------------------
def batch_rodrigues(rot_vecs):
    """Axis-angle (N, 3) -> rotation matrices (N, 3, 3) (same as torch version)."""
    N = rot_vecs.shape[0]
    angle = jnp.linalg.norm(rot_vecs + 1e-8, axis=1, keepdims=True)   # (N, 1)
    rot_dir = rot_vecs / angle
    cos = jnp.cos(angle)[:, None, :]
    sin = jnp.sin(angle)[:, None, :]
    rx, ry, rz = jnp.split(rot_dir, 3, axis=1)
    zeros = jnp.zeros((N, 1), dtype=rot_vecs.dtype)
    K = jnp.concatenate(
        [zeros, -rz, ry, rz, zeros, -rx, -ry, rx, zeros], axis=1
    ).reshape(N, 3, 3)
    ident = jnp.eye(3, dtype=rot_vecs.dtype)[None]
    return ident + sin * K + (1.0 - cos) * jnp.matmul(K, K)


def batch_rigid_transform(rot_mats, joints, parents):
    """rot_mats (B,24,3,3), joints (B,24,3) -> posed joints, rel. transforms A."""
    B, N = joints.shape[:2]
    dtype = joints.dtype
    rel_joints = joints - jnp.concatenate(
        [jnp.zeros((B, 1, 3), dtype), joints[:, parents[1:]]], axis=1)
    top = jnp.concatenate([rot_mats, rel_joints[..., None]], axis=-1)  # (B,N,3,4)
    bottom = jnp.broadcast_to(
        jnp.array([0.0, 0.0, 0.0, 1.0], dtype=dtype), (B, N, 1, 4))
    transforms_mat = jnp.concatenate([top, bottom], axis=-2)           # (B,N,4,4)
    chain = [transforms_mat[:, 0]]
    for i in range(1, N):
        chain.append(jnp.matmul(chain[int(parents[i])], transforms_mat[:, i]))
    transforms = jnp.stack(chain, axis=1)                              # (B,N,4,4)
    posed_joints = transforms[:, :, :3, 3]
    joints_homo = jnp.concatenate(
        [joints, jnp.zeros((B, N, 1), dtype)], axis=-1)[..., None]
    init_bone = jnp.matmul(transforms, joints_homo)
    rel_transforms = transforms - jnp.concatenate(
        [jnp.zeros((B, N, 4, 3), dtype), init_bone], axis=-1)
    return posed_joints, rel_transforms


def smpl_forward(pose_axis_angle, betas, global_orient, prep, transl=None):
    """SMPL_layer.forward (pose2rot=True, return_29_jts=False)."""
    B = betas.shape[0]
    if global_orient is not None:
        full_pose = jnp.concatenate([global_orient, pose_axis_angle], axis=1)
    else:
        full_pose = pose_axis_angle                                    # (B, 72)
    rot_mats = batch_rodrigues(full_pose.reshape(-1, 3)).reshape(
        B, NUM_JOINTS, 3, 3)

    # -- Pallas kernel 1: rest joints J = J_regressor @ (v_template + S @ betas)
    J = rest_joints_call(betas, prep)                                  # (B,24,3)

    # -- tiny sequential glue: kinematic chain of 24 4x4 transforms
    pose_feature = (rot_mats[:, 1:] - jnp.eye(3, dtype=rot_mats.dtype)
                    ).reshape(B, NUM_POSE_BASIS)
    J_transformed, A = batch_rigid_transform(rot_mats, J, prep["parents"])
    # A_k[4c+i, b, j] = A[b, j, c, i]  (top 3 rows of each relative 4x4)
    A_k = jnp.transpose(A[:, :, :3, :], (2, 3, 0, 1)).reshape(
        12, B, NUM_JOINTS)
    coef = jnp.concatenate([betas, pose_feature], axis=1)              # (B, 217)

    # -- Pallas kernel 2: fused shape+pose blend, LBS skinning, h36m regression
    verts_k, joints_from_verts = skinning_call(coef, A_k, prep)
    vertices = jnp.transpose(verts_k, (1, 2, 0))[:, :prep["V"]]        # (B,V,3)

    joints = J_transformed
    # TODO(synk): return_29_jts / get_jts_29 uses leaf vertex indices
    # (411..6617) valid only for the real 6890-vertex SMPL mesh; skipped here.
    if transl is not None:
        joints = joints + transl[:, None]
        vertices = vertices + transl[:, None]
        joints_from_verts = joints_from_verts + transl[:, None]
    return dict(vertices=vertices, joints=joints, rot_mats=rot_mats,
                joints_from_verts=joints_from_verts)


def make_smpl_forward(prep):
    """jit the whole forward (glue + both pallas kernels compile as one XLA
    program; the per-op dispatch of the 24-step kinematic chain disappears).
    prep constants (already padded / transposed / bf16) are closed over."""
    def fwd(pose_axis_angle, betas, global_orient):
        return smpl_forward(pose_axis_angle, betas, global_orient, prep)
    return jax.jit(fwd)


# ----------------------------------------------------------------------------
# Pure-JAX reference LBS (for correctness check of the kernels)
# ----------------------------------------------------------------------------
def lbs_reference(betas, full_pose, params):
    B = betas.shape[0]
    v_shaped = params["v_template"][None] + jnp.einsum(
        "bl,vcl->bvc", betas, params["shapedirs"])
    J = jnp.einsum("jv,bvc->bjc", params["J_regressor"], v_shaped)
    rot_mats = batch_rodrigues(full_pose.reshape(-1, 3)).reshape(B, NUM_JOINTS, 3, 3)
    pose_feature = (rot_mats[:, 1:] - jnp.eye(3)).reshape(B, -1)
    pose_offsets = (pose_feature @ params["posedirs"]).reshape(B, -1, 3)
    v_posed = v_shaped + pose_offsets
    J_transformed, A = batch_rigid_transform(rot_mats, J, params["parents"])
    W = jnp.broadcast_to(params["lbs_weights"][None],
                         (B,) + params["lbs_weights"].shape)
    T = jnp.einsum("bvj,bjk->bvk", W, A.reshape(B, NUM_JOINTS, 16)
                   ).reshape(B, -1, 4, 4)
    ones = jnp.ones((B, v_posed.shape[1], 1), v_posed.dtype)
    v_homo = jnp.concatenate([v_posed, ones], axis=2)
    verts = jnp.einsum("bvij,bvj->bvi", T, v_homo)[:, :, :3]
    jverts = jnp.einsum("jv,bvc->bjc", params["J_regressor_h36m"], verts)
    return verts, J_transformed, rot_mats, jverts


# ----------------------------------------------------------------------------
if __name__ == "__main__":
    B = 2
    V = 400        # synthetic vertex count (real SMPL: 6890); NOT lane-aligned
    TILE_V = 256   # vertex tile size; use 512-1024 at real SMPL scale

    key = jax.random.PRNGKey(0)
    ks = jax.random.split(key, 10)

    # Deterministic synthetic "SMPL buffers" (shapes as in SMPL_layer.__init__).
    params = dict(
        v_template=jax.random.normal(ks[0], (V, 3), jnp.float32),
        shapedirs=0.03 * jax.random.normal(ks[1], (V, 3, NUM_BETAS), jnp.float32),
        # stored like the torch buffer: (num_pose_basis, V*3), column = v*3+c
        posedirs=0.01 * jax.random.normal(ks[2], (NUM_POSE_BASIS, V * 3), jnp.float32),
        J_regressor=jax.nn.softmax(
            jax.random.normal(ks[3], (NUM_JOINTS, V), jnp.float32), axis=-1),
        J_regressor_h36m=jax.nn.softmax(
            jax.random.normal(ks[4], (NUM_H36M, V), jnp.float32), axis=-1),
        lbs_weights=jax.nn.softmax(
            jax.random.normal(ks[5], (V, NUM_JOINTS), jnp.float32), axis=-1),
        parents=SMPL_PARENTS,
    )

    # One-time parameter preparation (transposes / padding / bf16 casts hoisted
    # out of the forward path).
    prep = prepare_smpl_params(
        params["v_template"], params["shapedirs"], params["posedirs"],
        params["J_regressor"], params["J_regressor_h36m"],
        params["lbs_weights"], params["parents"], tile_v=TILE_V)
    fwd = make_smpl_forward(prep)

    # Forward inputs.
    pose_axis_angle = 0.2 * jax.random.normal(ks[6], (B, 69), jnp.float32)
    global_orient = 0.2 * jax.random.normal(ks[7], (B, 3), jnp.float32)
    betas = jax.random.normal(ks[8], (B, NUM_BETAS), jnp.float32)

    out = fwd(pose_axis_angle, betas, global_orient)
    jax.block_until_ready(out["vertices"])
    jax.block_until_ready(out["joints_from_verts"])

    # Check against the pure-JAX (f32, unpadded) reference LBS.
    full_pose = jnp.concatenate([global_orient, pose_axis_angle], axis=1)
    ref_v, ref_j, ref_r, ref_jv = lbs_reference(betas, full_pose, params)

    def rel_err(a, b):
        return float(jnp.max(jnp.abs(a - b)) / (jnp.max(jnp.abs(b)) + 1e-8))

    assert rel_err(out["vertices"], ref_v) < 5e-2
    assert rel_err(out["joints"], ref_j) < 5e-2
    assert rel_err(out["rot_mats"], ref_r) < 5e-2
    assert rel_err(out["joints_from_verts"], ref_jv) < 5e-2

    print("KERNEL_OK")
</pallas_src>

<mosaic_0001>
module attributes {stable_mosaic.version = 11 : i64} {
  func.func @_rest_joints_kernel(%arg0: i32, %arg1: memref<2x10xbf16, #tpu.memory_space<vmem>>, %arg2: memref<3x10x256xbf16, #tpu.memory_space<vmem>>, %arg3: memref<3x256xf32, #tpu.memory_space<vmem>>, %arg4: memref<24x256xbf16, #tpu.memory_space<vmem>>, %arg5: memref<1x3x2x24xf32, #tpu.memory_space<vmem>>) attributes {dimension_semantics = [#tpu.dimension_semantics<parallel>], iteration_bounds = array<i64: 2>, scalar_prefetch = 0 : i64, scratch_operands = 0 : i64, tpu.core_type = #tpu.core_type<tc>, window_params = [{pipeline_mode = #tpu.pipeline_mode<synchronous>, transform_indices = @transform_0, window_bounds = array<i64: 2, 10>}, {transform_indices = @transform_1, window_bounds = array<i64: 3, 10, 256>}, {transform_indices = @transform_2, window_bounds = array<i64: 3, 256>}, {transform_indices = @transform_3, window_bounds = array<i64: 24, 256>}, {transform_indices = @transform_4, window_bounds = array<i64: 1, 3, 2, 24>}]} {
    %c0 = arith.constant 0 : index
    %c0_0 = arith.constant 0 : index
    %0 = vector.load %arg1[%c0, %c0_0] : memref<2x10xbf16, #tpu.memory_space<vmem>>, vector<2x10xbf16>
    %c0_1 = arith.constant 0 : index
    %c0_2 = arith.constant 0 : index
    %1 = vector.load %arg4[%c0_1, %c0_2] : memref<24x256xbf16, #tpu.memory_space<vmem>>, vector<24x256xbf16>
    %2 = arith.extf %1 : vector<24x256xbf16> to vector<24x256xf32>
    %c0_3 = arith.constant 0 : index
    %c0_4 = arith.constant 0 : index
    %c0_5 = arith.constant 0 : index
    %3 = vector.load %arg2[%c0_3, %c0_4, %c0_5] : memref<3x10x256xbf16, #tpu.memory_space<vmem>>, vector<1x10x256xbf16>
    %4 = vector.shape_cast %3 : vector<1x10x256xbf16> to vector<10x256xbf16>
    %cst = arith.constant dense<0.000000e+00> : vector<2x256xf32>
    %5 = tpu.matmul %0, %4, %cst {dimension_numbers = #tpu.dot_dimension_numbers<[1], [0], [0], [1], [0, 0, 1, 1], [], []>} : vector<2x10xbf16>, vector<10x256xbf16>, vector<2x256xf32> -> vector<2x256xf32>
    %c0_6 = arith.constant 0 : index
    %c0_7 = arith.constant 0 : index
    %6 = vector.load %arg3[%c0_6, %c0_7] : memref<3x256xf32, #tpu.memory_space<vmem>>, vector<1x256xf32>
    %7 = vector.shape_cast %6 : vector<1x256xf32> to vector<256xf32>
    %8 = vector.shape_cast %7 : vector<256xf32> to vector<1x256xf32>
    %9 = vector.broadcast %8 : vector<1x256xf32> to vector<2x256xf32>
    %10 = arith.addf %5, %9 : vector<2x256xf32>
    %cst_8 = arith.constant dense<0.000000e+00> : vector<2x24xf32>
    %11 = tpu.matmul %10, %2, %cst_8 {dimension_numbers = #tpu.dot_dimension_numbers<[1], [1], [0], [0], [0, 0, 1, 0], [], []>} : vector<2x256xf32>, vector<24x256xf32>, vector<2x24xf32> -> vector<2x24xf32>
    %c0_9 = arith.constant 0 : index
    %c0_10 = arith.constant 0 : index
    %c0_11 = arith.constant 0 : index
    %c0_12 = arith.constant 0 : index
    %12 = vector.load %arg5[%c0_9, %c0_10, %c0_11, %c0_12] : memref<1x3x2x24xf32, #tpu.memory_space<vmem>>, vector<1x1x2x24xf32>
    %13 = vector.shape_cast %12 : vector<1x1x2x24xf32> to vector<2x24xf32>
    %14 = vector.shape_cast %11 : vector<2x24xf32> to vector<1x1x2x24xf32>
    tpu.vector_store %arg5[%c0_9, %c0_10, %c0_11, %c0_12], %14 {strides = array<i32>} : memref<1x3x2x24xf32, #tpu.memory_space<vmem>>, vector<1x1x2x24xf32>,
    %c1 = arith.constant 1 : index
    %c0_13 = arith.constant 0 : index
    %c0_14 = arith.constant 0 : index
    %15 = vector.load %arg2[%c1, %c0_13, %c0_14] : memref<3x10x256xbf16, #tpu.memory_space<vmem>>, vector<1x10x256xbf16>
    %16 = vector.shape_cast %15 : vector<1x10x256xbf16> to vector<10x256xbf16>
    %cst_15 = arith.constant dense<0.000000e+00> : vector<2x256xf32>
    %17 = tpu.matmul %0, %16, %cst_15 {dimension_numbers = #tpu.dot_dimension_numbers<[1], [0], [0], [1], [0, 0, 1, 1], [], []>} : vector<2x10xbf16>, vector<10x256xbf16>, vector<2x256xf32> -> vector<2x256xf32>
    %c1_16 = arith.constant 1 : index
    %c0_17 = arith.constant 0 : index
    %18 = vector.load %arg3[%c1_16, %c0_17] : memref<3x256xf32, #tpu.memory_space<vmem>>, vector<1x256xf32>
    %19 = vector.shape_cast %18 : vector<1x256xf32> to vector<256xf32>
    %20 = vector.shape_cast %19 : vector<256xf32> to vector<1x256xf32>
    %21 = vector.broadcast %20 : vector<1x256xf32> to vector<2x256xf32>
    %22 = arith.addf %17, %21 : vector<2x256xf32>
    %cst_18 = arith.constant dense<0.000000e+00> : vector<2x24xf32>
    %23 = tpu.matmul %22, %2, %cst_18 {dimension_numbers = #tpu.dot_dimension_numbers<[1], [1], [0], [0], [0, 0, 1, 0], [], []>} : vector<2x256xf32>, vector<24x256xf32>, vector<2x24xf32> -> vector<2x24xf32>
    %c0_19 = arith.constant 0 : index
    %c1_20 = arith.constant 1 : index
    %c0_21 = arith.constant 0 : index
    %c0_22 = arith.constant 0 : index
    %24 = vector.load %arg5[%c0_19, %c1_20, %c0_21, %c0_22] : memref<1x3x2x24xf32, #tpu.memory_space<vmem>>, vector<1x1x2x24xf32>
    %25 = vector.shape_cast %24 : vector<1x1x2x24xf32> to vector<2x24xf32>
    %26 = vector.shape_cast %23 : vector<2x24xf32> to vector<1x1x2x24xf32>
    tpu.vector_store %arg5[%c0_19, %c1_20, %c0_21, %c0_22], %26 {strides = array<i32>} : memref<1x3x2x24xf32, #tpu.memory_space<vmem>>, vector<1x1x2x24xf32>,
    %c2 = arith.constant 2 : index
    %c0_23 = arith.constant 0 : index
    %c0_24 = arith.constant 0 : index
    %27 = vector.load %arg2[%c2, %c0_23, %c0_24] : memref<3x10x256xbf16, #tpu.memory_space<vmem>>, vector<1x10x256xbf16>
    %28 = vector.shape_cast %27 : vector<1x10x256xbf16> to vector<10x256xbf16>
    %cst_25 = arith.constant dense<0.000000e+00> : vector<2x256xf32>
    %29 = tpu.matmul %0, %28, %cst_25 {dimension_numbers = #tpu.dot_dimension_numbers<[1], [0], [0], [1], [0, 0, 1, 1], [], []>} : vector<2x10xbf16>, vector<10x256xbf16>, vector<2x256xf32> -> vector<2x256xf32>
    %c2_26 = arith.constant 2 : index
    %c0_27 = arith.constant 0 : index
    %30 = vector.load %arg3[%c2_26, %c0_27] : memref<3x256xf32, #tpu.memory_space<vmem>>, vector<1x256xf32>
    %31 = vector.shape_cast %30 : vector<1x256xf32> to vector<256xf32>
    %32 = vector.shape_cast %31 : vector<256xf32> to vector<1x256xf32>
    %33 = vector.broadcast %32 : vector<1x256xf32> to vector<2x256xf32>
    %34 = arith.addf %29, %33 : vector<2x256xf32>
    %cst_28 = arith.constant dense<0.000000e+00> : vector<2x24xf32>
    %35 = tpu.matmul %34, %2, %cst_28 {dimension_numbers = #tpu.dot_dimension_numbers<[1], [1], [0], [0], [0, 0, 1, 0], [], []>} : vector<2x256xf32>, vector<24x256xf32>, vector<2x24xf32> -> vector<2x24xf32>
    %c0_29 = arith.constant 0 : index
    %c2_30 = arith.constant 2 : index
    %c0_31 = arith.constant 0 : index
    %c0_32 = arith.constant 0 : index
    %36 = vector.load %arg5[%c0_29, %c2_30, %c0_31, %c0_32] : memref<1x3x2x24xf32, #tpu.memory_space<vmem>>, vector<1x1x2x24xf32>
    %37 = vector.shape_cast %36 : vector<1x1x2x24xf32> to vector<2x24xf32>
    %38 = vector.shape_cast %35 : vector<2x24xf32> to vector<1x1x2x24xf32>
    tpu.vector_store %arg5[%c0_29, %c2_30, %c0_31, %c0_32], %38 {strides = array<i32>} : memref<1x3x2x24xf32, #tpu.memory_space<vmem>>, vector<1x1x2x24xf32>,
    return
  }
  func.func @transform_0(%arg0: i32) -> (i32, i32) {
    %c0_i32 = arith.constant 0 : i32
    %c0_i32_0 = arith.constant 0 : i32
    %c0_i32_1 = arith.constant 0 : i32
    return %c0_i32, %c0_i32_0 : i32, i32
  }
  func.func @transform_1(%arg0: i32) -> (i32, i32, i32) {
    %c0_i32 = arith.constant 0 : i32
    %c0_i32_0 = arith.constant 0 : i32
    %c0_i32_1 = arith.constant 0 : i32
    return %c0_i32, %c0_i32_0, %arg0 : i32, i32, i32
  }
  func.func @transform_2(%arg0: i32) -> (i32, i32) {
    %c0_i32 = arith.constant 0 : i32
    %c0_i32_0 = arith.constant 0 : i32
    return %c0_i32, %arg0 : i32, i32
  }
  func.func @transform_3(%arg0: i32) -> (i32, i32) {
    %c0_i32 = arith.constant 0 : i32
    %c0_i32_0 = arith.constant 0 : i32
    return %c0_i32, %arg0 : i32, i32
  }
  func.func @transform_4(%arg0: i32) -> (i32, i32, i32, i32) {
    %c0_i32 = arith.constant 0 : i32
    %c0_i32_0 = arith.constant 0 : i32
    %c0_i32_1 = arith.constant 0 : i32
    %c0_i32_2 = arith.constant 0 : i32
    return %arg0, %c0_i32, %c0_i32_0, %c0_i32_1 : i32, i32, i32, i32
  }
}

module attributes {stable_mosaic.version = 11 : i64} {
  func.func @_skinning_kernel(%arg0: i32, %arg1: memref<2x217xbf16, #tpu.memory_space<vmem>>, %arg2: memref<3x217x256xbf16, #tpu.memory_space<vmem>>, %arg3: memref<3x256xf32, #tpu.memory_space<vmem>>, %arg4: memref<12x2x24xf32, #tpu.memory_space<vmem>>, %arg5: memref<24x256xbf16, #tpu.memory_space<vmem>>, %arg6: memref<17x256xbf16, #tpu.memory_space<vmem>>, %arg7: memref<3x2x256xf32, #tpu.memory_space<vmem>>, %arg8: memref<1x3x2x17xf32, #tpu.memory_space<vmem>>) attributes {dimension_semantics = [#tpu.dimension_semantics<parallel>], iteration_bounds = array<i64: 2>, scalar_prefetch = 0 : i64, scratch_operands = 0 : i64, tpu.core_type = #tpu.core_type<tc>, window_params = [{pipeline_mode = #tpu.pipeline_mode<synchronous>, transform_indices = @transform_0, window_bounds = array<i64: 2, 217>}, {transform_indices = @transform_1, window_bounds = array<i64: 3, 217, 256>}, {transform_indices = @transform_2, window_bounds = array<i64: 3, 256>}, {pipeline_mode = #tpu.pipeline_mode<synchronous>, transform_indices = @transform_3, window_bounds = array<i64: 12, 2, 24>}, {transform_indices = @transform_4, window_bounds = array<i64: 24, 256>}, {transform_indices = @transform_5, window_bounds = array<i64: 17, 256>}, {transform_indices = @transform_6, window_bounds = array<i64: 3, 2, 256>}, {transform_indices = @transform_7, window_bounds = array<i64: 1, 3, 2, 17>}]} {
    %c0 = arith.constant 0 : index
    %c0_0 = arith.constant 0 : index
    %0 = vector.load %arg1[%c0, %c0_0] : memref<2x217xbf16, #tpu.memory_space<vmem>>, vector<2x217xbf16>
    %c0_1 = arith.constant 0 : index
    %c0_2 = arith.constant 0 : index
    %1 = vector.load %arg5[%c0_1, %c0_2] : memref<24x256xbf16, #tpu.memory_space<vmem>>, vector<24x256xbf16>
    %2 = arith.extf %1 : vector<24x256xbf16> to vector<24x256xf32>
    %c0_3 = arith.constant 0 : index
    %c0_4 = arith.constant 0 : index
    %3 = vector.load %arg6[%c0_3, %c0_4] : memref<17x256xbf16, #tpu.memory_space<vmem>>, vector<17x256xbf16>
    %4 = arith.extf %3 : vector<17x256xbf16> to vector<17x256xf32>
    %c0_5 = arith.constant 0 : index
    %c0_6 = arith.constant 0 : index
    %c0_7 = arith.constant 0 : index
    %5 = vector.load %arg2[%c0_5, %c0_6, %c0_7] : memref<3x217x256xbf16, #tpu.memory_space<vmem>>, vector<1x217x256xbf16>
    %6 = vector.shape_cast %5 : vector<1x217x256xbf16> to vector<217x256xbf16>
    %cst = arith.constant dense<0.000000e+00> : vector<2x256xf32>
    %7 = tpu.matmul %0, %6, %cst {dimension_numbers = #tpu.dot_dimension_numbers<[1], [0], [0], [1], [0, 0, 1, 1], [], []>} : vector<2x217xbf16>, vector<217x256xbf16>, vector<2x256xf32> -> vector<2x256xf32>
    %c0_8 = arith.constant 0 : index
    %c0_9 = arith.constant 0 : index
    %8 = vector.load %arg3[%c0_8, %c0_9] : memref<3x256xf32, #tpu.memory_space<vmem>>, vector<1x256xf32>
    %9 = vector.shape_cast %8 : vector<1x256xf32> to vector<256xf32>
    %10 = vector.shape_cast %9 : vector<256xf32> to vector<1x256xf32>
    %11 = vector.broadcast %10 : vector<1x256xf32> to vector<2x256xf32>
    %12 = arith.addf %7, %11 : vector<2x256xf32>
    %c1 = arith.constant 1 : index
    %c0_10 = arith.constant 0 : index
    %c0_11 = arith.constant 0 : index
    %13 = vector.load %arg2[%c1, %c0_10, %c0_11] : memref<3x217x256xbf16, #tpu.memory_space<vmem>>, vector<1x217x256xbf16>
    %14 = vector.shape_cast %13 : vector<1x217x256xbf16> to vector<217x256xbf16>
    %cst_12 = arith.constant dense<0.000000e+00> : vector<2x256xf32>
    %15 = tpu.matmul %0, %14, %cst_12 {dimension_numbers = #tpu.dot_dimension_numbers<[1], [0], [0], [1], [0, 0, 1, 1], [], []>} : vector<2x217xbf16>, vector<217x256xbf16>, vector<2x256xf32> -> vector<2x256xf32>
    %c1_13 = arith.constant 1 : index
    %c0_14 = arith.constant 0 : index
    %16 = vector.load %arg3[%c1_13, %c0_14] : memref<3x256xf32, #tpu.memory_space<vmem>>, vector<1x256xf32>
    %17 = vector.shape_cast %16 : vector<1x256xf32> to vector<256xf32>
    %18 = vector.shape_cast %17 : vector<256xf32> to vector<1x256xf32>
    %19 = vector.broadcast %18 : vector<1x256xf32> to vector<2x256xf32>
    %20 = arith.addf %15, %19 : vector<2x256xf32>
    %c2 = arith.constant 2 : index
    %c0_15 = arith.constant 0 : index
    %c0_16 = arith.constant 0 : index
    %21 = vector.load %arg2[%c2, %c0_15, %c0_16] : memref<3x217x256xbf16, #tpu.memory_space<vmem>>, vector<1x217x256xbf16>
    %22 = vector.shape_cast %21 : vector<1x217x256xbf16> to vector<217x256xbf16>
    %cst_17 = arith.constant dense<0.000000e+00> : vector<2x256xf32>
    %23 = tpu.matmul %0, %22, %cst_17 {dimension_numbers = #tpu.dot_dimension_numbers<[1], [0], [0], [1], [0, 0, 1, 1], [], []>} : vector<2x217xbf16>, vector<217x256xbf16>, vector<2x256xf32> -> vector<2x256xf32>
    %c2_18 = arith.constant 2 : index
    %c0_19 = arith.constant 0 : index
    %24 = vector.load %arg3[%c2_18, %c0_19] : memref<3x256xf32, #tpu.memory_space<vmem>>, vector<1x256xf32>
    %25 = vector.shape_cast %24 : vector<1x256xf32> to vector<256xf32>
    %26 = vector.shape_cast %25 : vector<256xf32> to vector<1x256xf32>
    %27 = vector.broadcast %26 : vector<1x256xf32> to vector<2x256xf32>
    %28 = arith.addf %23, %27 : vector<2x256xf32>
    %c0_20 = arith.constant 0 : index
    %c0_21 = arith.constant 0 : index
    %c0_22 = arith.constant 0 : index
    %29 = vector.load %arg4[%c0_20, %c0_21, %c0_22] : memref<12x2x24xf32, #tpu.memory_space<vmem>>, vector<1x2x24xf32>
    %30 = vector.shape_cast %29 : vector<1x2x24xf32> to vector<2x24xf32>
    %cst_23 = arith.constant dense<0.000000e+00> : vector<2x256xf32>
    %31 = tpu.matmul %30, %2, %cst_23 {dimension_numbers = #tpu.dot_dimension_numbers<[1], [0], [0], [1], [0, 0, 1, 1], [], []>} : vector<2x24xf32>, vector<24x256xf32>, vector<2x256xf32> -> vector<2x256xf32>
    %c1_24 = arith.constant 1 : index
    %c0_25 = arith.constant 0 : index
    %c0_26 = arith.constant 0 : index
    %32 = vector.load %arg4[%c1_24, %c0_25, %c0_26] : memref<12x2x24xf32, #tpu.memory_space<vmem>>, vector<1x2x24xf32>
    %33 = vector.shape_cast %32 : vector<1x2x24xf32> to vector<2x24xf32>
    %cst_27 = arith.constant dense<0.000000e+00> : vector<2x256xf32>
    %34 = tpu.matmul %33, %2, %cst_27 {dimension_numbers = #tpu.dot_dimension_numbers<[1], [0], [0], [1], [0, 0, 1, 1], [], []>} : vector<2x24xf32>, vector<24x256xf32>, vector<2x256xf32> -> vector<2x256xf32>
    %c2_28 = arith.constant 2 : index
    %c0_29 = arith.constant 0 : index
    %c0_30 = arith.constant 0 : index
    %35 = vector.load %arg4[%c2_28, %c0_29, %c0_30] : memref<12x2x24xf32, #tpu.memory_space<vmem>>, vector<1x2x24xf32>
    %36 = vector.shape_cast %35 : vector<1x2x24xf32> to vector<2x24xf32>
    %cst_31 = arith.constant dense<0.000000e+00> : vector<2x256xf32>
    %37 = tpu.matmul %36, %2, %cst_31 {dimension_numbers = #tpu.dot_dimension_numbers<[1], [0], [0], [1], [0, 0, 1, 1], [], []>} : vector<2x24xf32>, vector<24x256xf32>, vector<2x256xf32> -> vector<2x256xf32>
    %c3 = arith.constant 3 : index
    %c0_32 = arith.constant 0 : index
    %c0_33 = arith.constant 0 : index
    %38 = vector.load %arg4[%c3, %c0_32, %c0_33] : memref<12x2x24xf32, #tpu.memory_space<vmem>>, vector<1x2x24xf32>
    %39 = vector.shape_cast %38 : vector<1x2x24xf32> to vector<2x24xf32>
    %cst_34 = arith.constant dense<0.000000e+00> : vector<2x256xf32>
    %40 = tpu.matmul %39, %2, %cst_34 {dimension_numbers = #tpu.dot_dimension_numbers<[1], [0], [0], [1], [0, 0, 1, 1], [], []>} : vector<2x24xf32>, vector<24x256xf32>, vector<2x256xf32> -> vector<2x256xf32>
    %41 = arith.mulf %31, %12 : vector<2x256xf32>
    %42 = arith.mulf %34, %20 : vector<2x256xf32>
    %43 = arith.addf %41, %42 : vector<2x256xf32>
    %44 = arith.mulf %37, %28 : vector<2x256xf32>
    %45 = arith.addf %43, %44 : vector<2x256xf32>
    %46 = arith.addf %45, %40 : vector<2x256xf32>
    %c0_35 = arith.constant 0 : index
    %c0_36 = arith.constant 0 : index
    %c0_37 = arith.constant 0 : index
    %47 = vector.load %arg7[%c0_35, %c0_36, %c0_37] : memref<3x2x256xf32, #tpu.memory_space<vmem>>, vector<1x2x256xf32>
    %48 = vector.shape_cast %47 : vector<1x2x256xf32> to vector<2x256xf32>
    %49 = vector.shape_cast %46 : vector<2x256xf32> to vector<1x2x256xf32>
    tpu.vector_store %arg7[%c0_35, %c0_36, %c0_37], %49 {strides = array<i32>} : memref<3x2x256xf32, #tpu.memory_space<vmem>>, vector<1x2x256xf32>,
    %cst_38 = arith.constant dense<0.000000e+00> : vector<2x17xf32>
    %50 = tpu.matmul %46, %4, %cst_38 {dimension_numbers = #tpu.dot_dimension_numbers<[1], [1], [0], [0], [0, 0, 1, 0], [], []>} : vector<2x256xf32>, vector<17x256xf32>, vector<2x17xf32> -> vector<2x17xf32>
    %c0_39 = arith.constant 0 : index
    %c0_40 = arith.constant 0 : index
    %c0_41 = arith.constant 0 : index
    %c0_42 = arith.constant 0 : index
    %51 = vector.load %arg8[%c0_39, %c0_40, %c0_41, %c0_42] : memref<1x3x2x17xf32, #tpu.memory_space<vmem>>, vector<1x1x2x17xf32>
    %52 = vector.shape_cast %51 : vector<1x1x2x17xf32> to vector<2x17xf32>
    %53 = vector.shape_cast %50 : vector<2x17xf32> to vector<1x1x2x17xf32>
    tpu.vector_store %arg8[%c0_39, %c0_40, %c0_41, %c0_42], %53 {strides = array<i32>} : memref<1x3x2x17xf32, #tpu.memory_space<vmem>>, vector<1x1x2x17xf32>,
    %c4 = arith.constant 4 : index
    %c0_43 = arith.constant 0 : index
    %c0_44 = arith.constant 0 : index
    %54 = vector.load %arg4[%c4, %c0_43, %c0_44] : memref<12x2x24xf32, #tpu.memory_space<vmem>>, vector<1x2x24xf32>
    %55 = vector.shape_cast %54 : vector<1x2x24xf32> to vector<2x24xf32>
    %cst_45 = arith.constant dense<0.000000e+00> : vector<2x256xf32>
    %56 = tpu.matmul %55, %2, %cst_45 {dimension_numbers = #tpu.dot_dimension_numbers<[1], [0], [0], [1], [0, 0, 1, 1], [], []>} : vector<2x24xf32>, vector<24x256xf32>, vector<2x256xf32> -> vector<2x256xf32>
    %c5 = arith.constant 5 : index
    %c0_46 = arith.constant 0 : index
    %c0_47 = arith.constant 0 : index
    %57 = vector.load %arg4[%c5, %c0_46, %c0_47] : memref<12x2x24xf32, #tpu.memory_space<vmem>>, vector<1x2x24xf32>
    %58 = vector.shape_cast %57 : vector<1x2x24xf32> to vector<2x24xf32>
    %cst_48 = arith.constant dense<0.000000e+00> : vector<2x256xf32>
    %59 = tpu.matmul %58, %2, %cst_48 {dimension_numbers = #tpu.dot_dimension_numbers<[1], [0], [0], [1], [0, 0, 1, 1], [], []>} : vector<2x24xf32>, vector<24x256xf32>, vector<2x256xf32> -> vector<2x256xf32>
    %c6 = arith.constant 6 : index
    %c0_49 = arith.constant 0 : index
    %c0_50 = arith.constant 0 : index
    %60 = vector.load %arg4[%c6, %c0_49, %c0_50] : memref<12x2x24xf32, #tpu.memory_space<vmem>>, vector<1x2x24xf32>
    %61 = vector.shape_cast %60 : vector<1x2x24xf32> to vector<2x24xf32>
    %cst_51 = arith.constant dense<0.000000e+00> : vector<2x256xf32>
    %62 = tpu.matmul %61, %2, %cst_51 {dimension_numbers = #tpu.dot_dimension_numbers<[1], [0], [0], [1], [0, 0, 1, 1], [], []>} : vector<2x24xf32>, vector<24x256xf32>, vector<2x256xf32> -> vector<2x256xf32>
    %c7 = arith.constant 7 : index
    %c0_52 = arith.constant 0 : index
    %c0_53 = arith.constant 0 : index
    %63 = vector.load %arg4[%c7, %c0_52, %c0_53] : memref<12x2x24xf32, #tpu.memory_space<vmem>>, vector<1x2x24xf32>
    %64 = vector.shape_cast %63 : vector<1x2x24xf32> to vector<2x24xf32>
    %cst_54 = arith.constant dense<0.000000e+00> : vector<2x256xf32>
    %65 = tpu.matmul %64, %2, %cst_54 {dimension_numbers = #tpu.dot_dimension_numbers<[1], [0], [0], [1], [0, 0, 1, 1], [], []>} : vector<2x24xf32>, vector<24x256xf32>, vector<2x256xf32> -> vector<2x256xf32>
    %66 = arith.mulf %56, %12 : vector<2x256xf32>
    %67 = arith.mulf %59, %20 : vector<2x256xf32>
    %68 = arith.addf %66, %67 : vector<2x256xf32>
    %69 = arith.mulf %62, %28 : vector<2x256xf32>
    %70 = arith.addf %68, %69 : vector<2x256xf32>
    %71 = arith.addf %70, %65 : vector<2x256xf32>
    %c1_55 = arith.constant 1 : index
    %c0_56 = arith.constant 0 : index
    %c0_57 = arith.constant 0 : index
    %72 = vector.load %arg7[%c1_55, %c0_56, %c0_57] : memref<3x2x256xf32, #tpu.memory_space<vmem>>, vector<1x2x256xf32>
    %73 = vector.shape_cast %72 : vector<1x2x256xf32> to vector<2x256xf32>
    %74 = vector.shape_cast %71 : vector<2x256xf32> to vector<1x2x256xf32>
    tpu.vector_store %arg7[%c1_55, %c0_56, %c0_57], %74 {strides = array<i32>} : memref<3x2x256xf32, #tpu.memory_space<vmem>>, vector<1x2x256xf32>,
    %cst_58 = arith.constant dense<0.000000e+00> : vector<2x17xf32>
    %75 = tpu.matmul %71, %4, %cst_58 {dimension_numbers = #tpu.dot_dimension_numbers<[1], [1], [0], [0], [0, 0, 1, 0], [], []>} : vector<2x256xf32>, vector<17x256xf32>, vector<2x17xf32> -> vector<2x17xf32>
    %c0_59 = arith.constant 0 : index
    %c1_60 = arith.constant 1 : index
    %c0_61 = arith.constant 0 : index
    %c0_62 = arith.constant 0 : index
    %76 = vector.load %arg8[%c0_59, %c1_60, %c0_61, %c0_62] : memref<1x3x2x17xf32, #tpu.memory_space<vmem>>, vector<1x1x2x17xf32>
    %77 = vector.shape_cast %76 : vector<1x1x2x17xf32> to vector<2x17xf32>
    %78 = vector.shape_cast %75 : vector<2x17xf32> to vector<1x1x2x17xf32>
    tpu.vector_store %arg8[%c0_59, %c1_60, %c0_61, %c0_62], %78 {strides = array<i32>} : memref<1x3x2x17xf32, #tpu.memory_space<vmem>>, vector<1x1x2x17xf32>,
    %c8 = arith.constant 8 : index
    %c0_63 = arith.constant 0 : index
    %c0_64 = arith.constant 0 : index
    %79 = vector.load %arg4[%c8, %c0_63, %c0_64] : memref<12x2x24xf32, #tpu.memory_space<vmem>>, vector<1x2x24xf32>
    %80 = vector.shape_cast %79 : vector<1x2x24xf32> to vector<2x24xf32>
    %cst_65 = arith.constant dense<0.000000e+00> : vector<2x256xf32>
    %81 = tpu.matmul %80, %2, %cst_65 {dimension_numbers = #tpu.dot_dimension_numbers<[1], [0], [0], [1], [0, 0, 1, 1], [], []>} : vector<2x24xf32>, vector<24x256xf32>, vector<2x256xf32> -> vector<2x256xf32>
    %c9 = arith.constant 9 : index
    %c0_66 = arith.constant 0 : index
    %c0_67 = arith.constant 0 : index
    %82 = vector.load %arg4[%c9, %c0_66, %c0_67] : memref<12x2x24xf32, #tpu.memory_space<vmem>>, vector<1x2x24xf32>
    %83 = vector.shape_cast %82 : vector<1x2x24xf32> to vector<2x24xf32>
    %cst_68 = arith.constant dense<0.000000e+00> : vector<2x256xf32>
    %84 = tpu.matmul %83, %2, %cst_68 {dimension_numbers = #tpu.dot_dimension_numbers<[1], [0], [0], [1], [0, 0, 1, 1], [], []>} : vector<2x24xf32>, vector<24x256xf32>, vector<2x256xf32> -> vector<2x256xf32>
    %c10 = arith.constant 10 : index
    %c0_69 = arith.constant 0 : index
    %c0_70 = arith.constant 0 : index
    %85 = vector.load %arg4[%c10, %c0_69, %c0_70] : memref<12x2x24xf32, #tpu.memory_space<vmem>>, vector<1x2x24xf32>
    %86 = vector.shape_cast %85 : vector<1x2x24xf32> to vector<2x24xf32>
    %cst_71 = arith.constant dense<0.000000e+00> : vector<2x256xf32>
    %87 = tpu.matmul %86, %2, %cst_71 {dimension_numbers = #tpu.dot_dimension_numbers<[1], [0], [0], [1], [0, 0, 1, 1], [], []>} : vector<2x24xf32>, vector<24x256xf32>, vector<2x256xf32> -> vector<2x256xf32>
    %c11 = arith.constant 11 : index
    %c0_72 = arith.constant 0 : index
    %c0_73 = arith.constant 0 : index
    %88 = vector.load %arg4[%c11, %c0_72, %c0_73] : memref<12x2x24xf32, #tpu.memory_space<vmem>>, vector<1x2x24xf32>
    %89 = vector.shape_cast %88 : vector<1x2x24xf32> to vector<2x24xf32>
    %cst_74 = arith.constant dense<0.000000e+00> : vector<2x256xf32>
    %90 = tpu.matmul %89, %2, %cst_74 {dimension_numbers = #tpu.dot_dimension_numbers<[1], [0], [0], [1], [0, 0, 1, 1], [], []>} : vector<2x24xf32>, vector<24x256xf32>, vector<2x256xf32> -> vector<2x256xf32>
    %91 = arith.mulf %81, %12 : vector<2x256xf32>
    %92 = arith.mulf %84, %20 : vector<2x256xf32>
    %93 = arith.addf %91, %92 : vector<2x256xf32>
    %94 = arith.mulf %87, %28 : vector<2x256xf32>
    %95 = arith.addf %93, %94 : vector<2x256xf32>
    %96 = arith.addf %95, %90 : vector<2x256xf32>
    %c2_75 = arith.constant 2 : index
    %c0_76 = arith.constant 0 : index
    %c0_77 = arith.constant 0 : index
    %97 = vector.load %arg7[%c2_75, %c0_76, %c0_77] : memref<3x2x256xf32, #tpu.memory_space<vmem>>, vector<1x2x256xf32>
    %98 = vector.shape_cast %97 : vector<1x2x256xf32> to vector<2x256xf32>
    %99 = vector.shape_cast %96 : vector<2x256xf32> to vector<1x2x256xf32>
    tpu.vector_store %arg7[%c2_75, %c0_76, %c0_77], %99 {strides = array<i32>} : memref<3x2x256xf32, #tpu.memory_space<vmem>>, vector<1x2x256xf32>,
    %cst_78 = arith.constant dense<0.000000e+00> : vector<2x17xf32>
    %100 = tpu.matmul %96, %4, %cst_78 {dimension_numbers = #tpu.dot_dimension_numbers<[1], [1], [0], [0], [0, 0, 1, 0], [], []>} : vector<2x256xf32>, vector<17x256xf32>, vector<2x17xf32> -> vector<2x17xf32>
    %c0_79 = arith.constant 0 : index
    %c2_80 = arith.constant 2 : index
    %c0_81 = arith.constant 0 : index
    %c0_82 = arith.constant 0 : index
    %101 = vector.load %arg8[%c0_79, %c2_80, %c0_81, %c0_82] : memref<1x3x2x17xf32, #tpu.memory_space<vmem>>, vector<1x1x2x17xf32>
    %102 = vector.shape_cast %101 : vector<1x1x2x17xf32> to vector<2x17xf32>
    %103 = vector.shape_cast %100 : vector<2x17xf32> to vector<1x1x2x17xf32>
    tpu.vector_store %arg8[%c0_79, %c2_80, %c0_81, %c0_82], %103 {strides = array<i32>} : memref<1x3x2x17xf32, #tpu.memory_space<vmem>>, vector<1x1x2x17xf32>,
    return
  }
  func.func @transform_0(%arg0: i32) -> (i32, i32) {
    %c0_i32 = arith.constant 0 : i32
    %c0_i32_0 = arith.constant 0 : i32
    %c0_i32_1 = arith.constant 0 : i32
    return %c0_i32, %c0_i32_0 : i32, i32
  }
  func.func @transform_1(%arg0: i32) -> (i32, i32, i32) {
    %c0_i32 = arith.constant 0 : i32
    %c0_i32_0 = arith.constant 0 : i32
    %c0_i32_1 = arith.constant 0 : i32
    return %c0_i32, %c0_i32_0, %arg0 : i32, i32, i32
  }
  func.func @transform_2(%arg0: i32) -> (i32, i32) {
    %c0_i32 = arith.constant 0 : i32
    %c0_i32_0 = arith.constant 0 : i32
    return %c0_i32, %arg0 : i32, i32
  }
  func.func @transform_3(%arg0: i32) -> (i32, i32, i32) {
    %c0_i32 = arith.constant 0 : i32
    %c0_i32_0 = arith.constant 0 : i32
    %c0_i32_1 = arith.constant 0 : i32
    %c0_i32_2 = arith.constant 0 : i32
    return %c0_i32, %c0_i32_0, %c0_i32_1 : i32, i32, i32
  }
  func.func @transform_4(%arg0: i32) -> (i32, i32) {
    %c0_i32 = arith.constant 0 : i32
    %c0_i32_0 = arith.constant 0 : i32
    return %c0_i32, %arg0 : i32, i32
  }
  func.func @transform_5(%arg0: i32) -> (i32, i32) {
    %c0_i32 = arith.constant 0 : i32
    %c0_i32_0 = arith.constant 0 : i32
    return %c0_i32, %arg0 : i32, i32
  }
  func.func @transform_6(%arg0: i32) -> (i32, i32, i32) {
    %c0_i32 = arith.constant 0 : i32
    %c0_i32_0 = arith.constant 0 : i32
    %c0_i32_1 = arith.constant 0 : i32
    return %c0_i32, %c0_i32_0, %arg0 : i32, i32, i32
  }
  func.func @transform_7(%arg0: i32) -> (i32, i32, i32, i32) {
    %c0_i32 = arith.constant 0 : i32
    %c0_i32_0 = arith.constant 0 : i32
    %c0_i32_1 = arith.constant 0 : i32
    %c0_i32_2 = arith.constant 0 : i32
    return %arg0, %c0_i32, %c0_i32_0, %c0_i32_1 : i32, i32, i32, i32
  }
}

</mosaic_0001>

<llo_original>
// kernel: fwd.2
$region0: #{fwd.2}
  #allocation0 [shape = 'u32[]', space=smem, size = 0x4, offset = 0x4, fixed_abs, tag = 'smem constant byte address 0x4 - core index']
  #allocation1 [shape = 'u32[144,128]{1,0:T(1,128)}', space=vmem, size = 0x12000, scoped, tag = 'internal scratch']
  %s0 = inlined_call_operand.vmem [shape: bf16[2,10], index: 0, kind: input, shape index: {}]
  %s1 = inlined_call_operand.hbm [shape: bf16[3,10,512], index: 1, kind: input, shape index: {}]
  %s2 = inlined_call_operand.vmem [shape: f32[3,512], index: 2, kind: input, shape index: {}]
  %s3 = inlined_call_operand.hbm [shape: bf16[24,512], index: 3, kind: input, shape index: {}]
  %s4 = inlined_call_operand.vmem [shape: f32[2,3,2,24], index: 4, kind: output, shape index: {}]
  %s5 = sld [smem:[#allocation0]]
  $region57: #{fwd.2} parent=0
    _
  %s7 = ssub.s32 1, %s5
  %s8 = scalar_select 0, %s7, %s5
  $region1: #{fwd.2} parent=0
    #allocation2 [shape = 'u8[49152]{0}', space=vmem, size = 0xc000, scoped, tag = 'input window, operand 1']
    #allocation3 [shape = 's32[2]{0}', space=sflag, size = 0x8, scoped, tag = 'scoped memory for fwd.2']
    #allocation4 [shape = 'u8[24576]{0}', space=vmem, size = 0x6000, scoped, tag = 'input window, operand 3']
    #allocation5 [shape = 's32[2]{0}', space=sflag, size = 0x8, scoped, tag = 'scoped memory for fwd.2']
    %9 = vsyncpa [#allocation3], 0
    %s10 = scalar_lea.sflag [#allocation3], 1
    %11 = vsyncpa %s10, 0
    %12 = vsyncpa [#allocation5], 0
    %s13 = scalar_lea.sflag [#allocation5], 1
    %14 = vsyncpa %s13, 0
    loop: start=0, step=1, limit=4
    $region2: #{fwd.2} parent=1 // loop_pre_header
      _
    $region3: #{fwd.2} parent=1 // loop_header
      %s16 = sphi 0, %s20
      %p17 = scmp.ge.s32.totalorder %s16, 4
      %s24 = sphi 0, %s24
      %s26 = sphi 0, %s24
      %s27 = sphi 0, %s26
      %s41 = sphi 0, %s27
      %s47 = sphi 0, %s49
      %s50 = sphi 0, %s47
      %s51 = sphi 0, %s50
      %s67 = sphi 0, %s51
      %s73 = sphi 0, %s75
      %s76 = sphi 0, %s73
      %s77 = sphi 0, %s76
      %s93 = sphi 0, %s77
      %s99 = sphi 0, %s101
      %s102 = sphi 0, %s99
      %s103 = sphi 0, %s102
      %s119 = sphi 0, %s103
      %s125 = sphi 0, %s127
      %s128 = sphi 0, %s125
      %s129 = sphi 0, %s128
      %s145 = sphi 0, %s129
    $region4: #{fwd.2} parent=1 // loop_header_branch
      %19 = sbr.rel (%p17) target = $region8
    $region5: #{fwd.2} parent=1 // loop_body
      %s21 = ssub.s32 %s16, 1
      %s22 = ssub.s32 %s16, 2
      %s23 = sadd.s32 %s16, 1
      %s25 = sadd.s32 %s24, 1
      %p28 = scmp.eq.s32.totalorder %s16, 1
      %p29 = scmp.ne.s32.totalorder %s24, %s26
      %p30 = scmp.eq.s32.totalorder %s16, 0
      %p31 = por %p29, %p30
      %p32 = scmp.ne.s32.totalorder %s24, %s26
      %p33 = scmp.eq.s32.totalorder %s21, 1
      %p34 = por %p32, %p33
      %p35 = scmp.ne.s32.totalorder %s26, %s27
      %p36 = scmp.eq.s32.totalorder %s21, 0
      %p37 = por %p35, %p36
      %p38 = scmp.ne.s32.totalorder %s26, %s27
      %p39 = scmp.eq.s32.totalorder %s22, 1
      %p40 = por %p38, %p39
      %p42 = scmp.ne.s32.totalorder %s27, %s41
      %p43 = scmp.eq.s32.totalorder %s22, 0
      %p44 = por %p42, %p43
      %s45 = ssub.s32 %s16, %s23
      %p46 = scmp.eq.s32.totalorder %s45, 0
      %s48 = sadd.s32 %s47, 1
      %s49 = scalar_select %p46, %s47, %s48
      %p52 = pneg %p46
      %p53 = scmp.eq.s32.totalorder %s16, 1
      %p54 = por %p52, %p53
      %p55 = scmp.ne.s32.totalorder %s47, %s50
      %p56 = scmp.eq.s32.totalorder %s16, 0
      %p57 = por %p55, %p56
      %p58 = scmp.ne.s32.totalorder %s47, %s50
      %p59 = scmp.eq.s32.totalorder %s21, 1
      %p60 = por %p58, %p59
      %p61 = scmp.ne.s32.totalorder %s50, %s51
      %p62 = scmp.eq.s32.totalorder %s21, 0
      %p63 = por %p61, %p62
      %p64 = scmp.ne.s32.totalorder %s50, %s51
      %p65 = scmp.eq.s32.totalorder %s22, 1
      %p66 = por %p64, %p65
      %p68 = scmp.ne.s32.totalorder %s51, %s67
      %p69 = scmp.eq.s32.totalorder %s22, 0
      %p70 = por %p68, %p69
      %s71 = ssub.s32 %s16, %s23
      %p72 = scmp.eq.s32.totalorder %s71, 0
      %s74 = sadd.s32 %s73, 1
      %s75 = scalar_select %p72, %s73, %s74
      %p78 = pneg %p72
      %p79 = scmp.eq.s32.totalorder %s16, 1
      %p80 = por %p78, %p79
      %p81 = scmp.ne.s32.totalorder %s73, %s76
      %p82 = scmp.eq.s32.totalorder %s16, 0
      %p83 = por %p81, %p82
      %p84 = scmp.ne.s32.totalorder %s73, %s76
      %p85 = scmp.eq.s32.totalorder %s21, 1
      %p86 = por %p84, %p85
      %p87 = scmp.ne.s32.totalorder %s76, %s77
      %p88 = scmp.eq.s32.totalorder %s21, 0
      %p89 = por %p87, %p88
      %p90 = scmp.ne.s32.totalorder %s76, %s77
      %p91 = scmp.eq.s32.totalorder %s22, 1
      %p92 = por %p90, %p91
      %p94 = scmp.ne.s32.totalorder %s77, %s93
      %p95 = scmp.eq.s32.totalorder %s22, 0
      %p96 = por %p94, %p95
      %s97 = ssub.s32 %s16, %s23
      %p98 = scmp.eq.s32.totalorder %s97, 0
      %s100 = sadd.s32 %s99, 1
      %s101 = scalar_select %p98, %s99, %s100
      %p104 = pneg %p98
      %p105 = scmp.eq.s32.totalorder %s16, 1
      %p106 = por %p104, %p105
      %p107 = scmp.ne.s32.totalorder %s99, %s102
      %p108 = scmp.eq.s32.totalorder %s16, 0
      %p109 = por %p107, %p108
      %p110 = scmp.ne.s32.totalorder %s99, %s102
      %p111 = scmp.eq.s32.totalorder %s21, 1
      %p112 = por %p110, %p111
      %p113 = scmp.ne.s32.totalorder %s102, %s103
      %p114 = scmp.eq.s32.totalorder %s21, 0
      %p115 = por %p113, %p114
      %p116 = scmp.ne.s32.totalorder %s102, %s103
      %p117 = scmp.eq.s32.totalorder %s22, 1
      %p118 = por %p116, %p117
      %p120 = scmp.ne.s32.totalorder %s103, %s119
      %p121 = scmp.eq.s32.totalorder %s22, 0
      %p122 = por %p120, %p121
      %s123 = ssub.s32 %s16, %s23
      %p124 = scmp.eq.s32.totalorder %s123, 0
      %s126 = sadd.s32 %s125, 1
      %s127 = scalar_select %p124, %s125, %s126
      %p130 = pneg %p124
      %p131 = scmp.eq.s32.totalorder %s16, 1
      %p132 = por %p130, %p131
      %p133 = scmp.ne.s32.totalorder %s125, %s128
      %p134 = scmp.eq.s32.totalorder %s16, 0
      %p135 = por %p133, %p134
      %p136 = scmp.ne.s32.totalorder %s125, %s128
      %p137 = scmp.eq.s32.totalorder %s21, 1
      %p138 = por %p136, %p137
      %p139 = scmp.ne.s32.totalorder %s128, %s129
      %p140 = scmp.eq.s32.totalorder %s21, 0
      %p141 = por %p139, %p140
      %p142 = scmp.ne.s32.totalorder %s128, %s129
      %p143 = scmp.eq.s32.totalorder %s22, 1
      %p144 = por %p142, %p143
      %p146 = scmp.ne.s32.totalorder %s129, %s145
      %p147 = scmp.eq.s32.totalorder %s22, 0
      %p148 = por %p146, %p147
      %p149 = scmp.le.s32.totalorder 1, %s16
      %p150 = scmp.lt.s32.totalorder %s16, 3
      %p151 = pnand %p149, %p150
      %p152 = pneg %p151
      // Predicated region
      $region9: #{fwd.2} parent=5 // pred_check
        _
      $region10: #{fwd.2} parent=5 // pred_check_branch
        %154 = sbr.rel (%p151) target = $region12
      $region11: #{fwd.2} parent=5 // pred_region
        %s155 = ssub.s32 %s16, 1
        // Predicated region
        $region13: #{fwd.2} parent=11 // pred_check
          %p156 = pneg %p37
        $region14: #{fwd.2} parent=11 // pred_check_branch
          %158 = sbr.rel (%p156) target = $region16
        $region15: #{fwd.2} parent=11 // pred_region
          _
        $region16: #{fwd.2} parent=11 // pred_fallthru
          _
      $region12: #{fwd.2} parent=5 // pred_fallthru
        _
      %p159 = scmp.lt.s32.totalorder %s16, 2
      // Predicated region
      $region17: #{fwd.2} parent=5 // pred_check
        %p160 = pneg %p159
      $region18: #{fwd.2} parent=5 // pred_check_branch
        %162 = sbr.rel (%p160) target = $region20
      $region19: #{fwd.2} parent=5 // pred_region
        // Predicated region
        $region21: #{fwd.2} parent=19 // pred_check
          %p163 = pneg %p57
        $region22: #{fwd.2} parent=19 // pred_check_branch
          %165 = sbr.rel (%p163) target = $region24
        $region23: #{fwd.2} parent=19 // pred_region
          %s166 = sand.u32 %s47, 1
          %s167 = scalar_lea.sflag [#allocation3], %s166
          %s168 = sand.u32 %s47, 1
          %s169 = smul.addr %s168, 48
          %s170 = scalar_lea.vmem [#allocation2], %s169
          %s171 = smul.u32 2, %s16
          %s173 = ssub.s32 768, 768
          %174 = vsyncadd %s167, %s173
          %s175 = smul.addr %s171, 64
          %s176 = scalar_lea.hbm %s1, %s175
          %s177 = sshll.u32 %s170, 4
          %s178 = int_to_ptr.vmem [resolvable:$true] %s177
          %183 = dma.hbm_to_vmem [thread:$0]  %s176, 768, %s178, %s167, 256, 128, 8
        $region24: #{fwd.2} parent=19 // pred_fallthru
          _
        // Predicated region
        $region25: #{fwd.2} parent=19 // pred_check
          %p184 = pneg %p83
        $region26: #{fwd.2} parent=19 // pred_check_branch
          %186 = sbr.rel (%p184) target = $region28
        $region27: #{fwd.2} parent=19 // pred_region
          %s187 = smul.u32 2, %s16
          %p188 = scmp.lt.s32.totalorder %s187, 3
          %s189 = scalar_select %p188, %s187, 3
          %s190 = smul.addr %s189, 4
          %s191 = scalar_lea.vmem %s2, %s190
          %s192 = smul.u32 2, %s16
        $region28: #{fwd.2} parent=19 // pred_fallthru
          _
        // Predicated region
        $region29: #{fwd.2} parent=19 // pred_check
          %p193 = pneg %p109
        $region30: #{fwd.2} parent=19 // pred_check_branch
          %195 = sbr.rel (%p193) target = $region32
        $region31: #{fwd.2} parent=19 // pred_region
          %s196 = sand.u32 %s99, 1
          %s197 = scalar_lea.sflag [#allocation5], %s196
          %s198 = sand.u32 %s99, 1
          %s199 = smul.addr %s198, 24
          %s200 = scalar_lea.vmem [#allocation4], %s199
          %s201 = smul.u32 2, %s16
          %s203 = ssub.s32 384, 384
          %204 = vsyncadd %s197, %s203
          %s205 = smul.addr %s201, 64
          %s206 = scalar_lea.hbm %s3, %s205
          %s207 = sshll.u32 %s200, 4
          %s208 = int_to_ptr.vmem [resolvable:$true] %s207
          %213 = dma.hbm_to_vmem [thread:$0]  %s206, 384, %s208, %s197, 256, 128, 8
        $region32: #{fwd.2} parent=19 // pred_fallthru
          _
      $region20: #{fwd.2} parent=5 // pred_fallthru
        _
      %p214 = scmp.le.s32.totalorder 1, %s16
      %p215 = scmp.lt.s32.totalorder %s16, 3
      %p216 = pnand %p214, %p215
      %p217 = pneg %p216
      // Predicated region
      $region33: #{fwd.2} parent=5 // pred_check
        _
      $region34: #{fwd.2} parent=5 // pred_check_branch
        %219 = sbr.rel (%p216) target = $region36
      $region35: #{fwd.2} parent=5 // pred_region
        %s220 = ssub.s32 %s16, 1
        %s221 = sand.u32 %s50, 1
        %s222 = scalar_lea.sflag [#allocation3], %s221
        %s223 = sand.u32 %s50, 1
        %s224 = smul.addr %s223, 48
        %s225 = scalar_lea.vmem [#allocation2], %s224
        // Predicated region
        $region37: #{fwd.2} parent=35 // pred_check
          %p226 = pneg %p63
        $region38: #{fwd.2} parent=35 // pred_check_branch
          %228 = sbr.rel (%p226) target = $region40
        $region39: #{fwd.2} parent=35 // pred_region
          %229 = dma.done %s222, 768
        $region40: #{fwd.2} parent=35 // pred_fallthru
          _
        %s230 = sand.u32 %s102, 1
        %s231 = scalar_lea.sflag [#allocation5], %s230
        %s232 = sand.u32 %s102, 1
        %s233 = smul.addr %s232, 24
        %s234 = scalar_lea.vmem [#allocation4], %s233
        // Predicated region
        $region41: #{fwd.2} parent=35 // pred_check
          %p235 = pneg %p115
        $region42: #{fwd.2} parent=35 // pred_check_branch
          %237 = sbr.rel (%p235) target = $region44
        $region43: #{fwd.2} parent=35 // pred_region
          %238 = dma.done %s231, 384
        $region44: #{fwd.2} parent=35 // pred_fallthru
          _
        %p239 = pneg %p37
        %p240 = pneg %p34
        %s241 = sand.u32 %s50, 1
        %s242 = scalar_lea.sflag [#allocation3], %s241
        %s243 = sand.u32 %s50, 1
        %s244 = smul.addr %s243, 48
        %s245 = scalar_lea.vmem [#allocation2], %s244
        %p246 = pneg %p63
        %p247 = pneg %p60
        %s248 = smul.u32 2, %s21
        %p249 = scmp.lt.s32.totalorder %s248, 3
        %s250 = scalar_select %p249, %s248, 3
        %s251 = smul.addr %s250, 4
        %s252 = scalar_lea.vmem %s2, %s251
        %p253 = pneg %p89
        %p254 = pneg %p86
        %s255 = sand.u32 %s102, 1
        %s256 = scalar_lea.sflag [#allocation5], %s255
        %s257 = sand.u32 %s102, 1
        %s258 = smul.addr %s257, 24
        %s259 = scalar_lea.vmem [#allocation4], %s258
        %p260 = pneg %p115
        %p261 = pneg %p112
        %p262 = pneg %p141
        %p263 = pneg %p138
        %p264 = scmp.lt.s32.totalorder %s21, 1
        %s265 = scalar_select %p264, %s21, 1
        %s266 = smul.addr %s265, 3
        %s267 = smul.addr %s266, 2
        %s268 = scalar_lea.vmem %s4, %s267
        %s269 = smul.u32 2, %s21
        %s270 = smul.u32 2, %s21
        %p271 = scmp.lt.s32.totalorder %s270, 3
        %s272 = scalar_select %p271, %s270, 3
        %s273 = smul.addr %s272, 4
        %s274 = scalar_lea.vmem %s2, %s273
        %s275 = smul.u32 2, %s21
        %s276 = smul.u32 2, %s21
        %p277 = scmp.lt.s32.totalorder %s21, 1
        %s278 = scalar_select %p277, %s21, 1
        %s279 = smul.addr %s278, 3
        %s280 = smul.addr %s279, 2
        %s281 = scalar_lea.vmem %s4, %s280
        %v283 = vld [vmem:[%s0] sm:$0x1]
        %v284 = vld [vmem:[%s234] sm:$0xff]
        %v285 = vld [vmem:[%s234 + $0x8] sm:$0xff]
        %v286 = vld [vmem:[%s234 + $0x10] sm:$0xff]
        %v287 = vunpack.c.l.bf16 %v284
        %v288 = vunpack.c.h.bf16 %v284
        %v289 = vunpack.c.l.bf16 %v285
        %v290 = vunpack.c.h.bf16 %v285
        %v291 = vunpack.c.l.bf16 %v286
        %v292 = vunpack.c.h.bf16 %v286
        %v293 = vld [vmem:[%s225] sm:$0xff]
        %v294 = vld [vmem:[%s225 + $0x8] sm:$0x11]
        %v295 = vld [vmem:[%s274] ss:$4 sm:$0x3]
        %v297 = vlaneseq
        %v298 = vshrl.u32 %v297, 7
        %v299 = vsub.s32 0, %v298
        %v300 = vrot.slane %v295, %v299
        %v301 = vlaneseq
        %v302 = vshrl.u32 %v301, 7
        %v303 = vsub.s32 1, %v302
        %v304 = vrot.slane %v295, %v303
        %v309 = vunpack.c.l.b16 %v293
        %v310 = vunpack.c.h.b16 %v293
        %v311 = vunpack.c.l.b16 %v294
        %v312 = vunpack.c.h.b16 %v294
        %v313 = vpack.c.b16 %v311, %v309
        %v314 = vpack.c.b16 %v312, %v310
        %vm315 = vcmask 80896
        %v317 = vsel %vm315, %v283, 0
        %vm319 = vcmask 1044480
        %v321 = vsel %vm319, %v313, 0
        %v324 = vsel %vm319, %v314, 0
        %326 = vmatprep.subr.bf16.mxu0 0
        %327 = vmatpush1.bf16.msra.mxu0 0
        %328 = vmatprep.subr.bf16.mxu0 0
        %329 = vmatpush1.bf16.msra.mxu0 0
        %330 = vmatprep.subr.bf16.mxu0 0
        %331 = vmatpush1.bf16.msra.mxu0 0
        %332 = vmatprep.subr.bf16.mxu0 0
        %333 = vmatpush1.bf16.msra.mxu0 0
        %334 = vmatprep.subr.bf16.mxu0 0
        %335 = vmatpush1.bf16.msra.mxu0 0
        %336 = vmatprep.subr.bf16.mxu0 0
        %337 = vmatpush1.bf16.msra.mxu0 0
        %338 = vmatprep.subr.bf16.mxu0 0
        %339 = vmatpush1.bf16.msra.mxu0 0
        %340 = vmatprep.subr.bf16.mxu0 %v324
        %341 = vmatpush1.bf16.msra.mxu0 %v321
        %342 = vmatprep.subr.bf16.mxu0 0
        %343 = vmatpush2.bf16.msra.mxu0 0
        %344 = vmatprep.subr.bf16.mxu0 0
        %345 = vmatpush2.bf16.msra.mxu0 0
        %346 = vmatprep.subr.bf16.mxu0 0
        %347 = vmatpush2.bf16.msra.mxu0 0
        %348 = vmatprep.subr.bf16.mxu0 0
        %349 = vmatpush2.bf16.msra.mxu0 0
        %350 = vmatprep.subr.bf16.mxu0 0
        %351 = vmatpush2.bf16.msra.mxu0 0
        %352 = vmatprep.subr.bf16.mxu0 0
        %353 = vmatpush2.bf16.msra.mxu0 0
        %354 = vmatprep.subr.bf16.mxu0 0
        %355 = vmatpush2.bf16.msra.mxu0 0
        %356 = vmatprep.subr.bf16.mxu0 0
        %357 = vmatpush2.bf16.msra.mxu0 0
        %358 = vmatprep.mubr.bf16.mxu0 0
        %359 = vmatmul.mubr.bf16.gmra.mxu0 %v317
        %v360 = vpop.f32.mrf.mxu0
        %v361 = vadd.f32 %v300, %v360
        %v362 = vpop.f32.mrf.mxu0
        %v363 = vadd.f32 %v304, %v362
        %v364 = vpop.f32.mrf.mxu0
        %v365 = vpop.f32.mrf.mxu0
        %366 = vdwg.mxu0
        %367 = vmatprep.subr.mxu0 0.0
        %368 = vmatpush1.xpose.msra.mxu0 0.0
        %369 = vmatprep.subr.mxu0 0.0
        %370 = vmatpush1.xpose.msra.mxu0 0.0
        %371 = vmatprep.subr.mxu0 0.0
        %372 = vmatpush1.xpose.msra.mxu0 0.0
        %373 = vmatprep.subr.mxu0 0.0
        %374 = vmatpush1.xpose.msra.mxu0 0.0
        %375 = vmatprep.subr.mxu0 0.0
        %376 = vmatpush1.xpose.msra.mxu0 0.0
        %377 = vmatprep.subr.mxu0 0.0
        %378 = vmatpush1.xpose.msra.mxu0 0.0
        %379 = vmatprep.subr.mxu0 0.0
        %380 = vmatpush1.xpose.msra.mxu0 0.0
        %381 = vmatprep.subr.mxu0 0.0
        %382 = vmatpush1.xpose.msra.mxu0 0.0
        %383 = vmatprep.subr.mxu0 0.0
        %384 = vmatpush1.xpose.msra.mxu0 0.0
        %385 = vmatprep.subr.mxu0 0.0
        %386 = vmatpush1.xpose.msra.mxu0 0.0
        %387 = vmatprep.subr.mxu0 0.0
        %388 = vmatpush1.xpose.msra.mxu0 0.0
        %389 = vmatprep.subr.mxu0 0.0
        %390 = vmatpush1.xpose.msra.mxu0 0.0
        %391 = vmatprep.subr.mxu0 0.0
        %392 = vmatpush1.xpose.msra.mxu0 0.0
        %393 = vmatprep.subr.mxu0 %v292
        %394 = vmatpush1.xpose.msra.mxu0 %v291
        %395 = vmatprep.subr.mxu0 %v290
        %396 = vmatpush1.xpose.msra.mxu0 %v289
        %397 = vmatprep.subr.mxu0 %v288
        %398 = vmatpush1.xpose.msra.mxu0 %v287
        %399 = vmatprep.subr.mxu0 0.0
        %400 = vmatpush2.xpose.msra.mxu0 0.0
        %401 = vmatprep.subr.mxu0 0.0
        %402 = vmatpush2.xpose.msra.mxu0 0.0
        %403 = vmatprep.subr.mxu0 0.0
        %404 = vmatpush2.xpose.msra.mxu0 0.0
        %405 = vmatprep.subr.mxu0 0.0
        %406 = vmatpush2.xpose.msra.mxu0 0.0
        %407 = vmatprep.subr.mxu0 0.0
        %408 = vmatpush2.xpose.msra.mxu0 0.0
        %409 = vmatprep.subr.mxu0 0.0
        %410 = vmatpush2.xpose.msra.mxu0 0.0
        %411 = vmatprep.subr.mxu0 0.0
        %412 = vmatpush2.xpose.msra.mxu0 0.0
        %413 = vmatprep.subr.mxu0 0.0
        %414 = vmatpush2.xpose.msra.mxu0 0.0
        %415 = vmatprep.subr.mxu0 0.0
        %416 = vmatpush2.xpose.msra.mxu0 0.0
        %417 = vmatprep.subr.mxu0 0.0
        %418 = vmatpush2.xpose.msra.mxu0 0.0
        %419 = vmatprep.subr.mxu0 0.0
        %420 = vmatpush2.xpose.msra.mxu0 0.0
        %421 = vmatprep.subr.mxu0 0.0
        %422 = vmatpush2.xpose.msra.mxu0 0.0
        %423 = vmatprep.subr.mxu0 0.0
        %424 = vmatpush2.xpose.msra.mxu0 0.0
        %425 = vmatprep.subr.mxu0 0.0
        %426 = vmatpush2.xpose.msra.mxu0 0.0
        %427 = vmatprep.subr.mxu0 0.0
        %428 = vmatpush2.xpose.msra.mxu0 0.0
        %429 = vmatprep.subr.mxu0 0.0
        %430 = vmatpush2.xpose.msra.mxu0 0.0
        %431 = vmatprep.mubr.f32.mxu0 %v363
        %432 = vmatmul.mubr.f32.gmra.mxu0 %v361
        %v433 = vpop.f32.mrf.mxu0
        %v434 = vadd.f32 0.0, %v433
        %v435 = vpop.f32.mrf.mxu0
        %436 = vdwg.mxu0
        %vm437 = vcmask 189440
        %438 = vst.msk [vmem:[%s281] sm:$0x3] %vm437, %v434
        %s439 = scalar_lea.vmem %s225, 16 [#allocation2]
        %v440 = vld [vmem:[%s439] sm:$0xff]
        %v441 = vld [vmem:[%s439 + $0x8] sm:$0x11]
        %s442 = scalar_lea.vmem %s274, 1
        %v443 = vld [vmem:[%s442] ss:$4 sm:$0x3]
        %v445 = vlaneseq
        %v446 = vshrl.u32 %v445, 7
        %v447 = vsub.s32 0, %v446
        %v448 = vrot.slane %v443, %v447
        %v449 = vlaneseq
        %v450 = vshrl.u32 %v449, 7
        %v451 = vsub.s32 1, %v450
        %v452 = vrot.slane %v443, %v451
        %v457 = vunpack.c.l.b16 %v440
        %v458 = vunpack.c.h.b16 %v440
        %v459 = vunpack.c.l.b16 %v441
        %v460 = vunpack.c.h.b16 %v441
        %v461 = vpack.c.b16 %v459, %v457
        %v462 = vpack.c.b16 %v460, %v458
        %v464 = vsel %vm319, %v461, 0
        %v467 = vsel %vm319, %v462, 0
        %469 = vmatprep.subr.bf16.mxu0 0
        %470 = vmatpush1.bf16.msra.mxu0 0
        %471 = vmatprep.subr.bf16.mxu0 0
        %472 = vmatpush1.bf16.msra.mxu0 0
        %473 = vmatprep.subr.bf16.mxu0 0
        %474 = vmatpush1.bf16.msra.mxu0 0
        %475 = vmatprep.subr.bf16.mxu0 0
        %476 = vmatpush1.bf16.msra.mxu0 0
        %477 = vmatprep.subr.bf16.mxu0 0
        %478 = vmatpush1.bf16.msra.mxu0 0
        %479 = vmatprep.subr.bf16.mxu0 0
        %480 = vmatpush1.bf16.msra.mxu0 0
        %481 = vmatprep.subr.bf16.mxu0 0
        %482 = vmatpush1.bf16.msra.mxu0 0
        %483 = vmatprep.subr.bf16.mxu0 %v467
        %484 = vmatpush1.bf16.msra.mxu0 %v464
        %485 = vmatprep.subr.bf16.mxu0 0
        %486 = vmatpush2.bf16.msra.mxu0 0
        %487 = vmatprep.subr.bf16.mxu0 0
        %488 = vmatpush2.bf16.msra.mxu0 0
        %489 = vmatprep.subr.bf16.mxu0 0
        %490 = vmatpush2.bf16.msra.mxu0 0
        %491 = vmatprep.subr.bf16.mxu0 0
        %492 = vmatpush2.bf16.msra.mxu0 0
        %493 = vmatprep.subr.bf16.mxu0 0
        %494 = vmatpush2.bf16.msra.mxu0 0
        %495 = vmatprep.subr.bf16.mxu0 0
        %496 = vmatpush2.bf16.msra.mxu0 0
        %497 = vmatprep.subr.bf16.mxu0 0
        %498 = vmatpush2.bf16.msra.mxu0 0
        %499 = vmatprep.subr.bf16.mxu0 0
        %500 = vmatpush2.bf16.msra.mxu0 0
        %501 = vmatprep.mubr.bf16.mxu0 0
        %502 = vmatmul.mubr.bf16.gmra.mxu0 %v317
        %v503 = vpop.f32.mrf.mxu0
        %v504 = vadd.f32 %v448, %v503
        %v505 = vpop.f32.mrf.mxu0
        %v506 = vadd.f32 %v452, %v505
        %v507 = vpop.f32.mrf.mxu0
        %v508 = vpop.f32.mrf.mxu0
        %509 = vdwg.mxu0
        %510 = vmatprep.subr.mxu0 0.0
        %511 = vmatpush1.xpose.msra.mxu0 0.0
        %512 = vmatprep.subr.mxu0 0.0
        %513 = vmatpush1.xpose.msra.mxu0 0.0
        %514 = vmatprep.subr.mxu0 0.0
        %515 = vmatpush1.xpose.msra.mxu0 0.0
        %516 = vmatprep.subr.mxu0 0.0
        %517 = vmatpush1.xpose.msra.mxu0 0.0
        %518 = vmatprep.subr.mxu0 0.0
        %519 = vmatpush1.xpose.msra.mxu0 0.0
        %520 = vmatprep.subr.mxu0 0.0
        %521 = vmatpush1.xpose.msra.mxu0 0.0
        %522 = vmatprep.subr.mxu0 0.0
        %523 = vmatpush1.xpose.msra.mxu0 0.0
        %524 = vmatprep.subr.mxu0 0.0
        %525 = vmatpush1.xpose.msra.mxu0 0.0
        %526 = vmatprep.subr.mxu0 0.0
        %527 = vmatpush1.xpose.msra.mxu0 0.0
        %528 = vmatprep.subr.mxu0 0.0
        %529 = vmatpush1.xpose.msra.mxu0 0.0
        %530 = vmatprep.subr.mxu0 0.0
        %531 = vmatpush1.xpose.msra.mxu0 0.0
        %532 = vmatprep.subr.mxu0 0.0
        %533 = vmatpush1.xpose.msra.mxu0 0.0
        %534 = vmatprep.subr.mxu0 0.0
        %535 = vmatpush1.xpose.msra.mxu0 0.0
        %536 = vmatprep.subr.mxu0 %v292
        %537 = vmatpush1.xpose.msra.mxu0 %v291
        %538 = vmatprep.subr.mxu0 %v290
        %539 = vmatpush1.xpose.msra.mxu0 %v289
        %540 = vmatprep.subr.mxu0 %v288
        %541 = vmatpush1.xpose.msra.mxu0 %v287
        %542 = vmatprep.subr.mxu0 0.0
        %543 = vmatpush2.xpose.msra.mxu0 0.0
        %544 = vmatprep.subr.mxu0 0.0
        %545 = vmatpush2.xpose.msra.mxu0 0.0
        %546 = vmatprep.subr.mxu0 0.0
        %547 = vmatpush2.xpose.msra.mxu0 0.0
        %548 = vmatprep.subr.mxu0 0.0
        %549 = vmatpush2.xpose.msra.mxu0 0.0
        %550 = vmatprep.subr.mxu0 0.0
        %551 = vmatpush2.xpose.msra.mxu0 0.0
        %552 = vmatprep.subr.mxu0 0.0
        %553 = vmatpush2.xpose.msra.mxu0 0.0
        %554 = vmatprep.subr.mxu0 0.0
        %555 = vmatpush2.xpose.msra.mxu0 0.0
        %556 = vmatprep.subr.mxu0 0.0
        %557 = vmatpush2.xpose.msra.mxu0 0.0
        %558 = vmatprep.subr.mxu0 0.0
        %559 = vmatpush2.xpose.msra.mxu0 0.0
        %560 = vmatprep.subr.mxu0 0.0
        %561 = vmatpush2.xpose.msra.mxu0 0.0
        %562 = vmatprep.subr.mxu0 0.0
        %563 = vmatpush2.xpose.msra.mxu0 0.0
        %564 = vmatprep.subr.mxu0 0.0
        %565 = vmatpush2.xpose.msra.mxu0 0.0
        %566 = vmatprep.subr.mxu0 0.0
        %567 = vmatpush2.xpose.msra.mxu0 0.0
        %568 = vmatprep.subr.mxu0 0.0
        %569 = vmatpush2.xpose.msra.mxu0 0.0
        %570 = vmatprep.subr.mxu0 0.0
        %571 = vmatpush2.xpose.msra.mxu0 0.0
        %572 = vmatprep.subr.mxu0 0.0
        %573 = vmatpush2.xpose.msra.mxu0 0.0
        %574 = vmatprep.mubr.f32.mxu0 %v506
        %575 = vmatmul.mubr.f32.gmra.mxu0 %v504
        %v576 = vpop.f32.mrf.mxu0
        %v577 = vadd.f32 0.0, %v576
        %v578 = vpop.f32.mrf.mxu0
        %579 = vdwg.mxu0
        %s580 = scalar_lea.vmem %s281, 2
        %581 = vst.msk [vmem:[%s580] sm:$0x3] %vm437, %v577
        %s582 = scalar_lea.vmem %s225, 32 [#allocation2]
        %v583 = vld [vmem:[%s582] sm:$0xff]
        %v584 = vld [vmem:[%s582 + $0x8] sm:$0x11]
        %s585 = scalar_lea.vmem %s274, 2
        %v586 = vld [vmem:[%s585] ss:$4 sm:$0x3]
        %v588 = vlaneseq
        %v589 = vshrl.u32 %v588, 7
        %v590 = vsub.s32 0, %v589
        %v591 = vrot.slane %v586, %v590
        %v592 = vlaneseq
        %v593 = vshrl.u32 %v592, 7
        %v594 = vsub.s32 1, %v593
        %v595 = vrot.slane %v586, %v594
        %v600 = vunpack.c.l.b16 %v583
        %v601 = vunpack.c.h.b16 %v583
        %v602 = vunpack.c.l.b16 %v584
        %v603 = vunpack.c.h.b16 %v584
        %v604 = vpack.c.b16 %v602, %v600
        %v605 = vpack.c.b16 %v603, %v601
        %v607 = vsel %vm319, %v604, 0
        %v610 = vsel %vm319, %v605, 0
        %612 = vmatprep.subr.bf16.mxu0 0
        %613 = vmatpush1.bf16.msra.mxu0 0
        %614 = vmatprep.subr.bf16.mxu0 0
        %615 = vmatpush1.bf16.msra.mxu0 0
        %616 = vmatprep.subr.bf16.mxu0 0
        %617 = vmatpush1.bf16.msra.mxu0 0
        %618 = vmatprep.subr.bf16.mxu0 0
        %619 = vmatpush1.bf16.msra.mxu0 0
        %620 = vmatprep.subr.bf16.mxu0 0
        %621 = vmatpush1.bf16.msra.mxu0 0
        %622 = vmatprep.subr.bf16.mxu0 0
        %623 = vmatpush1.bf16.msra.mxu0 0
        %624 = vmatprep.subr.bf16.mxu0 0
        %625 = vmatpush1.bf16.msra.mxu0 0
        %626 = vmatprep.subr.bf16.mxu0 %v610
        %627 = vmatpush1.bf16.msra.mxu0 %v607
        %628 = vmatprep.subr.bf16.mxu0 0
        %629 = vmatpush2.bf16.msra.mxu0 0
        %630 = vmatprep.subr.bf16.mxu0 0
        %631 = vmatpush2.bf16.msra.mxu0 0
        %632 = vmatprep.subr.bf16.mxu0 0
        %633 = vmatpush2.bf16.msra.mxu0 0
        %634 = vmatprep.subr.bf16.mxu0 0
        %635 = vmatpush2.bf16.msra.mxu0 0
        %636 = vmatprep.subr.bf16.mxu0 0
        %637 = vmatpush2.bf16.msra.mxu0 0
        %638 = vmatprep.subr.bf16.mxu0 0
        %639 = vmatpush2.bf16.msra.mxu0 0
        %640 = vmatprep.subr.bf16.mxu0 0
        %641 = vmatpush2.bf16.msra.mxu0 0
        %642 = vmatprep.subr.bf16.mxu0 0
        %643 = vmatpush2.bf16.msra.mxu0 0
        %644 = vmatprep.mubr.bf16.mxu0 0
        %645 = vmatmul.mubr.bf16.gmra.mxu0 %v317
        %v646 = vpop.f32.mrf.mxu0
        %v647 = vadd.f32 %v591, %v646
        %v648 = vpop.f32.mrf.mxu0
        %v649 = vadd.f32 %v595, %v648
        %v650 = vpop.f32.mrf.mxu0
        %v651 = vpop.f32.mrf.mxu0
        %652 = vdwg.mxu0
        %653 = vmatprep.subr.mxu0 0.0
        %654 = vmatpush1.xpose.msra.mxu0 0.0
        %655 = vmatprep.subr.mxu0 0.0
        %656 = vmatpush1.xpose.msra.mxu0 0.0
        %657 = vmatprep.subr.mxu0 0.0
        %658 = vmatpush1.xpose.msra.mxu0 0.0
        %659 = vmatprep.subr.mxu0 0.0
        %660 = vmatpush1.xpose.msra.mxu0 0.0
        %661 = vmatprep.subr.mxu0 0.0
        %662 = vmatpush1.xpose.msra.mxu0 0.0
        %663 = vmatprep.subr.mxu0 0.0
        %664 = vmatpush1.xpose.msra.mxu0 0.0
        %665 = vmatprep.subr.mxu0 0.0
        %666 = vmatpush1.xpose.msra.mxu0 0.0
        %667 = vmatprep.subr.mxu0 0.0
        %668 = vmatpush1.xpose.msra.mxu0 0.0
        %669 = vmatprep.subr.mxu0 0.0
        %670 = vmatpush1.xpose.msra.mxu0 0.0
        %671 = vmatprep.subr.mxu0 0.0
        %672 = vmatpush1.xpose.msra.mxu0 0.0
        %673 = vmatprep.subr.mxu0 0.0
        %674 = vmatpush1.xpose.msra.mxu0 0.0
        %675 = vmatprep.subr.mxu0 0.0
        %676 = vmatpush1.xpose.msra.mxu0 0.0
        %677 = vmatprep.subr.mxu0 0.0
        %678 = vmatpush1.xpose.msra.mxu0 0.0
        %679 = vmatprep.subr.mxu0 %v292
        %680 = vmatpush1.xpose.msra.mxu0 %v291
        %681 = vmatprep.subr.mxu0 %v290
        %682 = vmatpush1.xpose.msra.mxu0 %v289
        %683 = vmatprep.subr.mxu0 %v288
        %684 = vmatpush1.xpose.msra.mxu0 %v287
        %685 = vmatprep.subr.mxu0 0.0
        %686 = vmatpush2.xpose.msra.mxu0 0.0
        %687 = vmatprep.subr.mxu0 0.0
        %688 = vmatpush2.xpose.msra.mxu0 0.0
        %689 = vmatprep.subr.mxu0 0.0
        %690 = vmatpush2.xpose.msra.mxu0 0.0
        %691 = vmatprep.subr.mxu0 0.0
        %692 = vmatpush2.xpose.msra.mxu0 0.0
        %693 = vmatprep.subr.mxu0 0.0
        %694 = vmatpush2.xpose.msra.mxu0 0.0
        %695 = vmatprep.subr.mxu0 0.0
        %696 = vmatpush2.xpose.msra.mxu0 0.0
        %697 = vmatprep.subr.mxu0 0.0
        %698 = vmatpush2.xpose.msra.mxu0 0.0
        %699 = vmatprep.subr.mxu0 0.0
        %700 = vmatpush2.xpose.msra.mxu0 0.0
        %701 = vmatprep.subr.mxu0 0.0
        %702 = vmatpush2.xpose.msra.mxu0 0.0
        %703 = vmatprep.subr.mxu0 0.0
        %704 = vmatpush2.xpose.msra.mxu0 0.0
        %705 = vmatprep.subr.mxu0 0.0
        %706 = vmatpush2.xpose.msra.mxu0 0.0
        %707 = vmatprep.subr.mxu0 0.0
        %708 = vmatpush2.xpose.msra.mxu0 0.0
        %709 = vmatprep.subr.mxu0 0.0
        %710 = vmatpush2.xpose.msra.mxu0 0.0
        %711 = vmatprep.subr.mxu0 0.0
        %712 = vmatpush2.xpose.msra.mxu0 0.0
        %713 = vmatprep.subr.mxu0 0.0
        %714 = vmatpush2.xpose.msra.mxu0 0.0
        %715 = vmatprep.subr.mxu0 0.0
        %716 = vmatpush2.xpose.msra.mxu0 0.0
        %717 = vmatprep.mubr.f32.mxu0 %v649
        %718 = vmatmul.mubr.f32.gmra.mxu0 %v647
        %v719 = vpop.f32.mrf.mxu0
        %v720 = vadd.f32 0.0, %v719
        %v721 = vpop.f32.mrf.mxu0
        %722 = vdwg.mxu0
        %s723 = scalar_lea.vmem %s281, 4
        %724 = vst.msk [vmem:[%s723] sm:$0x3] %vm437, %v720
        %p725 = scmp.lt.s32.totalorder %s21, 1
        %s726 = scalar_select %p725, %s21, 1
        %s727 = smul.addr %s726, 3
        %s728 = smul.addr %s727, 2
        %s729 = scalar_lea.vmem %s4, %s728
        // Predicated region
        $region45: #{fwd.2} parent=35 // pred_check
          %p730 = pneg %p138
        $region46: #{fwd.2} parent=35 // pred_check_branch
          %732 = sbr.rel (%p730) target = $region48
        $region47: #{fwd.2} parent=35 // pred_region
          _
        $region48: #{fwd.2} parent=35 // pred_fallthru
          _
      $region36: #{fwd.2} parent=5 // pred_fallthru
        _
      %p733 = scmp.le.s32.totalorder 2, %s16
      // Predicated region
      $region49: #{fwd.2} parent=5 // pred_check
        %p734 = pneg %p733
      $region50: #{fwd.2} parent=5 // pred_check_branch
        %736 = sbr.rel (%p734) target = $region52
      $region51: #{fwd.2} parent=5 // pred_region
        %s737 = ssub.s32 %s16, 2
        // Predicated region
        $region53: #{fwd.2} parent=51 // pred_check
          %p738 = pneg %p144
        $region54: #{fwd.2} parent=51 // pred_check_branch
          %740 = sbr.rel (%p738) target = $region56
        $region55: #{fwd.2} parent=51 // pred_region
          %p741 = scmp.lt.s32.totalorder %s22, 1
          %s742 = scalar_select %p741, %s22, 1
          %s743 = smul.addr %s742, 3
          %s744 = smul.addr %s743, 2
          %s745 = scalar_lea.vmem %s4, %s744
        $region56: #{fwd.2} parent=51 // pred_fallthru
          _
      $region52: #{fwd.2} parent=5 // pred_fallthru
        _
    $region6: #{fwd.2} parent=1 // loop_footer
      %s20 = sadd.s32 1, %s16
    $region7: #{fwd.2} parent=1 // loop_footer_branch
      %15 = sbr.rel target = $region3
    $region8: #{fwd.2} parent=1 // loop_exit
      _
    %746 = vsyncpa [#allocation3], 1
    %s747 = scalar_lea.sflag [#allocation3], 1
    %748 = vsyncpa %s747, 1
    %749 = vsyncpa [#allocation5], 1
    %s750 = scalar_lea.sflag [#allocation5], 1
    %751 = vsyncpa %s750, 1

// kernel: fwd.3
$region0: #{fwd.3}
  #allocation0 [shape = 'u32[]', space=smem, size = 0x4, offset = 0x4, fixed_abs, tag = 'smem constant byte address 0x4 - core index']
  #allocation1 [shape = 'u32[144,128]{1,0:T(1,128)}', space=vmem, size = 0x12000, scoped, tag = 'internal scratch']
  %s0 = inlined_call_operand.vmem [shape: bf16[2,217], index: 0, kind: input, shape index: {}]
  %s1 = inlined_call_operand.vmem [shape: bf16[3,217,512], index: 1, kind: input, shape index: {}]
  %s2 = inlined_call_operand.vmem [shape: f32[3,512], index: 2, kind: input, shape index: {}]
  %s3 = inlined_call_operand.vmem [shape: f32[12,2,24], index: 3, kind: input, shape index: {}]
  %s4 = inlined_call_operand.vmem [shape: bf16[24,512], index: 4, kind: input, shape index: {}]
  %s5 = inlined_call_operand.vmem [shape: bf16[17,512], index: 5, kind: input, shape index: {}]
  %s6 = inlined_call_operand.hbm [shape: f32[3,2,512], index: 6, kind: output, shape index: {0}]
  %s7 = inlined_call_operand.vmem [shape: f32[2,3,2,17], index: 7, kind: output, shape index: {1}]
  %8 = xla_tuple %s6, %s7
  %s9 = sld [smem:[#allocation0]]
  $region179: #{fwd.3} parent=0
    _
  %s11 = ssub.s32 1, %s9
  %s12 = scalar_select 0, %s11, %s9
  $region1: #{fwd.3} parent=0
    #allocation2 [shape = 'u8[688128]{0}', space=vmem, size = 0xa8000, scoped, tag = 'input window, operand 1']
    #allocation3 [shape = 'u8[24576]{0}', space=vmem, size = 0x6000, scoped, tag = 'input window, operand 4']
    #allocation4 [shape = 'u8[24576]{0}', space=vmem, size = 0x6000, scoped, tag = 'input window, operand 5']
    #allocation5 [shape = 'u8[12288]{0}', space=vmem, size = 0x3000, scoped, tag = 'output window, operand 0']
    #allocation6 [shape = 's32[2]{0}', space=sflag, size = 0x8, scoped, tag = 'scoped memory for fwd.3']
    %13 = vsyncpa [#allocation6], 0
    %s14 = scalar_lea.sflag [#allocation6], 1
    %15 = vsyncpa %s14, 0
    loop: start=0, step=1, limit=4
    $region2: #{fwd.3} parent=1 // loop_pre_header
      _
    $region3: #{fwd.3} parent=1 // loop_header
      %s17 = sphi 0, %s21
      %p18 = scmp.ge.s32.totalorder %s17, 4
      %s25 = sphi 0, %s25
      %s27 = sphi 0, %s25
      %s28 = sphi 0, %s27
      %s42 = sphi 0, %s28
      %s48 = sphi 0, %s50
      %s51 = sphi 0, %s48
      %s52 = sphi 0, %s51
      %s68 = sphi 0, %s52
      %s74 = sphi 0, %s76
      %s77 = sphi 0, %s74
      %s78 = sphi 0, %s77
      %s94 = sphi 0, %s78
      %s98 = sphi 0, %s98
      %s100 = sphi 0, %s98
      %s101 = sphi 0, %s100
      %s115 = sphi 0, %s101
      %s121 = sphi 0, %s123
      %s124 = sphi 0, %s121
      %s125 = sphi 0, %s124
      %s141 = sphi 0, %s125
      %s147 = sphi 0, %s149
      %s150 = sphi 0, %s147
      %s151 = sphi 0, %s150
      %s167 = sphi 0, %s151
      %s173 = sphi 0, %s175
      %s176 = sphi 0, %s173
      %s177 = sphi 0, %s176
      %s193 = sphi 0, %s177
      %s199 = sphi 0, %s201
      %s202 = sphi 0, %s199
      %s203 = sphi 0, %s202
      %s219 = sphi 0, %s203
    $region4: #{fwd.3} parent=1 // loop_header_branch
      %20 = sbr.rel (%p18) target = $region8
    $region5: #{fwd.3} parent=1 // loop_body
      %s22 = ssub.s32 %s17, 1
      %s23 = ssub.s32 %s17, 2
      %s24 = sadd.s32 %s17, 1
      %s26 = sadd.s32 %s25, 1
      %p29 = scmp.eq.s32.totalorder %s17, 1
      %p30 = scmp.ne.s32.totalorder %s25, %s27
      %p31 = scmp.eq.s32.totalorder %s17, 0
      %p32 = por %p30, %p31
      %p33 = scmp.ne.s32.totalorder %s25, %s27
      %p34 = scmp.eq.s32.totalorder %s22, 1
      %p35 = por %p33, %p34
      %p36 = scmp.ne.s32.totalorder %s27, %s28
      %p37 = scmp.eq.s32.totalorder %s22, 0
      %p38 = por %p36, %p37
      %p39 = scmp.ne.s32.totalorder %s27, %s28
      %p40 = scmp.eq.s32.totalorder %s23, 1
      %p41 = por %p39, %p40
      %p43 = scmp.ne.s32.totalorder %s28, %s42
      %p44 = scmp.eq.s32.totalorder %s23, 0
      %p45 = por %p43, %p44
      %s46 = ssub.s32 %s17, %s24
      %p47 = scmp.eq.s32.totalorder %s46, 0
      %s49 = sadd.s32 %s48, 1
      %s50 = scalar_select %p47, %s48, %s49
      %p53 = pneg %p47
      %p54 = scmp.eq.s32.totalorder %s17, 1
      %p55 = por %p53, %p54
      %p56 = scmp.ne.s32.totalorder %s48, %s51
      %p57 = scmp.eq.s32.totalorder %s17, 0
      %p58 = por %p56, %p57
      %p59 = scmp.ne.s32.totalorder %s48, %s51
      %p60 = scmp.eq.s32.totalorder %s22, 1
      %p61 = por %p59, %p60
      %p62 = scmp.ne.s32.totalorder %s51, %s52
      %p63 = scmp.eq.s32.totalorder %s22, 0
      %p64 = por %p62, %p63
      %p65 = scmp.ne.s32.totalorder %s51, %s52
      %p66 = scmp.eq.s32.totalorder %s23, 1
      %p67 = por %p65, %p66
      %p69 = scmp.ne.s32.totalorder %s52, %s68
      %p70 = scmp.eq.s32.totalorder %s23, 0
      %p71 = por %p69, %p70
      %s72 = ssub.s32 %s17, %s24
      %p73 = scmp.eq.s32.totalorder %s72, 0
      %s75 = sadd.s32 %s74, 1
      %s76 = scalar_select %p73, %s74, %s75
      %p79 = pneg %p73
      %p80 = scmp.eq.s32.totalorder %s17, 1
      %p81 = por %p79, %p80
      %p82 = scmp.ne.s32.totalorder %s74, %s77
      %p83 = scmp.eq.s32.totalorder %s17, 0
      %p84 = por %p82, %p83
      %p85 = scmp.ne.s32.totalorder %s74, %s77
      %p86 = scmp.eq.s32.totalorder %s22, 1
      %p87 = por %p85, %p86
      %p88 = scmp.ne.s32.totalorder %s77, %s78
      %p89 = scmp.eq.s32.totalorder %s22, 0
      %p90 = por %p88, %p89
      %p91 = scmp.ne.s32.totalorder %s77, %s78
      %p92 = scmp.eq.s32.totalorder %s23, 1
      %p93 = por %p91, %p92
      %p95 = scmp.ne.s32.totalorder %s78, %s94
      %p96 = scmp.eq.s32.totalorder %s23, 0
      %p97 = por %p95, %p96
      %s99 = sadd.s32 %s98, 1
      %p102 = scmp.eq.s32.totalorder %s17, 1
      %p103 = scmp.ne.s32.totalorder %s98, %s100
      %p104 = scmp.eq.s32.totalorder %s17, 0
      %p105 = por %p103, %p104
      %p106 = scmp.ne.s32.totalorder %s98, %s100
      %p107 = scmp.eq.s32.totalorder %s22, 1
      %p108 = por %p106, %p107
      %p109 = scmp.ne.s32.totalorder %s100, %s101
      %p110 = scmp.eq.s32.totalorder %s22, 0
      %p111 = por %p109, %p110
      %p112 = scmp.ne.s32.totalorder %s100, %s101
      %p113 = scmp.eq.s32.totalorder %s23, 1
      %p114 = por %p112, %p113
      %p116 = scmp.ne.s32.totalorder %s101, %s115
      %p117 = scmp.eq.s32.totalorder %s23, 0
      %p118 = por %p116, %p117
      %s119 = ssub.s32 %s17, %s24
      %p120 = scmp.eq.s32.totalorder %s119, 0
      %s122 = sadd.s32 %s121, 1
      %s123 = scalar_select %p120, %s121, %s122
      %p126 = pneg %p120
      %p127 = scmp.eq.s32.totalorder %s17, 1
      %p128 = por %p126, %p127
      %p129 = scmp.ne.s32.totalorder %s121, %s124
      %p130 = scmp.eq.s32.totalorder %s17, 0
      %p131 = por %p129, %p130
      %p132 = scmp.ne.s32.totalorder %s121, %s124
      %p133 = scmp.eq.s32.totalorder %s22, 1
      %p134 = por %p132, %p133
      %p135 = scmp.ne.s32.totalorder %s124, %s125
      %p136 = scmp.eq.s32.totalorder %s22, 0
      %p137 = por %p135, %p136
      %p138 = scmp.ne.s32.totalorder %s124, %s125
      %p139 = scmp.eq.s32.totalorder %s23, 1
      %p140 = por %p138, %p139
      %p142 = scmp.ne.s32.totalorder %s125, %s141
      %p143 = scmp.eq.s32.totalorder %s23, 0
      %p144 = por %p142, %p143
      %s145 = ssub.s32 %s17, %s24
      %p146 = scmp.eq.s32.totalorder %s145, 0
      %s148 = sadd.s32 %s147, 1
      %s149 = scalar_select %p146, %s147, %s148
      %p152 = pneg %p146
      %p153 = scmp.eq.s32.totalorder %s17, 1
      %p154 = por %p152, %p153
      %p155 = scmp.ne.s32.totalorder %s147, %s150
      %p156 = scmp.eq.s32.totalorder %s17, 0
      %p157 = por %p155, %p156
      %p158 = scmp.ne.s32.totalorder %s147, %s150
      %p159 = scmp.eq.s32.totalorder %s22, 1
      %p160 = por %p158, %p159
      %p161 = scmp.ne.s32.totalorder %s150, %s151
      %p162 = scmp.eq.s32.totalorder %s22, 0
      %p163 = por %p161, %p162
      %p164 = scmp.ne.s32.totalorder %s150, %s151
      %p165 = scmp.eq.s32.totalorder %s23, 1
      %p166 = por %p164, %p165
      %p168 = scmp.ne.s32.totalorder %s151, %s167
      %p169 = scmp.eq.s32.totalorder %s23, 0
      %p170 = por %p168, %p169
      %s171 = ssub.s32 %s17, %s24
      %p172 = scmp.eq.s32.totalorder %s171, 0
      %s174 = sadd.s32 %s173, 1
      %s175 = scalar_select %p172, %s173, %s174
      %p178 = pneg %p172
      %p179 = scmp.eq.s32.totalorder %s17, 1
      %p180 = por %p178, %p179
      %p181 = scmp.ne.s32.totalorder %s173, %s176
      %p182 = scmp.eq.s32.totalorder %s17, 0
      %p183 = por %p181, %p182
      %p184 = scmp.ne.s32.totalorder %s173, %s176
      %p185 = scmp.eq.s32.totalorder %s22, 1
      %p186 = por %p184, %p185
      %p187 = scmp.ne.s32.totalorder %s176, %s177
      %p188 = scmp.eq.s32.totalorder %s22, 0
      %p189 = por %p187, %p188
      %p190 = scmp.ne.s32.totalorder %s176, %s177
      %p191 = scmp.eq.s32.totalorder %s23, 1
      %p192 = por %p190, %p191
      %p194 = scmp.ne.s32.totalorder %s177, %s193
      %p195 = scmp.eq.s32.totalorder %s23, 0
      %p196 = por %p194, %p195
      %s197 = ssub.s32 %s17, %s24
      %p198 = scmp.eq.s32.totalorder %s197, 0
      %s200 = sadd.s32 %s199, 1
      %s201 = scalar_select %p198, %s199, %s200
      %p204 = pneg %p198
      %p205 = scmp.eq.s32.totalorder %s17, 1
      %p206 = por %p204, %p205
      %p207 = scmp.ne.s32.totalorder %s199, %s202
      %p208 = scmp.eq.s32.totalorder %s17, 0
      %p209 = por %p207, %p208
      %p210 = scmp.ne.s32.totalorder %s199, %s202
      %p211 = scmp.eq.s32.totalorder %s22, 1
      %p212 = por %p210, %p211
      %p213 = scmp.ne.s32.totalorder %s202, %s203
      %p214 = scmp.eq.s32.totalorder %s22, 0
      %p215 = por %p213, %p214
      %p216 = scmp.ne.s32.totalorder %s202, %s203
      %p217 = scmp.eq.s32.totalorder %s23, 1
      %p218 = por %p216, %p217
      %p220 = scmp.ne.s32.totalorder %s203, %s219
      %p221 = scmp.eq.s32.totalorder %s23, 0
      %p222 = por %p220, %p221
      %p223 = scmp.le.s32.totalorder 1, %s17
      %p224 = scmp.lt.s32.totalorder %s17, 3
      %p225 = pnand %p223, %p224
      %p226 = pneg %p225
      // Predicated region
      $region9: #{fwd.3} parent=5 // pred_check
        _
      $region10: #{fwd.3} parent=5 // pred_check_branch
        %228 = sbr.rel (%p225) target = $region12
      $region11: #{fwd.3} parent=5 // pred_region
        %s229 = ssub.s32 %s17, 1
        // Predicated region
        $region13: #{fwd.3} parent=11 // pred_check
          %p230 = pneg %p38
        $region14: #{fwd.3} parent=11 // pred_check_branch
          %232 = sbr.rel (%p230) target = $region16
        $region15: #{fwd.3} parent=11 // pred_region
          _
        $region16: #{fwd.3} parent=11 // pred_fallthru
          _
        // Predicated region
        $region17: #{fwd.3} parent=11 // pred_check
          %p233 = pneg %p111
        $region18: #{fwd.3} parent=11 // pred_check_branch
          %235 = sbr.rel (%p233) target = $region20
        $region19: #{fwd.3} parent=11 // pred_region
          _
        $region20: #{fwd.3} parent=11 // pred_fallthru
          _
      $region12: #{fwd.3} parent=5 // pred_fallthru
        _
      %p236 = scmp.lt.s32.totalorder %s17, 2
      // Predicated region
      $region21: #{fwd.3} parent=5 // pred_check
        %p237 = pneg %p236
      $region22: #{fwd.3} parent=5 // pred_check_branch
        %239 = sbr.rel (%p237) target = $region24
      $region23: #{fwd.3} parent=5 // pred_region
        // Predicated region
        $region25: #{fwd.3} parent=23 // pred_check
          %p240 = pneg %p58
        $region26: #{fwd.3} parent=23 // pred_check_branch
          %242 = sbr.rel (%p240) target = $region28
        $region27: #{fwd.3} parent=23 // pred_region
          %s243 = sand.u32 %s48, 1
          %s244 = sand.u32 %s48, 1
          %s245 = smul.addr %s244, 672
          %s246 = scalar_lea.vmem [#allocation2], %s245
          %s247 = smul.u32 2, %s17
          %s248 = smul.addr %s247, 4
          %s249 = scalar_lea.vmem %s1, %s248
          // Predicated region
          $region29: #{fwd.3} parent=27 // pred_check
            _
          $region30: #{fwd.3} parent=27 // pred_check_branch
            %251 = sbr.rel (0) target = $region32
          $region31: #{fwd.3} parent=27 // pred_region
            // Predicated region
            $region33: #{fwd.3} parent=31 // pred_check
              _
            $region34: #{fwd.3} parent=31 // pred_check_branch
              %253 = sbr.rel (0) target = $region36
            $region35: #{fwd.3} parent=31 // pred_region
              // Predicated region
              $region48: #{fwd.3} parent=35 // pred_check
                _
              $region49: #{fwd.3} parent=35 // pred_check_branch
                %435 = sbr.rel (0) target = $region51
              $region50: #{fwd.3} parent=35 // pred_region
                loop: start=0, step=1, limit=1
                $region52: #{fwd.3} parent=50 // loop_pre_header
                  _
                $region53: #{fwd.3} parent=50 // loop_header
                  %s437 = sphi 0, %s441
                  %p438 = scmp.ge.s32.totalorder %s437, 1
                  %s442 = sphi %s249, %s249
                  %s443 = sphi %s246, %s246
                $region54: #{fwd.3} parent=50 // loop_header_branch
                  %440 = sbr.rel (%p438) target = $region58
                $region55: #{fwd.3} parent=50 // loop_body
                  %v444 = vld [vmem:[%s442] sm:$0xff]
                  %445 = vst [vmem:[%s443] sm:$0xff] %v444
                  %v446 = vld [vmem:[%s442 + $0x10] sm:$0xff]
                  %447 = vst [vmem:[%s443 + $0x8] sm:$0xff] %v446
                  %v448 = vld [vmem:[%s442 + $0x20] sm:$0xff]
                  %449 = vst [vmem:[%s443 + $0x10] sm:$0xff] %v448
                  %v450 = vld [vmem:[%s442 + $0x30] sm:$0xff]
                  %451 = vst [vmem:[%s443 + $0x18] sm:$0xff] %v450
                  %v452 = vld [vmem:[%s442 + $0x40] sm:$0xff]
                  %453 = vst [vmem:[%s443 + $0x20] sm:$0xff] %v452
                  %v454 = vld [vmem:[%s442 + $0x50] sm:$0xff]
                  %455 = vst [vmem:[%s443 + $0x28] sm:$0xff] %v454
                  %v456 = vld [vmem:[%s442 + $0x60] sm:$0xff]
                  %457 = vst [vmem:[%s443 + $0x30] sm:$0xff] %v456
                  %v458 = vld [vmem:[%s442 + $0x70] sm:$0xff]
                  %459 = vst [vmem:[%s443 + $0x38] sm:$0xff] %v458
                  %v460 = vld [vmem:[%s442 + $0x80] sm:$0xff]
                  %461 = vst [vmem:[%s443 + $0x40] sm:$0xff] %v460
                  %v462 = vld [vmem:[%s442 + $0x90] sm:$0xff]
                  %463 = vst [vmem:[%s443 + $0x48] sm:$0xff] %v462
                  %v464 = vld [vmem:[%s442 + $0xa0] sm:$0xff]
                  %465 = vst [vmem:[%s443 + $0x50] sm:$0xff] %v464
                  %v466 = vld [vmem:[%s442 + $0xb0] sm:$0xff]
                  %467 = vst [vmem:[%s443 + $0x58] sm:$0xff] %v466
                  %v468 = vld [vmem:[%s442 + $0xc0] sm:$0xff]
                  %469 = vst [vmem:[%s443 + $0x60] sm:$0xff] %v468
                  %v470 = vld [vmem:[%s442 + $0xd0] sm:$0xff]
                  %471 = vst [vmem:[%s443 + $0x68] sm:$0xff] %v470
                  %v472 = vld [vmem:[%s442 + $0xe0] sm:$0xff]
                  %473 = vst [vmem:[%s443 + $0x70] sm:$0xff] %v472
                  %v474 = vld [vmem:[%s442 + $0xf0] sm:$0xff]
                  %475 = vst [vmem:[%s443 + $0x78] sm:$0xff] %v474
                  %v476 = vld [vmem:[%s442 + $0x100] sm:$0xff]
                  %477 = vst [vmem:[%s443 + $0x80] sm:$0xff] %v476
                  %v478 = vld [vmem:[%s442 + $0x110] sm:$0xff]
                  %479 = vst [vmem:[%s443 + $0x88] sm:$0xff] %v478
                  %v480 = vld [vmem:[%s442 + $0x120] sm:$0xff]
                  %481 = vst [vmem:[%s443 + $0x90] sm:$0xff] %v480
                  %v482 = vld [vmem:[%s442 + $0x130] sm:$0xff]
                  %483 = vst [vmem:[%s443 + $0x98] sm:$0xff] %v482
                  %v484 = vld [vmem:[%s442 + $0x140] sm:$0xff]
                  %485 = vst [vmem:[%s443 + $0xa0] sm:$0xff] %v484
                  %v486 = vld [vmem:[%s442 + $0x150] sm:$0xff]
                  %487 = vst [vmem:[%s443 + $0xa8] sm:$0xff] %v486
                  %v488 = vld [vmem:[%s442 + $0x160] sm:$0xff]
                  %489 = vst [vmem:[%s443 + $0xb0] sm:$0xff] %v488
                  %v490 = vld [vmem:[%s442 + $0x170] sm:$0xff]
                  %491 = vst [vmem:[%s443 + $0xb8] sm:$0xff] %v490
                  %v492 = vld [vmem:[%s442 + $0x180] sm:$0xff]
                  %493 = vst [vmem:[%s443 + $0xc0] sm:$0xff] %v492
                  %v494 = vld [vmem:[%s442 + $0x190] sm:$0xff]
                  %495 = vst [vmem:[%s443 + $0xc8] sm:$0xff] %v494
                  %v496 = vld [vmem:[%s442 + $0x1a0] sm:$0xff]
                  %497 = vst [vmem:[%s443 + $0xd0] sm:$0xff] %v496
                  %v498 = vld [vmem:[%s442 + $0x1b0] sm:$0xff]
                  %499 = vst [vmem:[%s443 + $0xd8] sm:$0xff] %v498
                  %v500 = vld [vmem:[%s442 + $0x1c0] sm:$0xff]
                  %501 = vst [vmem:[%s443 + $0xe0] sm:$0xff] %v500
                  %v502 = vld [vmem:[%s442 + $0x1d0] sm:$0xff]
                  %503 = vst [vmem:[%s443 + $0xe8] sm:$0xff] %v502
                  %v504 = vld [vmem:[%s442 + $0x1e0] sm:$0xff]
                  %505 = vst [vmem:[%s443 + $0xf0] sm:$0xff] %v504
                  %v506 = vld [vmem:[%s442 + $0x1f0] sm:$0xff]
                  %507 = vst [vmem:[%s443 + $0xf8] sm:$0xff] %v506
                  %v508 = vld [vmem:[%s442 + $0x200] sm:$0xff]
                  %509 = vst [vmem:[%s443 + $0x100] sm:$0xff] %v508
                  %v510 = vld [vmem:[%s442 + $0x210] sm:$0xff]
                  %511 = vst [vmem:[%s443 + $0x108] sm:$0xff] %v510
                  %v512 = vld [vmem:[%s442 + $0x220] sm:$0xff]
                  %513 = vst [vmem:[%s443 + $0x110] sm:$0xff] %v512
                  %v514 = vld [vmem:[%s442 + $0x230] sm:$0xff]
                  %515 = vst [vmem:[%s443 + $0x118] sm:$0xff] %v514
                  %v516 = vld [vmem:[%s442 + $0x240] sm:$0xff]
                  %517 = vst [vmem:[%s443 + $0x120] sm:$0xff] %v516
                  %v518 = vld [vmem:[%s442 + $0x250] sm:$0xff]
                  %519 = vst [vmem:[%s443 + $0x128] sm:$0xff] %v518
                  %v520 = vld [vmem:[%s442 + $0x260] sm:$0xff]
                  %521 = vst [vmem:[%s443 + $0x130] sm:$0xff] %v520
                  %v522 = vld [vmem:[%s442 + $0x270] sm:$0xff]
                  %523 = vst [vmem:[%s443 + $0x138] sm:$0xff] %v522
                  %v524 = vld [vmem:[%s442 + $0x280] sm:$0xff]
                  %525 = vst [vmem:[%s443 + $0x140] sm:$0xff] %v524
                  %v526 = vld [vmem:[%s442 + $0x290] sm:$0xff]
                  %527 = vst [vmem:[%s443 + $0x148] sm:$0xff] %v526
                  %v528 = vld [vmem:[%s442 + $0x2a0] sm:$0xff]
                  %529 = vst [vmem:[%s443 + $0x150] sm:$0xff] %v528
                  %v530 = vld [vmem:[%s442 + $0x2b0] sm:$0xff]
                  %531 = vst [vmem:[%s443 + $0x158] sm:$0xff] %v530
                  %v532 = vld [vmem:[%s442 + $0x2c0] sm:$0xff]
                  %533 = vst [vmem:[%s443 + $0x160] sm:$0xff] %v532
                  %v534 = vld [vmem:[%s442 + $0x2d0] sm:$0xff]
                  %535 = vst [vmem:[%s443 + $0x168] sm:$0xff] %v534
                  %v536 = vld [vmem:[%s442 + $0x2e0] sm:$0xff]
                  %537 = vst [vmem:[%s443 + $0x170] sm:$0xff] %v536
                  %v538 = vld [vmem:[%s442 + $0x2f0] sm:$0xff]
                  %539 = vst [vmem:[%s443 + $0x178] sm:$0xff] %v538
                  %v540 = vld [vmem:[%s442 + $0x300] sm:$0xff]
                  %541 = vst [vmem:[%s443 + $0x180] sm:$0xff] %v540
                  %v542 = vld [vmem:[%s442 + $0x310] sm:$0xff]
                  %543 = vst [vmem:[%s443 + $0x188] sm:$0xff] %v542
                  %v544 = vld [vmem:[%s442 + $0x320] sm:$0xff]
                  %545 = vst [vmem:[%s443 + $0x190] sm:$0xff] %v544
                  %v546 = vld [vmem:[%s442 + $0x330] sm:$0xff]
                  %547 = vst [vmem:[%s443 + $0x198] sm:$0xff] %v546
                  %v548 = vld [vmem:[%s442 + $0x340] sm:$0xff]
                  %549 = vst [vmem:[%s443 + $0x1a0] sm:$0xff] %v548
                  %v550 = vld [vmem:[%s442 + $0x350] sm:$0xff]
                  %551 = vst [vmem:[%s443 + $0x1a8] sm:$0xff] %v550
                  %v552 = vld [vmem:[%s442 + $0x360] sm:$0xff]
                  %553 = vst [vmem:[%s443 + $0x1b0] sm:$0xff] %v552
                  %v554 = vld [vmem:[%s442 + $0x370] sm:$0xff]
                  %555 = vst [vmem:[%s443 + $0x1b8] sm:$0xff] %v554
                  %v556 = vld [vmem:[%s442 + $0x380] sm:$0xff]
                  %557 = vst [vmem:[%s443 + $0x1c0] sm:$0xff] %v556
                  %v558 = vld [vmem:[%s442 + $0x390] sm:$0xff]
                  %559 = vst [vmem:[%s443 + $0x1c8] sm:$0xff] %v558
                  %v560 = vld [vmem:[%s442 + $0x3a0] sm:$0xff]
                  %561 = vst [vmem:[%s443 + $0x1d0] sm:$0xff] %v560
                  %v562 = vld [vmem:[%s442 + $0x3b0] sm:$0xff]
                  %563 = vst [vmem:[%s443 + $0x1d8] sm:$0xff] %v562
                  %v564 = vld [vmem:[%s442 + $0x3c0] sm:$0xff]
                  %565 = vst [vmem:[%s443 + $0x1e0] sm:$0xff] %v564
                  %v566 = vld [vmem:[%s442 + $0x3d0] sm:$0xff]
                  %567 = vst [vmem:[%s443 + $0x1e8] sm:$0xff] %v566
                  %v568 = vld [vmem:[%s442 + $0x3e0] sm:$0xff]
                  %569 = vst [vmem:[%s443 + $0x1f0] sm:$0xff] %v568
                  %v570 = vld [vmem:[%s442 + $0x3f0] sm:$0xff]
                  %571 = vst [vmem:[%s443 + $0x1f8] sm:$0xff] %v570
                  %v572 = vld [vmem:[%s442 + $0x400] sm:$0xff]
                  %573 = vst [vmem:[%s443 + $0x200] sm:$0xff] %v572
                  %v574 = vld [vmem:[%s442 + $0x410] sm:$0xff]
                  %575 = vst [vmem:[%s443 + $0x208] sm:$0xff] %v574
                  %v576 = vld [vmem:[%s442 + $0x420] sm:$0xff]
                  %577 = vst [vmem:[%s443 + $0x210] sm:$0xff] %v576
                  %v578 = vld [vmem:[%s442 + $0x430] sm:$0xff]
                  %579 = vst [vmem:[%s443 + $0x218] sm:$0xff] %v578
                  %v580 = vld [vmem:[%s442 + $0x440] sm:$0xff]
                  %581 = vst [vmem:[%s443 + $0x220] sm:$0xff] %v580
                  %v582 = vld [vmem:[%s442 + $0x450] sm:$0xff]
                  %583 = vst [vmem:[%s443 + $0x228] sm:$0xff] %v582
                  %v584 = vld [vmem:[%s442 + $0x460] sm:$0xff]
                  %585 = vst [vmem:[%s443 + $0x230] sm:$0xff] %v584
                  %v586 = vld [vmem:[%s442 + $0x470] sm:$0xff]
                  %587 = vst [vmem:[%s443 + $0x238] sm:$0xff] %v586
                  %v588 = vld [vmem:[%s442 + $0x480] sm:$0xff]
                  %589 = vst [vmem:[%s443 + $0x240] sm:$0xff] %v588
                  %v590 = vld [vmem:[%s442 + $0x490] sm:$0xff]
                  %591 = vst [vmem:[%s443 + $0x248] sm:$0xff] %v590
                  %v592 = vld [vmem:[%s442 + $0x4a0] sm:$0xff]
                  %593 = vst [vmem:[%s443 + $0x250] sm:$0xff] %v592
                  %v594 = vld [vmem:[%s442 + $0x4b0] sm:$0xff]
                  %595 = vst [vmem:[%s443 + $0x258] sm:$0xff] %v594
                  %v596 = vld [vmem:[%s442 + $0x4c0] sm:$0xff]
                  %597 = vst [vmem:[%s443 + $0x260] sm:$0xff] %v596
                  %v598 = vld [vmem:[%s442 + $0x4d0] sm:$0xff]
                  %599 = vst [vmem:[%s443 + $0x268] sm:$0xff] %v598
                  %v600 = vld [vmem:[%s442 + $0x4e0] sm:$0xff]
                  %601 = vst [vmem:[%s443 + $0x270] sm:$0xff] %v600
                  %v602 = vld [vmem:[%s442 + $0x4f0] sm:$0xff]
                  %603 = vst [vmem:[%s443 + $0x278] sm:$0xff] %v602
                  %v604 = vld [vmem:[%s442 + $0x500] sm:$0xff]
                  %605 = vst [vmem:[%s443 + $0x280] sm:$0xff] %v604
                  %v606 = vld [vmem:[%s442 + $0x510] sm:$0xff]
                  %607 = vst [vmem:[%s443 + $0x288] sm:$0xff] %v606
                  %v608 = vld [vmem:[%s442 + $0x520] sm:$0xff]
                  %609 = vst [vmem:[%s443 + $0x290] sm:$0xff] %v608
                  %v610 = vld [vmem:[%s442 + $0x530] sm:$0xff]
                  %611 = vst [vmem:[%s443 + $0x298] sm:$0xff] %v610
                $region56: #{fwd.3} parent=50 // loop_footer
                  %s441 = sadd.s32 1, %s437
                $region57: #{fwd.3} parent=50 // loop_footer_branch
                  %436 = sbr.rel target = $region53
                $region58: #{fwd.3} parent=50 // loop_exit
                  _
              $region51: #{fwd.3} parent=35 // pred_fallthru
                _
              // Predicated region
              $region59: #{fwd.3} parent=35 // pred_check
                _
              $region60: #{fwd.3} parent=35 // pred_check_branch
                %613 = sbr.rel target = $region62
              $region61: #{fwd.3} parent=35 // pred_region
                _
              $region62: #{fwd.3} parent=35 // pred_fallthru
                _
            $region36: #{fwd.3} parent=31 // pred_fallthru
              _
            // Predicated region
            $region37: #{fwd.3} parent=31 // pred_check
              _
            $region38: #{fwd.3} parent=31 // pred_check_branch
              %255 = sbr.rel target = $region40
            $region39: #{fwd.3} parent=31 // pred_region
              %s257 = ssub.s32 256, 1
              loop: start=0, step=1, limit=1
              $region41: #{fwd.3} parent=39 // loop_pre_header
                _
              $region42: #{fwd.3} parent=39 // loop_header
                %s259 = sphi 0, %s263
                %p260 = scmp.ge.s32.totalorder %s259, 1
                %s264 = sphi %s249, %s249
                %s265 = sphi %s246, %s246
              $region43: #{fwd.3} parent=39 // loop_header_branch
                %262 = sbr.rel (%p260) target = $region47
              $region44: #{fwd.3} parent=39 // loop_body
                %v266 = vld [vmem:[%s264] sm:%s257]
                %267 = vst [vmem:[%s265] sm:%s257] %v266
                %v268 = vld [vmem:[%s264 + $0x10] sm:%s257]
                %269 = vst [vmem:[%s265 + $0x8] sm:%s257] %v268
                %v270 = vld [vmem:[%s264 + $0x20] sm:%s257]
                %271 = vst [vmem:[%s265 + $0x10] sm:%s257] %v270
                %v272 = vld [vmem:[%s264 + $0x30] sm:%s257]
                %273 = vst [vmem:[%s265 + $0x18] sm:%s257] %v272
                %v274 = vld [vmem:[%s264 + $0x40] sm:%s257]
                %275 = vst [vmem:[%s265 + $0x20] sm:%s257] %v274
                %v276 = vld [vmem:[%s264 + $0x50] sm:%s257]
                %277 = vst [vmem:[%s265 + $0x28] sm:%s257] %v276
                %v278 = vld [vmem:[%s264 + $0x60] sm:%s257]
                %279 = vst [vmem:[%s265 + $0x30] sm:%s257] %v278
                %v280 = vld [vmem:[%s264 + $0x70] sm:%s257]
                %281 = vst [vmem:[%s265 + $0x38] sm:%s257] %v280
                %v282 = vld [vmem:[%s264 + $0x80] sm:%s257]
                %283 = vst [vmem:[%s265 + $0x40] sm:%s257] %v282
                %v284 = vld [vmem:[%s264 + $0x90] sm:%s257]
                %285 = vst [vmem:[%s265 + $0x48] sm:%s257] %v284
                %v286 = vld [vmem:[%s264 + $0xa0] sm:%s257]
                %287 = vst [vmem:[%s265 + $0x50] sm:%s257] %v286
                %v288 = vld [vmem:[%s264 + $0xb0] sm:%s257]
                %289 = vst [vmem:[%s265 + $0x58] sm:%s257] %v288
                %v290 = vld [vmem:[%s264 + $0xc0] sm:%s257]
                %291 = vst [vmem:[%s265 + $0x60] sm:%s257] %v290
                %v292 = vld [vmem:[%s264 + $0xd0] sm:%s257]
                %293 = vst [vmem:[%s265 + $0x68] sm:%s257] %v292
                %v294 = vld [vmem:[%s264 + $0xe0] sm:%s257]
                %295 = vst [vmem:[%s265 + $0x70] sm:%s257] %v294
                %v296 = vld [vmem:[%s264 + $0xf0] sm:%s257]
                %297 = vst [vmem:[%s265 + $0x78] sm:%s257] %v296
                %v298 = vld [vmem:[%s264 + $0x100] sm:%s257]
                %299 = vst [vmem:[%s265 + $0x80] sm:%s257] %v298
                %v300 = vld [vmem:[%s264 + $0x110] sm:%s257]
                %301 = vst [vmem:[%s265 + $0x88] sm:%s257] %v300
                %v302 = vld [vmem:[%s264 + $0x120] sm:%s257]
                %303 = vst [vmem:[%s265 + $0x90] sm:%s257] %v302
                %v304 = vld [vmem:[%s264 + $0x130] sm:%s257]
                %305 = vst [vmem:[%s265 + $0x98] sm:%s257] %v304
                %v306 = vld [vmem:[%s264 + $0x140] sm:%s257]
                %307 = vst [vmem:[%s265 + $0xa0] sm:%s257] %v306
                %v308 = vld [vmem:[%s264 + $0x150] sm:%s257]
                %309 = vst [vmem:[%s265 + $0xa8] sm:%s257] %v308
                %v310 = vld [vmem:[%s264 + $0x160] sm:%s257]
                %311 = vst [vmem:[%s265 + $0xb0] sm:%s257] %v310
                %v312 = vld [vmem:[%s264 + $0x170] sm:%s257]
                %313 = vst [vmem:[%s265 + $0xb8] sm:%s257] %v312
                %v314 = vld [vmem:[%s264 + $0x180] sm:%s257]
                %315 = vst [vmem:[%s265 + $0xc0] sm:%s257] %v314
                %v316 = vld [vmem:[%s264 + $0x190] sm:%s257]
                %317 = vst [vmem:[%s265 + $0xc8] sm:%s257] %v316
                %v318 = vld [vmem:[%s264 + $0x1a0] sm:%s257]
                %319 = vst [vmem:[%s265 + $0xd0] sm:%s257] %v318
                %v320 = vld [vmem:[%s264 + $0x1b0] sm:%s257]
                %321 = vst [vmem:[%s265 + $0xd8] sm:%s257] %v320
                %v322 = vld [vmem:[%s264 + $0x1c0] sm:%s257]
                %323 = vst [vmem:[%s265 + $0xe0] sm:%s257] %v322
                %v324 = vld [vmem:[%s264 + $0x1d0] sm:%s257]
                %325 = vst [vmem:[%s265 + $0xe8] sm:%s257] %v324
                %v326 = vld [vmem:[%s264 + $0x1e0] sm:%s257]
                %327 = vst [vmem:[%s265 + $0xf0] sm:%s257] %v326
                %v328 = vld [vmem:[%s264 + $0x1f0] sm:%s257]
                %329 = vst [vmem:[%s265 + $0xf8] sm:%s257] %v328
                %v330 = vld [vmem:[%s264 + $0x200] sm:%s257]
                %331 = vst [vmem:[%s265 + $0x100] sm:%s257] %v330
                %v332 = vld [vmem:[%s264 + $0x210] sm:%s257]
                %333 = vst [vmem:[%s265 + $0x108] sm:%s257] %v332
                %v334 = vld [vmem:[%s264 + $0x220] sm:%s257]
                %335 = vst [vmem:[%s265 + $0x110] sm:%s257] %v334
                %v336 = vld [vmem:[%s264 + $0x230] sm:%s257]
                %337 = vst [vmem:[%s265 + $0x118] sm:%s257] %v336
                %v338 = vld [vmem:[%s264 + $0x240] sm:%s257]
                %339 = vst [vmem:[%s265 + $0x120] sm:%s257] %v338
                %v340 = vld [vmem:[%s264 + $0x250] sm:%s257]
                %341 = vst [vmem:[%s265 + $0x128] sm:%s257] %v340
                %v342 = vld [vmem:[%s264 + $0x260] sm:%s257]
                %343 = vst [vmem:[%s265 + $0x130] sm:%s257] %v342
                %v344 = vld [vmem:[%s264 + $0x270] sm:%s257]
                %345 = vst [vmem:[%s265 + $0x138] sm:%s257] %v344
                %v346 = vld [vmem:[%s264 + $0x280] sm:%s257]
                %347 = vst [vmem:[%s265 + $0x140] sm:%s257] %v346
                %v348 = vld [vmem:[%s264 + $0x290] sm:%s257]
                %349 = vst [vmem:[%s265 + $0x148] sm:%s257] %v348
                %v350 = vld [vmem:[%s264 + $0x2a0] sm:%s257]
                %351 = vst [vmem:[%s265 + $0x150] sm:%s257] %v350
                %v352 = vld [vmem:[%s264 + $0x2b0] sm:%s257]
                %353 = vst [vmem:[%s265 + $0x158] sm:%s257] %v352
                %v354 = vld [vmem:[%s264 + $0x2c0] sm:%s257]
                %355 = vst [vmem:[%s265 + $0x160] sm:%s257] %v354
                %v356 = vld [vmem:[%s264 + $0x2d0] sm:%s257]
                %357 = vst [vmem:[%s265 + $0x168] sm:%s257] %v356
                %v358 = vld [vmem:[%s264 + $0x2e0] sm:%s257]
                %359 = vst [vmem:[%s265 + $0x170] sm:%s257] %v358
                %v360 = vld [vmem:[%s264 + $0x2f0] sm:%s257]
                %361 = vst [vmem:[%s265 + $0x178] sm:%s257] %v360
                %v362 = vld [vmem:[%s264 + $0x300] sm:%s257]
                %363 = vst [vmem:[%s265 + $0x180] sm:%s257] %v362
                %v364 = vld [vmem:[%s264 + $0x310] sm:%s257]
                %365 = vst [vmem:[%s265 + $0x188] sm:%s257] %v364
                %v366 = vld [vmem:[%s264 + $0x320] sm:%s257]
                %367 = vst [vmem:[%s265 + $0x190] sm:%s257] %v366
                %v368 = vld [vmem:[%s264 + $0x330] sm:%s257]
                %369 = vst [vmem:[%s265 + $0x198] sm:%s257] %v368
                %v370 = vld [vmem:[%s264 + $0x340] sm:%s257]
                %371 = vst [vmem:[%s265 + $0x1a0] sm:%s257] %v370
                %v372 = vld [vmem:[%s264 + $0x350] sm:%s257]
                %373 = vst [vmem:[%s265 + $0x1a8] sm:%s257] %v372
                %v374 = vld [vmem:[%s264 + $0x360] sm:%s257]
                %375 = vst [vmem:[%s265 + $0x1b0] sm:%s257] %v374
                %v376 = vld [vmem:[%s264 + $0x370] sm:%s257]
                %377 = vst [vmem:[%s265 + $0x1b8] sm:%s257] %v376
                %v378 = vld [vmem:[%s264 + $0x380] sm:%s257]
                %379 = vst [vmem:[%s265 + $0x1c0] sm:%s257] %v378
                %v380 = vld [vmem:[%s264 + $0x390] sm:%s257]
                %381 = vst [vmem:[%s265 + $0x1c8] sm:%s257] %v380
                %v382 = vld [vmem:[%s264 + $0x3a0] sm:%s257]
                %383 = vst [vmem:[%s265 + $0x1d0] sm:%s257] %v382
                %v384 = vld [vmem:[%s264 + $0x3b0] sm:%s257]
                %385 = vst [vmem:[%s265 + $0x1d8] sm:%s257] %v384
                %v386 = vld [vmem:[%s264 + $0x3c0] sm:%s257]
                %387 = vst [vmem:[%s265 + $0x1e0] sm:%s257] %v386
                %v388 = vld [vmem:[%s264 + $0x3d0] sm:%s257]
                %389 = vst [vmem:[%s265 + $0x1e8] sm:%s257] %v388
                %v390 = vld [vmem:[%s264 + $0x3e0] sm:%s257]
                %391 = vst [vmem:[%s265 + $0x1f0] sm:%s257] %v390
                %v392 = vld [vmem:[%s264 + $0x3f0] sm:%s257]
                %393 = vst [vmem:[%s265 + $0x1f8] sm:%s257] %v392
                %v394 = vld [vmem:[%s264 + $0x400] sm:%s257]
                %395 = vst [vmem:[%s265 + $0x200] sm:%s257] %v394
                %v396 = vld [vmem:[%s264 + $0x410] sm:%s257]
                %397 = vst [vmem:[%s265 + $0x208] sm:%s257] %v396
                %v398 = vld [vmem:[%s264 + $0x420] sm:%s257]
                %399 = vst [vmem:[%s265 + $0x210] sm:%s257] %v398
                %v400 = vld [vmem:[%s264 + $0x430] sm:%s257]
                %401 = vst [vmem:[%s265 + $0x218] sm:%s257] %v400
                %v402 = vld [vmem:[%s264 + $0x440] sm:%s257]
                %403 = vst [vmem:[%s265 + $0x220] sm:%s257] %v402
                %v404 = vld [vmem:[%s264 + $0x450] sm:%s257]
                %405 = vst [vmem:[%s265 + $0x228] sm:%s257] %v404
                %v406 = vld [vmem:[%s264 + $0x460] sm:%s257]
                %407 = vst [vmem:[%s265 + $0x230] sm:%s257] %v406
                %v408 = vld [vmem:[%s264 + $0x470] sm:%s257]
                %409 = vst [vmem:[%s265 + $0x238] sm:%s257] %v408
                %v410 = vld [vmem:[%s264 + $0x480] sm:%s257]
                %411 = vst [vmem:[%s265 + $0x240] sm:%s257] %v410
                %v412 = vld [vmem:[%s264 + $0x490] sm:%s257]
                %413 = vst [vmem:[%s265 + $0x248] sm:%s257] %v412
                %v414 = vld [vmem:[%s264 + $0x4a0] sm:%s257]
                %415 = vst [vmem:[%s265 + $0x250] sm:%s257] %v414
                %v416 = vld [vmem:[%s264 + $0x4b0] sm:%s257]
                %417 = vst [vmem:[%s265 + $0x258] sm:%s257] %v416
                %v418 = vld [vmem:[%s264 + $0x4c0] sm:%s257]
                %419 = vst [vmem:[%s265 + $0x260] sm:%s257] %v418
                %v420 = vld [vmem:[%s264 + $0x4d0] sm:%s257]
                %421 = vst [vmem:[%s265 + $0x268] sm:%s257] %v420
                %v422 = vld [vmem:[%s264 + $0x4e0] sm:%s257]
                %423 = vst [vmem:[%s265 + $0x270] sm:%s257] %v422
                %v424 = vld [vmem:[%s264 + $0x4f0] sm:%s257]
                %425 = vst [vmem:[%s265 + $0x278] sm:%s257] %v424
                %v426 = vld [vmem:[%s264 + $0x500] sm:%s257]
                %427 = vst [vmem:[%s265 + $0x280] sm:%s257] %v426
                %v428 = vld [vmem:[%s264 + $0x510] sm:%s257]
                %429 = vst [vmem:[%s265 + $0x288] sm:%s257] %v428
                %v430 = vld [vmem:[%s264 + $0x520] sm:%s257]
                %431 = vst [vmem:[%s265 + $0x290] sm:%s257] %v430
                %v432 = vld [vmem:[%s264 + $0x530] sm:%s257]
                %433 = vst [vmem:[%s265 + $0x298] sm:%s257] %v432
              $region45: #{fwd.3} parent=39 // loop_footer
                %s263 = sadd.s32 1, %s259
              $region46: #{fwd.3} parent=39 // loop_footer_branch
                %258 = sbr.rel target = $region42
              $region47: #{fwd.3} parent=39 // loop_exit
                _
            $region40: #{fwd.3} parent=31 // pred_fallthru
              _
          $region32: #{fwd.3} parent=27 // pred_fallthru
            _
          %614 = vnop
        $region28: #{fwd.3} parent=23 // pred_fallthru
          _
        // Predicated region
        $region63: #{fwd.3} parent=23 // pred_check
          %p615 = pneg %p84
        $region64: #{fwd.3} parent=23 // pred_check_branch
          %617 = sbr.rel (%p615) target = $region66
        $region65: #{fwd.3} parent=23 // pred_region
          %s618 = smul.u32 2, %s17
          %p619 = scmp.lt.s32.totalorder %s618, 3
          %s620 = scalar_select %p619, %s618, 3
          %s621 = smul.addr %s620, 4
          %s622 = scalar_lea.vmem %s2, %s621
          %s623 = smul.u32 2, %s17
        $region66: #{fwd.3} parent=23 // pred_fallthru
          _
        // Predicated region
        $region67: #{fwd.3} parent=23 // pred_check
          %p624 = pneg %p131
        $region68: #{fwd.3} parent=23 // pred_check_branch
          %626 = sbr.rel (%p624) target = $region70
        $region69: #{fwd.3} parent=23 // pred_region
          %s627 = sand.u32 %s121, 1
          %s628 = sand.u32 %s121, 1
          %s629 = smul.addr %s628, 24
          %s630 = scalar_lea.vmem [#allocation3], %s629
          %s631 = smul.u32 2, %s17
          %s632 = smul.addr %s631, 4
          %s633 = scalar_lea.vmem %s4, %s632
          // Predicated region
          $region71: #{fwd.3} parent=69 // pred_check
            _
          $region72: #{fwd.3} parent=69 // pred_check_branch
            %635 = sbr.rel (0) target = $region74
          $region73: #{fwd.3} parent=69 // pred_region
            // Predicated region
            $region75: #{fwd.3} parent=73 // pred_check
              _
            $region76: #{fwd.3} parent=73 // pred_check_branch
              %637 = sbr.rel (0) target = $region78
            $region77: #{fwd.3} parent=73 // pred_region
              // Predicated region
              $region90: #{fwd.3} parent=77 // pred_check
                _
              $region91: #{fwd.3} parent=77 // pred_check_branch
                %657 = sbr.rel (0) target = $region93
              $region92: #{fwd.3} parent=77 // pred_region
                loop: start=0, step=1, limit=1
                $region94: #{fwd.3} parent=92 // loop_pre_header
                  _
                $region95: #{fwd.3} parent=92 // loop_header
                  %s659 = sphi 0, %s663
                  %p660 = scmp.ge.s32.totalorder %s659, 1
                  %s664 = sphi %s633, %s633
                  %s665 = sphi %s630, %s630
                $region96: #{fwd.3} parent=92 // loop_header_branch
                  %662 = sbr.rel (%p660) target = $region100
                $region97: #{fwd.3} parent=92 // loop_body
                  %v666 = vld [vmem:[%s664] sm:$0xff]
                  %667 = vst [vmem:[%s665] sm:$0xff] %v666
                  %v668 = vld [vmem:[%s664 + $0x10] sm:$0xff]
                  %669 = vst [vmem:[%s665 + $0x8] sm:$0xff] %v668
                  %v670 = vld [vmem:[%s664 + $0x20] sm:$0xff]
                  %671 = vst [vmem:[%s665 + $0x10] sm:$0xff] %v670
                $region98: #{fwd.3} parent=92 // loop_footer
                  %s663 = sadd.s32 1, %s659
                $region99: #{fwd.3} parent=92 // loop_footer_branch
                  %658 = sbr.rel target = $region95
                $region100: #{fwd.3} parent=92 // loop_exit
                  _
              $region93: #{fwd.3} parent=77 // pred_fallthru
                _
              // Predicated region
              $region101: #{fwd.3} parent=77 // pred_check
                _
              $region102: #{fwd.3} parent=77 // pred_check_branch
                %673 = sbr.rel target = $region104
              $region103: #{fwd.3} parent=77 // pred_region
                _
              $region104: #{fwd.3} parent=77 // pred_fallthru
                _
            $region78: #{fwd.3} parent=73 // pred_fallthru
              _
            // Predicated region
            $region79: #{fwd.3} parent=73 // pred_check
              _
            $region80: #{fwd.3} parent=73 // pred_check_branch
              %639 = sbr.rel target = $region82
            $region81: #{fwd.3} parent=73 // pred_region
              %s641 = ssub.s32 256, 1
              loop: start=0, step=1, limit=1
              $region83: #{fwd.3} parent=81 // loop_pre_header
                _
              $region84: #{fwd.3} parent=81 // loop_header
                %s643 = sphi 0, %s647
                %p644 = scmp.ge.s32.totalorder %s643, 1
                %s648 = sphi %s633, %s633
                %s649 = sphi %s630, %s630
              $region85: #{fwd.3} parent=81 // loop_header_branch
                %646 = sbr.rel (%p644) target = $region89
              $region86: #{fwd.3} parent=81 // loop_body
                %v650 = vld [vmem:[%s648] sm:%s641]
                %651 = vst [vmem:[%s649] sm:%s641] %v650
                %v652 = vld [vmem:[%s648 + $0x10] sm:%s641]
                %653 = vst [vmem:[%s649 + $0x8] sm:%s641] %v652
                %v654 = vld [vmem:[%s648 + $0x20] sm:%s641]
                %655 = vst [vmem:[%s649 + $0x10] sm:%s641] %v654
              $region87: #{fwd.3} parent=81 // loop_footer
                %s647 = sadd.s32 1, %s643
              $region88: #{fwd.3} parent=81 // loop_footer_branch
                %642 = sbr.rel target = $region84
              $region89: #{fwd.3} parent=81 // loop_exit
                _
            $region82: #{fwd.3} parent=73 // pred_fallthru
              _
          $region74: #{fwd.3} parent=69 // pred_fallthru
            _
          %674 = vnop
        $region70: #{fwd.3} parent=23 // pred_fallthru
          _
        // Predicated region
        $region105: #{fwd.3} parent=23 // pred_check
          %p675 = pneg %p157
        $region106: #{fwd.3} parent=23 // pred_check_branch
          %677 = sbr.rel (%p675) target = $region108
        $region107: #{fwd.3} parent=23 // pred_region
          %s678 = sand.u32 %s147, 1
          %s679 = sand.u32 %s147, 1
          %s680 = smul.addr %s679, 24
          %s681 = scalar_lea.vmem [#allocation4], %s680
          %s682 = smul.u32 2, %s17
          %s683 = smul.addr %s682, 4
          %s684 = scalar_lea.vmem %s5, %s683
          // Predicated region
          $region109: #{fwd.3} parent=107 // pred_check
            _
          $region110: #{fwd.3} parent=107 // pred_check_branch
            %686 = sbr.rel (0) target = $region112
          $region111: #{fwd.3} parent=107 // pred_region
            // Predicated region
            $region113: #{fwd.3} parent=111 // pred_check
              _
            $region114: #{fwd.3} parent=111 // pred_check_branch
              %688 = sbr.rel (0) target = $region116
            $region115: #{fwd.3} parent=111 // pred_region
              // Predicated region
              $region128: #{fwd.3} parent=115 // pred_check
                _
              $region129: #{fwd.3} parent=115 // pred_check_branch
                %708 = sbr.rel (0) target = $region131
              $region130: #{fwd.3} parent=115 // pred_region
                loop: start=0, step=1, limit=1
                $region132: #{fwd.3} parent=130 // loop_pre_header
                  _
                $region133: #{fwd.3} parent=130 // loop_header
                  %s710 = sphi 0, %s714
                  %p711 = scmp.ge.s32.totalorder %s710, 1
                  %s715 = sphi %s684, %s684
                  %s716 = sphi %s681, %s681
                $region134: #{fwd.3} parent=130 // loop_header_branch
                  %713 = sbr.rel (%p711) target = $region138
                $region135: #{fwd.3} parent=130 // loop_body
                  %v717 = vld [vmem:[%s715] sm:$0xff]
                  %718 = vst [vmem:[%s716] sm:$0xff] %v717
                  %v719 = vld [vmem:[%s715 + $0x10] sm:$0xff]
                  %720 = vst [vmem:[%s716 + $0x8] sm:$0xff] %v719
                  %v721 = vld [vmem:[%s715 + $0x20] sm:$0xff]
                  %722 = vst [vmem:[%s716 + $0x10] sm:$0xff] %v721
                $region136: #{fwd.3} parent=130 // loop_footer
                  %s714 = sadd.s32 1, %s710
                $region137: #{fwd.3} parent=130 // loop_footer_branch
                  %709 = sbr.rel target = $region133
                $region138: #{fwd.3} parent=130 // loop_exit
                  _
              $region131: #{fwd.3} parent=115 // pred_fallthru
                _
              // Predicated region
              $region139: #{fwd.3} parent=115 // pred_check
                _
              $region140: #{fwd.3} parent=115 // pred_check_branch
                %724 = sbr.rel target = $region142
              $region141: #{fwd.3} parent=115 // pred_region
                _
              $region142: #{fwd.3} parent=115 // pred_fallthru
                _
            $region116: #{fwd.3} parent=111 // pred_fallthru
              _
            // Predicated region
            $region117: #{fwd.3} parent=111 // pred_check
              _
            $region118: #{fwd.3} parent=111 // pred_check_branch
              %690 = sbr.rel target = $region120
            $region119: #{fwd.3} parent=111 // pred_region
              %s692 = ssub.s32 256, 1
              loop: start=0, step=1, limit=1
              $region121: #{fwd.3} parent=119 // loop_pre_header
                _
              $region122: #{fwd.3} parent=119 // loop_header
                %s694 = sphi 0, %s698
                %p695 = scmp.ge.s32.totalorder %s694, 1
                %s699 = sphi %s684, %s684
                %s700 = sphi %s681, %s681
              $region123: #{fwd.3} parent=119 // loop_header_branch
                %697 = sbr.rel (%p695) target = $region127
              $region124: #{fwd.3} parent=119 // loop_body
                %v701 = vld [vmem:[%s699] sm:%s692]
                %702 = vst [vmem:[%s700] sm:%s692] %v701
                %v703 = vld [vmem:[%s699 + $0x10] sm:%s692]
                %704 = vst [vmem:[%s700 + $0x8] sm:%s692] %v703
                %v705 = vld [vmem:[%s699 + $0x20] sm:%s692]
                %706 = vst [vmem:[%s700 + $0x10] sm:%s692] %v705
              $region125: #{fwd.3} parent=119 // loop_footer
                %s698 = sadd.s32 1, %s694
              $region126: #{fwd.3} parent=119 // loop_footer_branch
                %693 = sbr.rel target = $region122
              $region127: #{fwd.3} parent=119 // loop_exit
                _
            $region120: #{fwd.3} parent=111 // pred_fallthru
              _
          $region112: #{fwd.3} parent=107 // pred_fallthru
            _
          %725 = vnop
        $region108: #{fwd.3} parent=23 // pred_fallthru
          _
      $region24: #{fwd.3} parent=5 // pred_fallthru
        _
      %p726 = scmp.le.s32.totalorder 1, %s17
      %p727 = scmp.lt.s32.totalorder %s17, 3
      %p728 = pnand %p726, %p727
      %p729 = pneg %p728
      // Predicated region
      $region143: #{fwd.3} parent=5 // pred_check
        _
      $region144: #{fwd.3} parent=5 // pred_check_branch
        %731 = sbr.rel (%p728) target = $region146
      $region145: #{fwd.3} parent=5 // pred_region
        %s732 = ssub.s32 %s17, 1
        %s733 = sand.u32 %s51, 1
        %s734 = sand.u32 %s51, 1
        %s735 = smul.addr %s734, 672
        %s736 = scalar_lea.vmem [#allocation2], %s735
        // Predicated region
        $region147: #{fwd.3} parent=145 // pred_check
          %p737 = pneg %p64
        $region148: #{fwd.3} parent=145 // pred_check_branch
          %739 = sbr.rel (%p737) target = $region150
        $region149: #{fwd.3} parent=145 // pred_region
          _
        $region150: #{fwd.3} parent=145 // pred_fallthru
          _
        %s740 = sand.u32 %s124, 1
        %s741 = sand.u32 %s124, 1
        %s742 = smul.addr %s741, 24
        %s743 = scalar_lea.vmem [#allocation3], %s742
        // Predicated region
        $region151: #{fwd.3} parent=145 // pred_check
          %p744 = pneg %p137
        $region152: #{fwd.3} parent=145 // pred_check_branch
          %746 = sbr.rel (%p744) target = $region154
        $region153: #{fwd.3} parent=145 // pred_region
          _
        $region154: #{fwd.3} parent=145 // pred_fallthru
          _
        %s747 = sand.u32 %s150, 1
        %s748 = sand.u32 %s150, 1
        %s749 = smul.addr %s748, 24
        %s750 = scalar_lea.vmem [#allocation4], %s749
        // Predicated region
        $region155: #{fwd.3} parent=145 // pred_check
          %p751 = pneg %p163
        $region156: #{fwd.3} parent=145 // pred_check_branch
          %753 = sbr.rel (%p751) target = $region158
        $region157: #{fwd.3} parent=145 // pred_region
          _
        $region158: #{fwd.3} parent=145 // pred_fallthru
          _
        %p754 = pneg %p38
        %p755 = pneg %p35
        %s756 = sand.u32 %s51, 1
        %s757 = sand.u32 %s51, 1
        %s758 = smul.addr %s757, 672
        %s759 = scalar_lea.vmem [#allocation2], %s758
        %p760 = pneg %p64
        %p761 = pneg %p61
        %s762 = smul.u32 2, %s22
        %p763 = scmp.lt.s32.totalorder %s762, 3
        %s764 = scalar_select %p763, %s762, 3
        %s765 = smul.addr %s764, 4
        %s766 = scalar_lea.vmem %s2, %s765
        %p767 = pneg %p90
        %p768 = pneg %p87
        %p769 = pneg %p111
        %p770 = pneg %p108
        %s771 = sand.u32 %s124, 1
        %s772 = sand.u32 %s124, 1
        %s773 = smul.addr %s772, 24
        %s774 = scalar_lea.vmem [#allocation3], %s773
        %p775 = pneg %p137
        %p776 = pneg %p134
        %s777 = sand.u32 %s150, 1
        %s778 = sand.u32 %s150, 1
        %s779 = smul.addr %s778, 24
        %s780 = scalar_lea.vmem [#allocation4], %s779
        %p781 = pneg %p163
        %p782 = pneg %p160
        %p783 = pneg %p189
        %p784 = pneg %p186
        %s785 = sand.u32 %s176, 1
        %s786 = scalar_lea.sflag [#allocation6], %s785
        %s787 = sand.u32 %s176, 1
        %s788 = smul.addr %s787, 12
        %s789 = scalar_lea.vmem [#allocation5], %s788
        %p790 = pneg %p215
        %p791 = pneg %p212
        %p792 = scmp.lt.s32.totalorder %s22, 1
        %s793 = scalar_select %p792, %s22, 1
        %s794 = smul.addr %s793, 3
        %s795 = smul.addr %s794, 2
        %s796 = scalar_lea.vmem %s7, %s795
        %s797 = smul.u32 2, %s22
        %s798 = smul.u32 2, %s22
        %p799 = scmp.lt.s32.totalorder %s798, 3
        %s800 = scalar_select %p799, %s798, 3
        %s801 = smul.addr %s800, 4
        %s802 = scalar_lea.vmem %s2, %s801
        %s803 = smul.u32 2, %s22
        %s804 = smul.u32 2, %s22
        %s805 = smul.u32 2, %s22
        %s806 = smul.u32 2, %s22
        %p807 = scmp.lt.s32.totalorder %s22, 1
        %s808 = scalar_select %p807, %s22, 1
        %s809 = smul.addr %s808, 3
        %s810 = smul.addr %s809, 2
        %s811 = scalar_lea.vmem %s7, %s810
        %v813 = vld [vmem:[%s0] sm:$0x3]
        %v814 = vld [vmem:[%s743] sm:$0xff]
        %v815 = vld [vmem:[%s743 + $0x8] sm:$0xff]
        %v816 = vld [vmem:[%s743 + $0x10] sm:$0xff]
        %v817 = vunpack.c.l.bf16 %v814
        %v818 = vunpack.c.h.bf16 %v814
        %v819 = vunpack.c.l.bf16 %v815
        %v820 = vunpack.c.h.bf16 %v815
        %v821 = vunpack.c.l.bf16 %v816
        %v822 = vunpack.c.h.bf16 %v816
        %v823 = vld [vmem:[%s750] sm:$0xff]
        %v824 = vld [vmem:[%s750 + $0x8] sm:$0xff]
        %v825 = vld [vmem:[%s750 + $0x10] sm:$0x11]
        %v826 = vunpack.c.l.bf16 %v823
        %v827 = vunpack.c.h.bf16 %v823
        %v828 = vunpack.c.l.bf16 %v824
        %v829 = vunpack.c.h.bf16 %v824
        %v830 = vunpack.c.l.bf16 %v825
        %v831 = vunpack.c.h.bf16 %v825
        %v832 = vld [vmem:[%s736] sm:$0xff]
        %v833 = vld [vmem:[%s736 + $0x8] sm:$0xff]
        %v834 = vld [vmem:[%s736 + $0x10] sm:$0xff]
        %v835 = vld [vmem:[%s736 + $0x18] sm:$0xff]
        %v836 = vld [vmem:[%s736 + $0x20] sm:$0xff]
        %v837 = vld [vmem:[%s736 + $0x28] sm:$0xff]
        %v838 = vld [vmem:[%s736 + $0x30] sm:$0xff]
        %v839 = vld [vmem:[%s736 + $0x38] sm:$0xff]
        %v840 = vld [vmem:[%s736 + $0x40] sm:$0xff]
        %v841 = vld [vmem:[%s736 + $0x48] sm:$0xff]
        %v842 = vld [vmem:[%s736 + $0x50] sm:$0xff]
        %v843 = vld [vmem:[%s736 + $0x58] sm:$0xff]
        %v844 = vld [vmem:[%s736 + $0x60] sm:$0xff]
        %v845 = vld [vmem:[%s736 + $0x68] sm:$0xff]
        %v846 = vld [vmem:[%s736 + $0x70] sm:$0xff]
        %v847 = vld [vmem:[%s736 + $0x78] sm:$0xff]
        %v848 = vld [vmem:[%s736 + $0x80] sm:$0xff]
        %v849 = vld [vmem:[%s736 + $0x88] sm:$0xff]
        %v850 = vld [vmem:[%s736 + $0x90] sm:$0xff]
        %v851 = vld [vmem:[%s736 + $0x98] sm:$0xff]
        %v852 = vld [vmem:[%s736 + $0xa0] sm:$0xff]
        %v853 = vld [vmem:[%s736 + $0xa8] sm:$0xff]
        %v854 = vld [vmem:[%s736 + $0xb0] sm:$0xff]
        %v855 = vld [vmem:[%s736 + $0xb8] sm:$0xff]
        %v856 = vld [vmem:[%s736 + $0xc0] sm:$0xff]
        %v857 = vld [vmem:[%s736 + $0xc8] sm:$0xff]
        %v858 = vld [vmem:[%s736 + $0xd0] sm:$0xff]
        %v859 = vld [vmem:[%s736 + $0xd8] sm:$0x11]
        %v860 = vld [vmem:[%s802] ss:$4 sm:$0x3]
        %v862 = vlaneseq
        %v863 = vshrl.u32 %v862, 7
        %v864 = vsub.s32 0, %v863
        %v865 = vrot.slane %v860, %v864
        %v866 = vlaneseq
        %v867 = vshrl.u32 %v866, 7
        %v868 = vsub.s32 1, %v867
        %v869 = vrot.slane %v860, %v868
        %v874 = vunpack.c.l.s4 1966171168
        %v875 = vunpack.c.0.s8 %v874
        %v876 = vlaneseq
        %v877 = vshrl.u32 %v876, 7
        %v878 = vsub.s32 %v875, %v877
        %v879 = vrot.slane %v813, %v878
        %v880 = vcombine.high %v879, %v879
        %v882 = vunpack.c.l.s4 1966171168
        %v883 = vunpack.c.0.s8 %v882
        %v884 = vlaneseq
        %v885 = vshrl.u32 %v884, 7
        %v886 = vsub.s32 %v883, %v885
        %v887 = vrot.slane %v879, %v886
        %v889 = vunpack.c.l.s4 1966171168
        %v890 = vunpack.c.0.s8 %v889
        %v891 = vlaneseq
        %v892 = vshrl.u32 %v891, 7
        %v893 = vsub.s32 %v890, %v892
        %v894 = vrot.slane %v880, %v893
        %v924 = vunpack.c.l.b16 %v832
        %v925 = vunpack.c.h.b16 %v832
        %v926 = vunpack.c.l.b16 %v833
        %v927 = vunpack.c.h.b16 %v833
        %v928 = vunpack.c.l.b16 %v834
        %v929 = vunpack.c.h.b16 %v834
        %v930 = vunpack.c.l.b16 %v835
        %v931 = vunpack.c.h.b16 %v835
        %v932 = vunpack.c.l.b16 %v836
        %v933 = vunpack.c.h.b16 %v836
        %v934 = vunpack.c.l.b16 %v837
        %v935 = vunpack.c.h.b16 %v837
        %v936 = vunpack.c.l.b16 %v838
        %v937 = vunpack.c.h.b16 %v838
        %v938 = vunpack.c.l.b16 %v839
        %v939 = vunpack.c.h.b16 %v839
        %v940 = vunpack.c.l.b16 %v840
        %v941 = vunpack.c.h.b16 %v840
        %v942 = vunpack.c.l.b16 %v841
        %v943 = vunpack.c.h.b16 %v841
        %v944 = vunpack.c.l.b16 %v842
        %v945 = vunpack.c.h.b16 %v842
        %v946 = vunpack.c.l.b16 %v843
        %v947 = vunpack.c.h.b16 %v843
        %v948 = vunpack.c.l.b16 %v844
        %v949 = vunpack.c.h.b16 %v844
        %v950 = vunpack.c.l.b16 %v845
        %v951 = vunpack.c.h.b16 %v845
        %v952 = vunpack.c.l.b16 %v846
        %v953 = vunpack.c.h.b16 %v846
        %v954 = vunpack.c.l.b16 %v847
        %v955 = vunpack.c.h.b16 %v847
        %v956 = vunpack.c.l.b16 %v848
        %v957 = vunpack.c.h.b16 %v848
        %v958 = vunpack.c.l.b16 %v849
        %v959 = vunpack.c.h.b16 %v849
        %v960 = vunpack.c.l.b16 %v850
        %v961 = vunpack.c.h.b16 %v850
        %v962 = vunpack.c.l.b16 %v851
        %v963 = vunpack.c.h.b16 %v851
        %v964 = vunpack.c.l.b16 %v852
        %v965 = vunpack.c.h.b16 %v852
        %v966 = vunpack.c.l.b16 %v853
        %v967 = vunpack.c.h.b16 %v853
        %v968 = vunpack.c.l.b16 %v854
        %v969 = vunpack.c.h.b16 %v854
        %v970 = vunpack.c.l.b16 %v855
        %v971 = vunpack.c.h.b16 %v855
        %v972 = vunpack.c.l.b16 %v856
        %v973 = vunpack.c.h.b16 %v856
        %v974 = vunpack.c.l.b16 %v857
        %v975 = vunpack.c.h.b16 %v857
        %v976 = vunpack.c.l.b16 %v858
        %v977 = vunpack.c.h.b16 %v858
        %v978 = vunpack.c.l.b16 %v859
        %v979 = vunpack.c.h.b16 %v859
        %v980 = vpack.c.b16 %v926, %v924
        %v981 = vpack.c.b16 %v927, %v925
        %v982 = vpack.c.b16 %v930, %v928
        %v983 = vpack.c.b16 %v931, %v929
        %v984 = vpack.c.b16 %v934, %v932
        %v985 = vpack.c.b16 %v935, %v933
        %v986 = vpack.c.b16 %v938, %v936
        %v987 = vpack.c.b16 %v939, %v937
        %v988 = vpack.c.b16 %v942, %v940
        %v989 = vpack.c.b16 %v943, %v941
        %v990 = vpack.c.b16 %v946, %v944
        %v991 = vpack.c.b16 %v947, %v945
        %v992 = vpack.c.b16 %v950, %v948
        %v993 = vpack.c.b16 %v951, %v949
        %v994 = vpack.c.b16 %v954, %v952
        %v995 = vpack.c.b16 %v955, %v953
        %v996 = vpack.c.b16 %v958, %v956
        %v997 = vpack.c.b16 %v959, %v957
        %v998 = vpack.c.b16 %v962, %v960
        %v999 = vpack.c.b16 %v963, %v961
        %v1000 = vpack.c.b16 %v966, %v964
        %v1001 = vpack.c.b16 %v967, %v965
        %v1002 = vpack.c.b16 %v970, %v968
        %v1003 = vpack.c.b16 %v971, %v969
        %v1004 = vpack.c.b16 %v974, %v972
        %v1005 = vpack.c.b16 %v975, %v973
        %v1006 = vpack.c.b16 %v978, %v976
        %v1007 = vpack.c.b16 %v979, %v977
        %vm1034 = vcmask 728064
        %v1036 = vsel %vm1034, %v894, 0
        %vm1038 = vcmask 1043456
        %vm1039 = vcmask 1044480
        %v1040 = vsel %vm1038, 4294967295, 65535
        %v1041 = vsel %vm1039, %v1040, 0
        %v1043 = vand.u32 %v1006, %v1041
        %v1046 = vand.u32 %v1007, %v1041
        %1048 = vmatprep.subr.bf16.mxu0 %v995
        %1049 = vmatpush1.bf16.msra.mxu0 %v994
        %1050 = vmatprep.subr.bf16.mxu0 %v993
        %1051 = vmatpush1.bf16.msra.mxu0 %v992
        %1052 = vmatprep.subr.bf16.mxu0 %v991
        %1053 = vmatpush1.bf16.msra.mxu0 %v990
        %1054 = vmatprep.subr.bf16.mxu0 %v989
        %1055 = vmatpush1.bf16.msra.mxu0 %v988
        %1056 = vmatprep.subr.bf16.mxu0 %v987
        %1057 = vmatpush1.bf16.msra.mxu0 %v986
        %1058 = vmatprep.subr.bf16.mxu0 %v985
        %1059 = vmatpush1.bf16.msra.mxu0 %v984
        %1060 = vmatprep.subr.bf16.mxu0 %v983
        %1061 = vmatpush1.bf16.msra.mxu0 %v982
        %1062 = vmatprep.subr.bf16.mxu0 %v981
        %1063 = vmatpush1.bf16.msra.mxu0 %v980
        %1064 = vmatprep.subr.bf16.mxu0 0
        %1065 = vmatpush2.bf16.msra.mxu0 0
        %1066 = vmatprep.subr.bf16.mxu0 0
        %1067 = vmatpush2.bf16.msra.mxu0 0
        %1068 = vmatprep.subr.bf16.mxu0 %v1046
        %1069 = vmatpush2.bf16.msra.mxu0 %v1043
        %1070 = vmatprep.subr.bf16.mxu0 %v1005
        %1071 = vmatpush2.bf16.msra.mxu0 %v1004
        %1072 = vmatprep.subr.bf16.mxu0 %v1003
        %1073 = vmatpush2.bf16.msra.mxu0 %v1002
        %1074 = vmatprep.subr.bf16.mxu0 %v1001
        %1075 = vmatpush2.bf16.msra.mxu0 %v1000
        %1076 = vmatprep.subr.bf16.mxu0 %v999
        %1077 = vmatpush2.bf16.msra.mxu0 %v998
        %1078 = vmatprep.subr.bf16.mxu0 %v997
        %1079 = vmatpush2.bf16.msra.mxu0 %v996
        %1080 = vmatprep.mubr.bf16.mxu0 %v1036
        %1081 = vmatmul.mubr.bf16.gmra.mxu0 %v887
        %v1082 = vpop.f32.mrf.mxu0
        %v1083 = vadd.f32 %v865, %v1082
        %v1084 = vpop.f32.mrf.mxu0
        %v1085 = vadd.f32 %v869, %v1084
        %v1086 = vpop.f32.mrf.mxu0
        %v1087 = vpop.f32.mrf.mxu0
        %1088 = vdwg.mxu0
        %s1089 = scalar_lea.vmem %s736, 224 [#allocation2]
        %v1090 = vld [vmem:[%s1089] sm:$0xff]
        %v1091 = vld [vmem:[%s1089 + $0x8] sm:$0xff]
        %v1092 = vld [vmem:[%s1089 + $0x10] sm:$0xff]
        %v1093 = vld [vmem:[%s1089 + $0x18] sm:$0xff]
        %v1094 = vld [vmem:[%s1089 + $0x20] sm:$0xff]
        %v1095 = vld [vmem:[%s1089 + $0x28] sm:$0xff]
        %v1096 = vld [vmem:[%s1089 + $0x30] sm:$0xff]
        %v1097 = vld [vmem:[%s1089 + $0x38] sm:$0xff]
        %v1098 = vld [vmem:[%s1089 + $0x40] sm:$0xff]
        %v1099 = vld [vmem:[%s1089 + $0x48] sm:$0xff]
        %v1100 = vld [vmem:[%s1089 + $0x50] sm:$0xff]
        %v1101 = vld [vmem:[%s1089 + $0x58] sm:$0xff]
        %v1102 = vld [vmem:[%s1089 + $0x60] sm:$0xff]
        %v1103 = vld [vmem:[%s1089 + $0x68] sm:$0xff]
        %v1104 = vld [vmem:[%s1089 + $0x70] sm:$0xff]
        %v1105 = vld [vmem:[%s1089 + $0x78] sm:$0xff]
        %v1106 = vld [vmem:[%s1089 + $0x80] sm:$0xff]
        %v1107 = vld [vmem:[%s1089 + $0x88] sm:$0xff]
        %v1108 = vld [vmem:[%s1089 + $0x90] sm:$0xff]
        %v1109 = vld [vmem:[%s1089 + $0x98] sm:$0xff]
        %v1110 = vld [vmem:[%s1089 + $0xa0] sm:$0xff]
        %v1111 = vld [vmem:[%s1089 + $0xa8] sm:$0xff]
        %v1112 = vld [vmem:[%s1089 + $0xb0] sm:$0xff]
        %v1113 = vld [vmem:[%s1089 + $0xb8] sm:$0xff]
        %v1114 = vld [vmem:[%s1089 + $0xc0] sm:$0xff]
        %v1115 = vld [vmem:[%s1089 + $0xc8] sm:$0xff]
        %v1116 = vld [vmem:[%s1089 + $0xd0] sm:$0xff]
        %v1117 = vld [vmem:[%s1089 + $0xd8] sm:$0x11]
        %s1118 = scalar_lea.vmem %s802, 1
        %v1119 = vld [vmem:[%s1118] ss:$4 sm:$0x3]
        %v1121 = vlaneseq
        %v1122 = vshrl.u32 %v1121, 7
        %v1123 = vsub.s32 0, %v1122
        %v1124 = vrot.slane %v1119, %v1123
        %v1125 = vlaneseq
        %v1126 = vshrl.u32 %v1125, 7
        %v1127 = vsub.s32 1, %v1126
        %v1128 = vrot.slane %v1119, %v1127
        %v1159 = vunpack.c.l.b16 %v1090
        %v1160 = vunpack.c.h.b16 %v1090
        %v1161 = vunpack.c.l.b16 %v1091
        %v1162 = vunpack.c.h.b16 %v1091
        %v1163 = vunpack.c.l.b16 %v1092
        %v1164 = vunpack.c.h.b16 %v1092
        %v1165 = vunpack.c.l.b16 %v1093
        %v1166 = vunpack.c.h.b16 %v1093
        %v1167 = vunpack.c.l.b16 %v1094
        %v1168 = vunpack.c.h.b16 %v1094
        %v1169 = vunpack.c.l.b16 %v1095
        %v1170 = vunpack.c.h.b16 %v1095
        %v1171 = vunpack.c.l.b16 %v1096
        %v1172 = vunpack.c.h.b16 %v1096
        %v1173 = vunpack.c.l.b16 %v1097
        %v1174 = vunpack.c.h.b16 %v1097
        %v1175 = vunpack.c.l.b16 %v1098
        %v1176 = vunpack.c.h.b16 %v1098
        %v1177 = vunpack.c.l.b16 %v1099
        %v1178 = vunpack.c.h.b16 %v1099
        %v1179 = vunpack.c.l.b16 %v1100
        %v1180 = vunpack.c.h.b16 %v1100
        %v1181 = vunpack.c.l.b16 %v1101
        %v1182 = vunpack.c.h.b16 %v1101
        %v1183 = vunpack.c.l.b16 %v1102
        %v1184 = vunpack.c.h.b16 %v1102
        %v1185 = vunpack.c.l.b16 %v1103
        %v1186 = vunpack.c.h.b16 %v1103
        %v1187 = vunpack.c.l.b16 %v1104
        %v1188 = vunpack.c.h.b16 %v1104
        %v1189 = vunpack.c.l.b16 %v1105
        %v1190 = vunpack.c.h.b16 %v1105
        %v1191 = vunpack.c.l.b16 %v1106
        %v1192 = vunpack.c.h.b16 %v1106
        %v1193 = vunpack.c.l.b16 %v1107
        %v1194 = vunpack.c.h.b16 %v1107
        %v1195 = vunpack.c.l.b16 %v1108
        %v1196 = vunpack.c.h.b16 %v1108
        %v1197 = vunpack.c.l.b16 %v1109
        %v1198 = vunpack.c.h.b16 %v1109
        %v1199 = vunpack.c.l.b16 %v1110
        %v1200 = vunpack.c.h.b16 %v1110
        %v1201 = vunpack.c.l.b16 %v1111
        %v1202 = vunpack.c.h.b16 %v1111
        %v1203 = vunpack.c.l.b16 %v1112
        %v1204 = vunpack.c.h.b16 %v1112
        %v1205 = vunpack.c.l.b16 %v1113
        %v1206 = vunpack.c.h.b16 %v1113
        %v1207 = vunpack.c.l.b16 %v1114
        %v1208 = vunpack.c.h.b16 %v1114
        %v1209 = vunpack.c.l.b16 %v1115
        %v1210 = vunpack.c.h.b16 %v1115
        %v1211 = vunpack.c.l.b16 %v1116
        %v1212 = vunpack.c.h.b16 %v1116
        %v1213 = vunpack.c.l.b16 %v1117
        %v1214 = vunpack.c.h.b16 %v1117
        %v1215 = vpack.c.b16 %v1161, %v1159
        %v1216 = vpack.c.b16 %v1162, %v1160
        %v1217 = vpack.c.b16 %v1165, %v1163
        %v1218 = vpack.c.b16 %v1166, %v1164
        %v1219 = vpack.c.b16 %v1169, %v1167
        %v1220 = vpack.c.b16 %v1170, %v1168
        %v1221 = vpack.c.b16 %v1173, %v1171
        %v1222 = vpack.c.b16 %v1174, %v1172
        %v1223 = vpack.c.b16 %v1177, %v1175
        %v1224 = vpack.c.b16 %v1178, %v1176
        %v1225 = vpack.c.b16 %v1181, %v1179
        %v1226 = vpack.c.b16 %v1182, %v1180
        %v1227 = vpack.c.b16 %v1185, %v1183
        %v1228 = vpack.c.b16 %v1186, %v1184
        %v1229 = vpack.c.b16 %v1189, %v1187
        %v1230 = vpack.c.b16 %v1190, %v1188
        %v1231 = vpack.c.b16 %v1193, %v1191
        %v1232 = vpack.c.b16 %v1194, %v1192
        %v1233 = vpack.c.b16 %v1197, %v1195
        %v1234 = vpack.c.b16 %v1198, %v1196
        %v1235 = vpack.c.b16 %v1201, %v1199
        %v1236 = vpack.c.b16 %v1202, %v1200
        %v1237 = vpack.c.b16 %v1205, %v1203
        %v1238 = vpack.c.b16 %v1206, %v1204
        %v1239 = vpack.c.b16 %v1209, %v1207
        %v1240 = vpack.c.b16 %v1210, %v1208
        %v1241 = vpack.c.b16 %v1213, %v1211
        %v1242 = vpack.c.b16 %v1214, %v1212
        %v1270 = vand.u32 %v1241, %v1041
        %v1273 = vand.u32 %v1242, %v1041
        %1275 = vmatprep.subr.bf16.mxu0 %v1230
        %1276 = vmatpush1.bf16.msra.mxu0 %v1229
        %1277 = vmatprep.subr.bf16.mxu0 %v1228
        %1278 = vmatpush1.bf16.msra.mxu0 %v1227
        %1279 = vmatprep.subr.bf16.mxu0 %v1226
        %1280 = vmatpush1.bf16.msra.mxu0 %v1225
        %1281 = vmatprep.subr.bf16.mxu0 %v1224
        %1282 = vmatpush1.bf16.msra.mxu0 %v1223
        %1283 = vmatprep.subr.bf16.mxu0 %v1222
        %1284 = vmatpush1.bf16.msra.mxu0 %v1221
        %1285 = vmatprep.subr.bf16.mxu0 %v1220
        %1286 = vmatpush1.bf16.msra.mxu0 %v1219
        %1287 = vmatprep.subr.bf16.mxu0 %v1218
        %1288 = vmatpush1.bf16.msra.mxu0 %v1217
        %1289 = vmatprep.subr.bf16.mxu0 %v1216
        %1290 = vmatpush1.bf16.msra.mxu0 %v1215
        %1291 = vmatprep.subr.bf16.mxu0 0
        %1292 = vmatpush2.bf16.msra.mxu0 0
        %1293 = vmatprep.subr.bf16.mxu0 0
        %1294 = vmatpush2.bf16.msra.mxu0 0
        %1295 = vmatprep.subr.bf16.mxu0 %v1273
        %1296 = vmatpush2.bf16.msra.mxu0 %v1270
        %1297 = vmatprep.subr.bf16.mxu0 %v1240
        %1298 = vmatpush2.bf16.msra.mxu0 %v1239
        %1299 = vmatprep.subr.bf16.mxu0 %v1238
        %1300 = vmatpush2.bf16.msra.mxu0 %v1237
        %1301 = vmatprep.subr.bf16.mxu0 %v1236
        %1302 = vmatpush2.bf16.msra.mxu0 %v1235
        %1303 = vmatprep.subr.bf16.mxu0 %v1234
        %1304 = vmatpush2.bf16.msra.mxu0 %v1233
        %1305 = vmatprep.subr.bf16.mxu0 %v1232
        %1306 = vmatpush2.bf16.msra.mxu0 %v1231
        %1307 = vmatprep.mubr.bf16.mxu0 %v1036
        %1308 = vmatmul.mubr.bf16.gmra.mxu0 %v887
        %v1309 = vpop.f32.mrf.mxu0
        %v1310 = vadd.f32 %v1124, %v1309
        %v1311 = vpop.f32.mrf.mxu0
        %v1312 = vadd.f32 %v1128, %v1311
        %v1313 = vpop.f32.mrf.mxu0
        %v1314 = vpop.f32.mrf.mxu0
        %1315 = vdwg.mxu0
        %s1316 = scalar_lea.vmem %s736, 448 [#allocation2]
        %v1317 = vld [vmem:[%s1316] sm:$0xff]
        %v1318 = vld [vmem:[%s1316 + $0x8] sm:$0xff]
        %v1319 = vld [vmem:[%s1316 + $0x10] sm:$0xff]
        %v1320 = vld [vmem:[%s1316 + $0x18] sm:$0xff]
        %v1321 = vld [vmem:[%s1316 + $0x20] sm:$0xff]
        %v1322 = vld [vmem:[%s1316 + $0x28] sm:$0xff]
        %v1323 = vld [vmem:[%s1316 + $0x30] sm:$0xff]
        %v1324 = vld [vmem:[%s1316 + $0x38] sm:$0xff]
        %v1325 = vld [vmem:[%s1316 + $0x40] sm:$0xff]
        %v1326 = vld [vmem:[%s1316 + $0x48] sm:$0xff]
        %v1327 = vld [vmem:[%s1316 + $0x50] sm:$0xff]
        %v1328 = vld [vmem:[%s1316 + $0x58] sm:$0xff]
        %v1329 = vld [vmem:[%s1316 + $0x60] sm:$0xff]
        %v1330 = vld [vmem:[%s1316 + $0x68] sm:$0xff]
        %v1331 = vld [vmem:[%s1316 + $0x70] sm:$0xff]
        %v1332 = vld [vmem:[%s1316 + $0x78] sm:$0xff]
        %v1333 = vld [vmem:[%s1316 + $0x80] sm:$0xff]
        %v1334 = vld [vmem:[%s1316 + $0x88] sm:$0xff]
        %v1335 = vld [vmem:[%s1316 + $0x90] sm:$0xff]
        %v1336 = vld [vmem:[%s1316 + $0x98] sm:$0xff]
        %v1337 = vld [vmem:[%s1316 + $0xa0] sm:$0xff]
        %v1338 = vld [vmem:[%s1316 + $0xa8] sm:$0xff]
        %v1339 = vld [vmem:[%s1316 + $0xb0] sm:$0xff]
        %v1340 = vld [vmem:[%s1316 + $0xb8] sm:$0xff]
        %v1341 = vld [vmem:[%s1316 + $0xc0] sm:$0xff]
        %v1342 = vld [vmem:[%s1316 + $0xc8] sm:$0xff]
        %v1343 = vld [vmem:[%s1316 + $0xd0] sm:$0xff]
        %v1344 = vld [vmem:[%s1316 + $0xd8] sm:$0x11]
        %s1345 = scalar_lea.vmem %s802, 2
        %v1346 = vld [vmem:[%s1345] ss:$4 sm:$0x3]
        %v1348 = vlaneseq
        %v1349 = vshrl.u32 %v1348, 7
        %v1350 = vsub.s32 0, %v1349
        %v1351 = vrot.slane %v1346, %v1350
        %v1352 = vlaneseq
        %v1353 = vshrl.u32 %v1352, 7
        %v1354 = vsub.s32 1, %v1353
        %v1355 = vrot.slane %v1346, %v1354
        %v1386 = vunpack.c.l.b16 %v1317
        %v1387 = vunpack.c.h.b16 %v1317
        %v1388 = vunpack.c.l.b16 %v1318
        %v1389 = vunpack.c.h.b16 %v1318
        %v1390 = vunpack.c.l.b16 %v1319
        %v1391 = vunpack.c.h.b16 %v1319
        %v1392 = vunpack.c.l.b16 %v1320
        %v1393 = vunpack.c.h.b16 %v1320
        %v1394 = vunpack.c.l.b16 %v1321
        %v1395 = vunpack.c.h.b16 %v1321
        %v1396 = vunpack.c.l.b16 %v1322
        %v1397 = vunpack.c.h.b16 %v1322
        %v1398 = vunpack.c.l.b16 %v1323
        %v1399 = vunpack.c.h.b16 %v1323
        %v1400 = vunpack.c.l.b16 %v1324
        %v1401 = vunpack.c.h.b16 %v1324
        %v1402 = vunpack.c.l.b16 %v1325
        %v1403 = vunpack.c.h.b16 %v1325
        %v1404 = vunpack.c.l.b16 %v1326
        %v1405 = vunpack.c.h.b16 %v1326
        %v1406 = vunpack.c.l.b16 %v1327
        %v1407 = vunpack.c.h.b16 %v1327
        %v1408 = vunpack.c.l.b16 %v1328
        %v1409 = vunpack.c.h.b16 %v1328
        %v1410 = vunpack.c.l.b16 %v1329
        %v1411 = vunpack.c.h.b16 %v1329
        %v1412 = vunpack.c.l.b16 %v1330
        %v1413 = vunpack.c.h.b16 %v1330
        %v1414 = vunpack.c.l.b16 %v1331
        %v1415 = vunpack.c.h.b16 %v1331
        %v1416 = vunpack.c.l.b16 %v1332
        %v1417 = vunpack.c.h.b16 %v1332
        %v1418 = vunpack.c.l.b16 %v1333
        %v1419 = vunpack.c.h.b16 %v1333
        %v1420 = vunpack.c.l.b16 %v1334
        %v1421 = vunpack.c.h.b16 %v1334
        %v1422 = vunpack.c.l.b16 %v1335
        %v1423 = vunpack.c.h.b16 %v1335
        %v1424 = vunpack.c.l.b16 %v1336
        %v1425 = vunpack.c.h.b16 %v1336
        %v1426 = vunpack.c.l.b16 %v1337
        %v1427 = vunpack.c.h.b16 %v1337
        %v1428 = vunpack.c.l.b16 %v1338
        %v1429 = vunpack.c.h.b16 %v1338
        %v1430 = vunpack.c.l.b16 %v1339
        %v1431 = vunpack.c.h.b16 %v1339
        %v1432 = vunpack.c.l.b16 %v1340
        %v1433 = vunpack.c.h.b16 %v1340
        %v1434 = vunpack.c.l.b16 %v1341
        %v1435 = vunpack.c.h.b16 %v1341
        %v1436 = vunpack.c.l.b16 %v1342
        %v1437 = vunpack.c.h.b16 %v1342
        %v1438 = vunpack.c.l.b16 %v1343
        %v1439 = vunpack.c.h.b16 %v1343
        %v1440 = vunpack.c.l.b16 %v1344
        %v1441 = vunpack.c.h.b16 %v1344
        %v1442 = vpack.c.b16 %v1388, %v1386
        %v1443 = vpack.c.b16 %v1389, %v1387
        %v1444 = vpack.c.b16 %v1392, %v1390
        %v1445 = vpack.c.b16 %v1393, %v1391
        %v1446 = vpack.c.b16 %v1396, %v1394
        %v1447 = vpack.c.b16 %v1397, %v1395
        %v1448 = vpack.c.b16 %v1400, %v1398
        %v1449 = vpack.c.b16 %v1401, %v1399
        %v1450 = vpack.c.b16 %v1404, %v1402
        %v1451 = vpack.c.b16 %v1405, %v1403
        %v1452 = vpack.c.b16 %v1408, %v1406
        %v1453 = vpack.c.b16 %v1409, %v1407
        %v1454 = vpack.c.b16 %v1412, %v1410
        %v1455 = vpack.c.b16 %v1413, %v1411
        %v1456 = vpack.c.b16 %v1416, %v1414
        %v1457 = vpack.c.b16 %v1417, %v1415
        %v1458 = vpack.c.b16 %v1420, %v1418
        %v1459 = vpack.c.b16 %v1421, %v1419
        %v1460 = vpack.c.b16 %v1424, %v1422
        %v1461 = vpack.c.b16 %v1425, %v1423
        %v1462 = vpack.c.b16 %v1428, %v1426
        %v1463 = vpack.c.b16 %v1429, %v1427
        %v1464 = vpack.c.b16 %v1432, %v1430
        %v1465 = vpack.c.b16 %v1433, %v1431
        %v1466 = vpack.c.b16 %v1436, %v1434
        %v1467 = vpack.c.b16 %v1437, %v1435
        %v1468 = vpack.c.b16 %v1440, %v1438
        %v1469 = vpack.c.b16 %v1441, %v1439
        %v1497 = vand.u32 %v1468, %v1041
        %v1500 = vand.u32 %v1469, %v1041
        %1502 = vmatprep.subr.bf16.mxu0 %v1457
        %1503 = vmatpush1.bf16.msra.mxu0 %v1456
        %1504 = vmatprep.subr.bf16.mxu0 %v1455
        %1505 = vmatpush1.bf16.msra.mxu0 %v1454
        %1506 = vmatprep.subr.bf16.mxu0 %v1453
        %1507 = vmatpush1.bf16.msra.mxu0 %v1452
        %1508 = vmatprep.subr.bf16.mxu0 %v1451
        %1509 = vmatpush1.bf16.msra.mxu0 %v1450
        %1510 = vmatprep.subr.bf16.mxu0 %v1449
        %1511 = vmatpush1.bf16.msra.mxu0 %v1448
        %1512 = vmatprep.subr.bf16.mxu0 %v1447
        %1513 = vmatpush1.bf16.msra.mxu0 %v1446
        %1514 = vmatprep.subr.bf16.mxu0 %v1445
        %1515 = vmatpush1.bf16.msra.mxu0 %v1444
        %1516 = vmatprep.subr.bf16.mxu0 %v1443
        %1517 = vmatpush1.bf16.msra.mxu0 %v1442
        %1518 = vmatprep.subr.bf16.mxu0 0
        %1519 = vmatpush2.bf16.msra.mxu0 0
        %1520 = vmatprep.subr.bf16.mxu0 0
        %1521 = vmatpush2.bf16.msra.mxu0 0
        %1522 = vmatprep.subr.bf16.mxu0 %v1500
        %1523 = vmatpush2.bf16.msra.mxu0 %v1497
        %1524 = vmatprep.subr.bf16.mxu0 %v1467
        %1525 = vmatpush2.bf16.msra.mxu0 %v1466
        %1526 = vmatprep.subr.bf16.mxu0 %v1465
        %1527 = vmatpush2.bf16.msra.mxu0 %v1464
        %1528 = vmatprep.subr.bf16.mxu0 %v1463
        %1529 = vmatpush2.bf16.msra.mxu0 %v1462
        %1530 = vmatprep.subr.bf16.mxu0 %v1461
        %1531 = vmatpush2.bf16.msra.mxu0 %v1460
        %1532 = vmatprep.subr.bf16.mxu0 %v1459
        %1533 = vmatpush2.bf16.msra.mxu0 %v1458
        %1534 = vmatprep.mubr.bf16.mxu0 %v1036
        %1535 = vmatmul.mubr.bf16.gmra.mxu0 %v887
        %v1536 = vpop.f32.mrf.mxu0
        %v1537 = vadd.f32 %v1351, %v1536
        %v1538 = vpop.f32.mrf.mxu0
        %v1539 = vadd.f32 %v1355, %v1538
        %v1540 = vpop.f32.mrf.mxu0
        %v1541 = vpop.f32.mrf.mxu0
        %1542 = vdwg.mxu0
        %v1543 = vld [vmem:[%s3] sm:$0x3]
        %vm1544 = vcmask 195584
        %v1546 = vsel %vm1544, %v1543, 0
        %1548 = vmatprep.subr.mxu0 0.0
        %1549 = vmatpush1.msra.mxu0 0.0
        %1550 = vmatprep.subr.mxu0 0.0
        %1551 = vmatpush1.msra.mxu0 0.0
        %1552 = vmatprep.subr.mxu0 0.0
        %1553 = vmatpush1.msra.mxu0 0.0
        %1554 = vmatprep.subr.mxu0 0.0
        %1555 = vmatpush1.msra.mxu0 0.0
        %1556 = vmatprep.subr.mxu0 0.0
        %1557 = vmatpush1.msra.mxu0 0.0
        %1558 = vmatprep.subr.mxu0 0.0
        %1559 = vmatpush1.msra.mxu0 0.0
        %1560 = vmatprep.subr.mxu0 0.0
        %1561 = vmatpush1.msra.mxu0 0.0
        %1562 = vmatprep.subr.mxu0 0.0
        %1563 = vmatpush1.msra.mxu0 0.0
        %1564 = vmatprep.subr.mxu0 0.0
        %1565 = vmatpush1.msra.mxu0 0.0
        %1566 = vmatprep.subr.mxu0 0.0
        %1567 = vmatpush1.msra.mxu0 0.0
        %1568 = vmatprep.subr.mxu0 0.0
        %1569 = vmatpush1.msra.mxu0 0.0
        %1570 = vmatprep.subr.mxu0 0.0
        %1571 = vmatpush1.msra.mxu0 0.0
        %1572 = vmatprep.subr.mxu0 0.0
        %1573 = vmatpush1.msra.mxu0 0.0
        %1574 = vmatprep.subr.mxu0 %v822
        %1575 = vmatpush1.msra.mxu0 %v821
        %1576 = vmatprep.subr.mxu0 %v820
        %1577 = vmatpush1.msra.mxu0 %v819
        %1578 = vmatprep.subr.mxu0 %v818
        %1579 = vmatpush1.msra.mxu0 %v817
        %1580 = vmatprep.subr.mxu0 0.0
        %1581 = vmatpush2.msra.mxu0 0.0
        %1582 = vmatprep.subr.mxu0 0.0
        %1583 = vmatpush2.msra.mxu0 0.0
        %1584 = vmatprep.subr.mxu0 0.0
        %1585 = vmatpush2.msra.mxu0 0.0
        %1586 = vmatprep.subr.mxu0 0.0
        %1587 = vmatpush2.msra.mxu0 0.0
        %1588 = vmatprep.subr.mxu0 0.0
        %1589 = vmatpush2.msra.mxu0 0.0
        %1590 = vmatprep.subr.mxu0 0.0
        %1591 = vmatpush2.msra.mxu0 0.0
        %1592 = vmatprep.subr.mxu0 0.0
        %1593 = vmatpush2.msra.mxu0 0.0
        %1594 = vmatprep.subr.mxu0 0.0
        %1595 = vmatpush2.msra.mxu0 0.0
        %1596 = vmatprep.subr.mxu0 0.0
        %1597 = vmatpush2.msra.mxu0 0.0
        %1598 = vmatprep.subr.mxu0 0.0
        %1599 = vmatpush2.msra.mxu0 0.0
        %1600 = vmatprep.subr.mxu0 0.0
        %1601 = vmatpush2.msra.mxu0 0.0
        %1602 = vmatprep.subr.mxu0 0.0
        %1603 = vmatpush2.msra.mxu0 0.0
        %1604 = vmatprep.subr.mxu0 0.0
        %1605 = vmatpush2.msra.mxu0 0.0
        %1606 = vmatprep.subr.mxu0 0.0
        %1607 = vmatpush2.msra.mxu0 0.0
        %1608 = vmatprep.subr.mxu0 0.0
        %1609 = vmatpush2.msra.mxu0 0.0
        %1610 = vmatprep.subr.mxu0 0.0
        %1611 = vmatpush2.msra.mxu0 0.0
        %1612 = vmatprep.mubr.f32.mxu0 0.0
        %1613 = vmatmul.mubr.f32.gmra.mxu0 %v1546
        %v1614 = vpop.f32.mrf.mxu0
        %v1615 = vadd.f32 0.0, %v1614
        %v1616 = vpop.f32.mrf.mxu0
        %v1617 = vadd.f32 0.0, %v1616
        %1618 = vdwg.mxu0
        %s1619 = scalar_lea.vmem %s3, 2
        %v1620 = vld [vmem:[%s1619] sm:$0x3]
        %v1622 = vsel %vm1544, %v1620, 0
        %1624 = vmatprep.subr.mxu0 0.0
        %1625 = vmatpush1.msra.mxu0 0.0
        %1626 = vmatprep.subr.mxu0 0.0
        %1627 = vmatpush1.msra.mxu0 0.0
        %1628 = vmatprep.subr.mxu0 0.0
        %1629 = vmatpush1.msra.mxu0 0.0
        %1630 = vmatprep.subr.mxu0 0.0
        %1631 = vmatpush1.msra.mxu0 0.0
        %1632 = vmatprep.subr.mxu0 0.0
        %1633 = vmatpush1.msra.mxu0 0.0
        %1634 = vmatprep.subr.mxu0 0.0
        %1635 = vmatpush1.msra.mxu0 0.0
        %1636 = vmatprep.subr.mxu0 0.0
        %1637 = vmatpush1.msra.mxu0 0.0
        %1638 = vmatprep.subr.mxu0 0.0
        %1639 = vmatpush1.msra.mxu0 0.0
        %1640 = vmatprep.subr.mxu0 0.0
        %1641 = vmatpush1.msra.mxu0 0.0
        %1642 = vmatprep.subr.mxu0 0.0
        %1643 = vmatpush1.msra.mxu0 0.0
        %1644 = vmatprep.subr.mxu0 0.0
        %1645 = vmatpush1.msra.mxu0 0.0
        %1646 = vmatprep.subr.mxu0 0.0
        %1647 = vmatpush1.msra.mxu0 0.0
        %1648 = vmatprep.subr.mxu0 0.0
        %1649 = vmatpush1.msra.mxu0 0.0
        %1650 = vmatprep.subr.mxu0 %v822
        %1651 = vmatpush1.msra.mxu0 %v821
        %1652 = vmatprep.subr.mxu0 %v820
        %1653 = vmatpush1.msra.mxu0 %v819
        %1654 = vmatprep.subr.mxu0 %v818
        %1655 = vmatpush1.msra.mxu0 %v817
        %1656 = vmatprep.subr.mxu0 0.0
        %1657 = vmatpush2.msra.mxu0 0.0
        %1658 = vmatprep.subr.mxu0 0.0
        %1659 = vmatpush2.msra.mxu0 0.0
        %1660 = vmatprep.subr.mxu0 0.0
        %1661 = vmatpush2.msra.mxu0 0.0
        %1662 = vmatprep.subr.mxu0 0.0
        %1663 = vmatpush2.msra.mxu0 0.0
        %1664 = vmatprep.subr.mxu0 0.0
        %1665 = vmatpush2.msra.mxu0 0.0
        %1666 = vmatprep.subr.mxu0 0.0
        %1667 = vmatpush2.msra.mxu0 0.0
        %1668 = vmatprep.subr.mxu0 0.0
        %1669 = vmatpush2.msra.mxu0 0.0
        %1670 = vmatprep.subr.mxu0 0.0
        %1671 = vmatpush2.msra.mxu0 0.0
        %1672 = vmatprep.subr.mxu0 0.0
        %1673 = vmatpush2.msra.mxu0 0.0
        %1674 = vmatprep.subr.mxu0 0.0
        %1675 = vmatpush2.msra.mxu0 0.0
        %1676 = vmatprep.subr.mxu0 0.0
        %1677 = vmatpush2.msra.mxu0 0.0
        %1678 = vmatprep.subr.mxu0 0.0
        %1679 = vmatpush2.msra.mxu0 0.0
        %1680 = vmatprep.subr.mxu0 0.0
        %1681 = vmatpush2.msra.mxu0 0.0
        %1682 = vmatprep.subr.mxu0 0.0
        %1683 = vmatpush2.msra.mxu0 0.0
        %1684 = vmatprep.subr.mxu0 0.0
        %1685 = vmatpush2.msra.mxu0 0.0
        %1686 = vmatprep.subr.mxu0 0.0
        %1687 = vmatpush2.msra.mxu0 0.0
        %1688 = vmatprep.mubr.f32.mxu0 0.0
        %1689 = vmatmul.mubr.f32.gmra.mxu0 %v1622
        %v1690 = vpop.f32.mrf.mxu0
        %v1691 = vadd.f32 0.0, %v1690
        %v1692 = vpop.f32.mrf.mxu0
        %v1693 = vadd.f32 0.0, %v1692
        %1694 = vdwg.mxu0
        %s1695 = scalar_lea.vmem %s3, 4
        %v1696 = vld [vmem:[%s1695] sm:$0x3]
        %v1698 = vsel %vm1544, %v1696, 0
        %1700 = vmatprep.subr.mxu0 0.0
        %1701 = vmatpush1.msra.mxu0 0.0
        %1702 = vmatprep.subr.mxu0 0.0
        %1703 = vmatpush1.msra.mxu0 0.0
        %1704 = vmatprep.subr.mxu0 0.0
        %1705 = vmatpush1.msra.mxu0 0.0
        %1706 = vmatprep.subr.mxu0 0.0
        %1707 = vmatpush1.msra.mxu0 0.0
        %1708 = vmatprep.subr.mxu0 0.0
        %1709 = vmatpush1.msra.mxu0 0.0
        %1710 = vmatprep.subr.mxu0 0.0
        %1711 = vmatpush1.msra.mxu0 0.0
        %1712 = vmatprep.subr.mxu0 0.0
        %1713 = vmatpush1.msra.mxu0 0.0
        %1714 = vmatprep.subr.mxu0 0.0
        %1715 = vmatpush1.msra.mxu0 0.0
        %1716 = vmatprep.subr.mxu0 0.0
        %1717 = vmatpush1.msra.mxu0 0.0
        %1718 = vmatprep.subr.mxu0 0.0
        %1719 = vmatpush1.msra.mxu0 0.0
        %1720 = vmatprep.subr.mxu0 0.0
        %1721 = vmatpush1.msra.mxu0 0.0
        %1722 = vmatprep.subr.mxu0 0.0
        %1723 = vmatpush1.msra.mxu0 0.0
        %1724 = vmatprep.subr.mxu0 0.0
        %1725 = vmatpush1.msra.mxu0 0.0
        %1726 = vmatprep.subr.mxu0 %v822
        %1727 = vmatpush1.msra.mxu0 %v821
        %1728 = vmatprep.subr.mxu0 %v820
        %1729 = vmatpush1.msra.mxu0 %v819
        %1730 = vmatprep.subr.mxu0 %v818
        %1731 = vmatpush1.msra.mxu0 %v817
        %1732 = vmatprep.subr.mxu0 0.0
        %1733 = vmatpush2.msra.mxu0 0.0
        %1734 = vmatprep.subr.mxu0 0.0
        %1735 = vmatpush2.msra.mxu0 0.0
        %1736 = vmatprep.subr.mxu0 0.0
        %1737 = vmatpush2.msra.mxu0 0.0
        %1738 = vmatprep.subr.mxu0 0.0
        %1739 = vmatpush2.msra.mxu0 0.0
        %1740 = vmatprep.subr.mxu0 0.0
        %1741 = vmatpush2.msra.mxu0 0.0
        %1742 = vmatprep.subr.mxu0 0.0
        %1743 = vmatpush2.msra.mxu0 0.0
        %1744 = vmatprep.subr.mxu0 0.0
        %1745 = vmatpush2.msra.mxu0 0.0
        %1746 = vmatprep.subr.mxu0 0.0
        %1747 = vmatpush2.msra.mxu0 0.0
        %1748 = vmatprep.subr.mxu0 0.0
        %1749 = vmatpush2.msra.mxu0 0.0
        %1750 = vmatprep.subr.mxu0 0.0
        %1751 = vmatpush2.msra.mxu0 0.0
        %1752 = vmatprep.subr.mxu0 0.0
        %1753 = vmatpush2.msra.mxu0 0.0
        %1754 = vmatprep.subr.mxu0 0.0
        %1755 = vmatpush2.msra.mxu0 0.0
        %1756 = vmatprep.subr.mxu0 0.0
        %1757 = vmatpush2.msra.mxu0 0.0
        %1758 = vmatprep.subr.mxu0 0.0
        %1759 = vmatpush2.msra.mxu0 0.0
        %1760 = vmatprep.subr.mxu0 0.0
        %1761 = vmatpush2.msra.mxu0 0.0
        %1762 = vmatprep.subr.mxu0 0.0
        %1763 = vmatpush2.msra.mxu0 0.0
        %1764 = vmatprep.mubr.f32.mxu0 0.0
        %1765 = vmatmul.mubr.f32.gmra.mxu0 %v1698
        %v1766 = vpop.f32.mrf.mxu0
        %v1767 = vadd.f32 0.0, %v1766
        %v1768 = vpop.f32.mrf.mxu0
        %v1769 = vadd.f32 0.0, %v1768
        %1770 = vdwg.mxu0
        %s1771 = scalar_lea.vmem %s3, 6
        %v1772 = vld [vmem:[%s1771] sm:$0x3]
        %v1774 = vsel %vm1544, %v1772, 0
        %1776 = vmatprep.subr.mxu0 0.0
        %1777 = vmatpush1.msra.mxu0 0.0
        %1778 = vmatprep.subr.mxu0 0.0
        %1779 = vmatpush1.msra.mxu0 0.0
        %1780 = vmatprep.subr.mxu0 0.0
        %1781 = vmatpush1.msra.mxu0 0.0
        %1782 = vmatprep.subr.mxu0 0.0
        %1783 = vmatpush1.msra.mxu0 0.0
        %1784 = vmatprep.subr.mxu0 0.0
        %1785 = vmatpush1.msra.mxu0 0.0
        %1786 = vmatprep.subr.mxu0 0.0
        %1787 = vmatpush1.msra.mxu0 0.0
        %1788 = vmatprep.subr.mxu0 0.0
        %1789 = vmatpush1.msra.mxu0 0.0
        %1790 = vmatprep.subr.mxu0 0.0
        %1791 = vmatpush1.msra.mxu0 0.0
        %1792 = vmatprep.subr.mxu0 0.0
        %1793 = vmatpush1.msra.mxu0 0.0
        %1794 = vmatprep.subr.mxu0 0.0
        %1795 = vmatpush1.msra.mxu0 0.0
        %1796 = vmatprep.subr.mxu0 0.0
        %1797 = vmatpush1.msra.mxu0 0.0
        %1798 = vmatprep.subr.mxu0 0.0
        %1799 = vmatpush1.msra.mxu0 0.0
        %1800 = vmatprep.subr.mxu0 0.0
        %1801 = vmatpush1.msra.mxu0 0.0
        %1802 = vmatprep.subr.mxu0 %v822
        %1803 = vmatpush1.msra.mxu0 %v821
        %1804 = vmatprep.subr.mxu0 %v820
        %1805 = vmatpush1.msra.mxu0 %v819
        %1806 = vmatprep.subr.mxu0 %v818
        %1807 = vmatpush1.msra.mxu0 %v817
        %1808 = vmatprep.subr.mxu0 0.0
        %1809 = vmatpush2.msra.mxu0 0.0
        %1810 = vmatprep.subr.mxu0 0.0
        %1811 = vmatpush2.msra.mxu0 0.0
        %1812 = vmatprep.subr.mxu0 0.0
        %1813 = vmatpush2.msra.mxu0 0.0
        %1814 = vmatprep.subr.mxu0 0.0
        %1815 = vmatpush2.msra.mxu0 0.0
        %1816 = vmatprep.subr.mxu0 0.0
        %1817 = vmatpush2.msra.mxu0 0.0
        %1818 = vmatprep.subr.mxu0 0.0
        %1819 = vmatpush2.msra.mxu0 0.0
        %1820 = vmatprep.subr.mxu0 0.0
        %1821 = vmatpush2.msra.mxu0 0.0
        %1822 = vmatprep.subr.mxu0 0.0
        %1823 = vmatpush2.msra.mxu0 0.0
        %1824 = vmatprep.subr.mxu0 0.0
        %1825 = vmatpush2.msra.mxu0 0.0
        %1826 = vmatprep.subr.mxu0 0.0
        %1827 = vmatpush2.msra.mxu0 0.0
        %1828 = vmatprep.subr.mxu0 0.0
        %1829 = vmatpush2.msra.mxu0 0.0
        %1830 = vmatprep.subr.mxu0 0.0
        %1831 = vmatpush2.msra.mxu0 0.0
        %1832 = vmatprep.subr.mxu0 0.0
        %1833 = vmatpush2.msra.mxu0 0.0
        %1834 = vmatprep.subr.mxu0 0.0
        %1835 = vmatpush2.msra.mxu0 0.0
        %1836 = vmatprep.subr.mxu0 0.0
        %1837 = vmatpush2.msra.mxu0 0.0
        %1838 = vmatprep.subr.mxu0 0.0
        %1839 = vmatpush2.msra.mxu0 0.0
        %1840 = vmatprep.mubr.f32.mxu0 0.0
        %1841 = vmatmul.mubr.f32.gmra.mxu0 %v1774
        %v1842 = vpop.f32.mrf.mxu0
        %v1843 = vadd.f32 0.0, %v1842
        %v1844 = vpop.f32.mrf.mxu0
        %v1845 = vadd.f32 0.0, %v1844
        %1846 = vdwg.mxu0
        %v1847 = vmul.f32 %v1615, %v1083
        %v1848 = vmul.f32 %v1617, %v1085
        %v1849 = vmul.f32 %v1691, %v1310
        %v1850 = vmul.f32 %v1693, %v1312
        %v1851 = vadd.f32 %v1847, %v1849
        %v1852 = vadd.f32 %v1848, %v1850
        %v1853 = vmul.f32 %v1767, %v1537
        %v1854 = vmul.f32 %v1769, %v1539
        %v1855 = vadd.f32 %v1851, %v1853
        %v1856 = vadd.f32 %v1852, %v1854
        %v1857 = vadd.f32 %v1855, %v1843
        %v1858 = vadd.f32 %v1856, %v1845
        %v1861 = vcombine.low %v1857, %v1858
        %v1863 = vunpack.c.l.s4 1983009808
        %v1864 = vunpack.c.0.s8 %v1863
        %v1865 = vlaneseq
        %v1866 = vshrl.u32 %v1865, 7
        %v1867 = vsub.s32 %v1864, %v1866
        %v1868 = vrot.slane %v1861, %v1867
        %1870 = vst [vmem:[%s789] sm:$0xf] %v1868
        %1871 = vmatprep.subr.mxu0 0.0
        %1872 = vmatpush1.xpose.msra.mxu0 0.0
        %1873 = vmatprep.subr.mxu0 0.0
        %1874 = vmatpush1.xpose.msra.mxu0 0.0
        %1875 = vmatprep.subr.mxu0 0.0
        %1876 = vmatpush1.xpose.msra.mxu0 0.0
        %1877 = vmatprep.subr.mxu0 0.0
        %1878 = vmatpush1.xpose.msra.mxu0 0.0
        %1879 = vmatprep.subr.mxu0 0.0
        %1880 = vmatpush1.xpose.msra.mxu0 0.0
        %1881 = vmatprep.subr.mxu0 0.0
        %1882 = vmatpush1.xpose.msra.mxu0 0.0
        %1883 = vmatprep.subr.mxu0 0.0
        %1884 = vmatpush1.xpose.msra.mxu0 0.0
        %1885 = vmatprep.subr.mxu0 0.0
        %1886 = vmatpush1.xpose.msra.mxu0 0.0
        %1887 = vmatprep.subr.mxu0 0.0
        %1888 = vmatpush1.xpose.msra.mxu0 0.0
        %1889 = vmatprep.subr.mxu0 0.0
        %1890 = vmatpush1.xpose.msra.mxu0 0.0
        %1891 = vmatprep.subr.mxu0 0.0
        %1892 = vmatpush1.xpose.msra.mxu0 0.0
        %1893 = vmatprep.subr.mxu0 0.0
        %1894 = vmatpush1.xpose.msra.mxu0 0.0
        %1895 = vmatprep.subr.mxu0 0.0
        %1896 = vmatpush1.xpose.msra.mxu0 0.0
        %1897 = vmatprep.subr.mxu0 %v831
        %1898 = vmatpush1.xpose.msra.mxu0 %v830
        %1899 = vmatprep.subr.mxu0 %v829
        %1900 = vmatpush1.xpose.msra.mxu0 %v828
        %1901 = vmatprep.subr.mxu0 %v827
        %1902 = vmatpush1.xpose.msra.mxu0 %v826
        %1903 = vmatprep.subr.mxu0 0.0
        %1904 = vmatpush2.xpose.msra.mxu0 0.0
        %1905 = vmatprep.subr.mxu0 0.0
        %1906 = vmatpush2.xpose.msra.mxu0 0.0
        %1907 = vmatprep.subr.mxu0 0.0
        %1908 = vmatpush2.xpose.msra.mxu0 0.0
        %1909 = vmatprep.subr.mxu0 0.0
        %1910 = vmatpush2.xpose.msra.mxu0 0.0
        %1911 = vmatprep.subr.mxu0 0.0
        %1912 = vmatpush2.xpose.msra.mxu0 0.0
        %1913 = vmatprep.subr.mxu0 0.0
        %1914 = vmatpush2.xpose.msra.mxu0 0.0
        %1915 = vmatprep.subr.mxu0 0.0
        %1916 = vmatpush2.xpose.msra.mxu0 0.0
        %1917 = vmatprep.subr.mxu0 0.0
        %1918 = vmatpush2.xpose.msra.mxu0 0.0
        %1919 = vmatprep.subr.mxu0 0.0
        %1920 = vmatpush2.xpose.msra.mxu0 0.0
        %1921 = vmatprep.subr.mxu0 0.0
        %1922 = vmatpush2.xpose.msra.mxu0 0.0
        %1923 = vmatprep.subr.mxu0 0.0
        %1924 = vmatpush2.xpose.msra.mxu0 0.0
        %1925 = vmatprep.subr.mxu0 0.0
        %1926 = vmatpush2.xpose.msra.mxu0 0.0
        %1927 = vmatprep.subr.mxu0 0.0
        %1928 = vmatpush2.xpose.msra.mxu0 0.0
        %1929 = vmatprep.subr.mxu0 0.0
        %1930 = vmatpush2.xpose.msra.mxu0 0.0
        %1931 = vmatprep.subr.mxu0 0.0
        %1932 = vmatpush2.xpose.msra.mxu0 0.0
        %1933 = vmatprep.subr.mxu0 0.0
        %1934 = vmatpush2.xpose.msra.mxu0 0.0
        %1935 = vmatprep.mubr.f32.mxu0 %v1858
        %1936 = vmatmul.mubr.f32.gmra.mxu0 %v1857
        %v1937 = vpop.f32.mrf.mxu0
        %v1938 = vadd.f32 0.0, %v1937
        %v1939 = vpop.f32.mrf.mxu0
        %1940 = vdwg.mxu0
        %vm1941 = vcmask 132096
        %1942 = vst.msk [vmem:[%s811] sm:$0x3] %vm1941, %v1938
        %s1943 = scalar_lea.vmem %s3, 8
        %v1944 = vld [vmem:[%s1943] sm:$0x3]
        %v1946 = vsel %vm1544, %v1944, 0
        %1948 = vmatprep.subr.mxu0 0.0
        %1949 = vmatpush1.msra.mxu0 0.0
        %1950 = vmatprep.subr.mxu0 0.0
        %1951 = vmatpush1.msra.mxu0 0.0
        %1952 = vmatprep.subr.mxu0 0.0
        %1953 = vmatpush1.msra.mxu0 0.0
        %1954 = vmatprep.subr.mxu0 0.0
        %1955 = vmatpush1.msra.mxu0 0.0
        %1956 = vmatprep.subr.mxu0 0.0
        %1957 = vmatpush1.msra.mxu0 0.0
        %1958 = vmatprep.subr.mxu0 0.0
        %1959 = vmatpush1.msra.mxu0 0.0
        %1960 = vmatprep.subr.mxu0 0.0
        %1961 = vmatpush1.msra.mxu0 0.0
        %1962 = vmatprep.subr.mxu0 0.0
        %1963 = vmatpush1.msra.mxu0 0.0
        %1964 = vmatprep.subr.mxu0 0.0
        %1965 = vmatpush1.msra.mxu0 0.0
        %1966 = vmatprep.subr.mxu0 0.0
        %1967 = vmatpush1.msra.mxu0 0.0
        %1968 = vmatprep.subr.mxu0 0.0
        %1969 = vmatpush1.msra.mxu0 0.0
        %1970 = vmatprep.subr.mxu0 0.0
        %1971 = vmatpush1.msra.mxu0 0.0
        %1972 = vmatprep.subr.mxu0 0.0
        %1973 = vmatpush1.msra.mxu0 0.0
        %1974 = vmatprep.subr.mxu0 %v822
        %1975 = vmatpush1.msra.mxu0 %v821
        %1976 = vmatprep.subr.mxu0 %v820
        %1977 = vmatpush1.msra.mxu0 %v819
        %1978 = vmatprep.subr.mxu0 %v818
        %1979 = vmatpush1.msra.mxu0 %v817
        %1980 = vmatprep.subr.mxu0 0.0
        %1981 = vmatpush2.msra.mxu0 0.0
        %1982 = vmatprep.subr.mxu0 0.0
        %1983 = vmatpush2.msra.mxu0 0.0
        %1984 = vmatprep.subr.mxu0 0.0
        %1985 = vmatpush2.msra.mxu0 0.0
        %1986 = vmatprep.subr.mxu0 0.0
        %1987 = vmatpush2.msra.mxu0 0.0
        %1988 = vmatprep.subr.mxu0 0.0
        %1989 = vmatpush2.msra.mxu0 0.0
        %1990 = vmatprep.subr.mxu0 0.0
        %1991 = vmatpush2.msra.mxu0 0.0
        %1992 = vmatprep.subr.mxu0 0.0
        %1993 = vmatpush2.msra.mxu0 0.0
        %1994 = vmatprep.subr.mxu0 0.0
        %1995 = vmatpush2.msra.mxu0 0.0
        %1996 = vmatprep.subr.mxu0 0.0
        %1997 = vmatpush2.msra.mxu0 0.0
        %1998 = vmatprep.subr.mxu0 0.0
        %1999 = vmatpush2.msra.mxu0 0.0
        %2000 = vmatprep.subr.mxu0 0.0
        %2001 = vmatpush2.msra.mxu0 0.0
        %2002 = vmatprep.subr.mxu0 0.0
        %2003 = vmatpush2.msra.mxu0 0.0
        %2004 = vmatprep.subr.mxu0 0.0
        %2005 = vmatpush2.msra.mxu0 0.0
        %2006 = vmatprep.subr.mxu0 0.0
        %2007 = vmatpush2.msra.mxu0 0.0
        %2008 = vmatprep.subr.mxu0 0.0
        %2009 = vmatpush2.msra.mxu0 0.0
        %2010 = vmatprep.subr.mxu0 0.0
        %2011 = vmatpush2.msra.mxu0 0.0
        %2012 = vmatprep.mubr.f32.mxu0 0.0
        %2013 = vmatmul.mubr.f32.gmra.mxu0 %v1946
        %v2014 = vpop.f32.mrf.mxu0
        %v2015 = vadd.f32 0.0, %v2014
        %v2016 = vpop.f32.mrf.mxu0
        %v2017 = vadd.f32 0.0, %v2016
        %2018 = vdwg.mxu0
        %s2019 = scalar_lea.vmem %s3, 10
        %v2020 = vld [vmem:[%s2019] sm:$0x3]
        %v2022 = vsel %vm1544, %v2020, 0
        %2024 = vmatprep.subr.mxu0 0.0
        %2025 = vmatpush1.msra.mxu0 0.0
        %2026 = vmatprep.subr.mxu0 0.0
        %2027 = vmatpush1.msra.mxu0 0.0
        %2028 = vmatprep.subr.mxu0 0.0
        %2029 = vmatpush1.msra.mxu0 0.0
        %2030 = vmatprep.subr.mxu0 0.0
        %2031 = vmatpush1.msra.mxu0 0.0
        %2032 = vmatprep.subr.mxu0 0.0
        %2033 = vmatpush1.msra.mxu0 0.0
        %2034 = vmatprep.subr.mxu0 0.0
        %2035 = vmatpush1.msra.mxu0 0.0
        %2036 = vmatprep.subr.mxu0 0.0
        %2037 = vmatpush1.msra.mxu0 0.0
        %2038 = vmatprep.subr.mxu0 0.0
        %2039 = vmatpush1.msra.mxu0 0.0
        %2040 = vmatprep.subr.mxu0 0.0
        %2041 = vmatpush1.msra.mxu0 0.0
        %2042 = vmatprep.subr.mxu0 0.0
        %2043 = vmatpush1.msra.mxu0 0.0
        %2044 = vmatprep.subr.mxu0 0.0
        %2045 = vmatpush1.msra.mxu0 0.0
        %2046 = vmatprep.subr.mxu0 0.0
        %2047 = vmatpush1.msra.mxu0 0.0
        %2048 = vmatprep.subr.mxu0 0.0
        %2049 = vmatpush1.msra.mxu0 0.0
        %2050 = vmatprep.subr.mxu0 %v822
        %2051 = vmatpush1.msra.mxu0 %v821
        %2052 = vmatprep.subr.mxu0 %v820
        %2053 = vmatpush1.msra.mxu0 %v819
        %2054 = vmatprep.subr.mxu0 %v818
        %2055 = vmatpush1.msra.mxu0 %v817
        %2056 = vmatprep.subr.mxu0 0.0
        %2057 = vmatpush2.msra.mxu0 0.0
        %2058 = vmatprep.subr.mxu0 0.0
        %2059 = vmatpush2.msra.mxu0 0.0
        %2060 = vmatprep.subr.mxu0 0.0
        %2061 = vmatpush2.msra.mxu0 0.0
        %2062 = vmatprep.subr.mxu0 0.0
        %2063 = vmatpush2.msra.mxu0 0.0
        %2064 = vmatprep.subr.mxu0 0.0
        %2065 = vmatpush2.msra.mxu0 0.0
        %2066 = vmatprep.subr.mxu0 0.0
        %2067 = vmatpush2.msra.mxu0 0.0
        %2068 = vmatprep.subr.mxu0 0.0
        %2069 = vmatpush2.msra.mxu0 0.0
        %2070 = vmatprep.subr.mxu0 0.0
        %2071 = vmatpush2.msra.mxu0 0.0
        %2072 = vmatprep.subr.mxu0 0.0
        %2073 = vmatpush2.msra.mxu0 0.0
        %2074 = vmatprep.subr.mxu0 0.0
        %2075 = vmatpush2.msra.mxu0 0.0
        %2076 = vmatprep.subr.mxu0 0.0
        %2077 = vmatpush2.msra.mxu0 0.0
        %2078 = vmatprep.subr.mxu0 0.0
        %2079 = vmatpush2.msra.mxu0 0.0
        %2080 = vmatprep.subr.mxu0 0.0
        %2081 = vmatpush2.msra.mxu0 0.0
        %2082 = vmatprep.subr.mxu0 0.0
        %2083 = vmatpush2.msra.mxu0 0.0
        %2084 = vmatprep.subr.mxu0 0.0
        %2085 = vmatpush2.msra.mxu0 0.0
        %2086 = vmatprep.subr.mxu0 0.0
        %2087 = vmatpush2.msra.mxu0 0.0
        %2088 = vmatprep.mubr.f32.mxu0 0.0
        %2089 = vmatmul.mubr.f32.gmra.mxu0 %v2022
        %v2090 = vpop.f32.mrf.mxu0
        %v2091 = vadd.f32 0.0, %v2090
        %v2092 = vpop.f32.mrf.mxu0
        %v2093 = vadd.f32 0.0, %v2092
        %2094 = vdwg.mxu0
        %s2095 = scalar_lea.vmem %s3, 12
        %v2096 = vld [vmem:[%s2095] sm:$0x3]
        %v2098 = vsel %vm1544, %v2096, 0
        %2100 = vmatprep.subr.mxu0 0.0
        %2101 = vmatpush1.msra.mxu0 0.0
        %2102 = vmatprep.subr.mxu0 0.0
        %2103 = vmatpush1.msra.mxu0 0.0
        %2104 = vmatprep.subr.mxu0 0.0
        %2105 = vmatpush1.msra.mxu0 0.0
        %2106 = vmatprep.subr.mxu0 0.0
        %2107 = vmatpush1.msra.mxu0 0.0
        %2108 = vmatprep.subr.mxu0 0.0
        %2109 = vmatpush1.msra.mxu0 0.0
        %2110 = vmatprep.subr.mxu0 0.0
        %2111 = vmatpush1.msra.mxu0 0.0
        %2112 = vmatprep.subr.mxu0 0.0
        %2113 = vmatpush1.msra.mxu0 0.0
        %2114 = vmatprep.subr.mxu0 0.0
        %2115 = vmatpush1.msra.mxu0 0.0
        %2116 = vmatprep.subr.mxu0 0.0
        %2117 = vmatpush1.msra.mxu0 0.0
        %2118 = vmatprep.subr.mxu0 0.0
        %2119 = vmatpush1.msra.mxu0 0.0
        %2120 = vmatprep.subr.mxu0 0.0
        %2121 = vmatpush1.msra.mxu0 0.0
        %2122 = vmatprep.subr.mxu0 0.0
        %2123 = vmatpush1.msra.mxu0 0.0
        %2124 = vmatprep.subr.mxu0 0.0
        %2125 = vmatpush1.msra.mxu0 0.0
        %2126 = vmatprep.subr.mxu0 %v822
        %2127 = vmatpush1.msra.mxu0 %v821
        %2128 = vmatprep.subr.mxu0 %v820
        %2129 = vmatpush1.msra.mxu0 %v819
        %2130 = vmatprep.subr.mxu0 %v818
        %2131 = vmatpush1.msra.mxu0 %v817
        %2132 = vmatprep.subr.mxu0 0.0
        %2133 = vmatpush2.msra.mxu0 0.0
        %2134 = vmatprep.subr.mxu0 0.0
        %2135 = vmatpush2.msra.mxu0 0.0
        %2136 = vmatprep.subr.mxu0 0.0
        %2137 = vmatpush2.msra.mxu0 0.0
        %2138 = vmatprep.subr.mxu0 0.0
        %2139 = vmatpush2.msra.mxu0 0.0
        %2140 = vmatprep.subr.mxu0 0.0
        %2141 = vmatpush2.msra.mxu0 0.0
        %2142 = vmatprep.subr.mxu0 0.0
        %2143 = vmatpush2.msra.mxu0 0.0
        %2144 = vmatprep.subr.mxu0 0.0
        %2145 = vmatpush2.msra.mxu0 0.0
        %2146 = vmatprep.subr.mxu0 0.0
        %2147 = vmatpush2.msra.mxu0 0.0
        %2148 = vmatprep.subr.mxu0 0.0
        %2149 = vmatpush2.msra.mxu0 0.0
        %2150 = vmatprep.subr.mxu0 0.0
        %2151 = vmatpush2.msra.mxu0 0.0
        %2152 = vmatprep.subr.mxu0 0.0
        %2153 = vmatpush2.msra.mxu0 0.0
        %2154 = vmatprep.subr.mxu0 0.0
        %2155 = vmatpush2.msra.mxu0 0.0
        %2156 = vmatprep.subr.mxu0 0.0
        %2157 = vmatpush2.msra.mxu0 0.0
        %2158 = vmatprep.subr.mxu0 0.0
        %2159 = vmatpush2.msra.mxu0 0.0
        %2160 = vmatprep.subr.mxu0 0.0
        %2161 = vmatpush2.msra.mxu0 0.0
        %2162 = vmatprep.subr.mxu0 0.0
        %2163 = vmatpush2.msra.mxu0 0.0
        %2164 = vmatprep.mubr.f32.mxu0 0.0
        %2165 = vmatmul.mubr.f32.gmra.mxu0 %v2098
        %v2166 = vpop.f32.mrf.mxu0
        %v2167 = vadd.f32 0.0, %v2166
        %v2168 = vpop.f32.mrf.mxu0
        %v2169 = vadd.f32 0.0, %v2168
        %2170 = vdwg.mxu0
        %s2171 = scalar_lea.vmem %s3, 14
        %v2172 = vld [vmem:[%s2171] sm:$0x3]
        %v2174 = vsel %vm1544, %v2172, 0
        %2176 = vmatprep.subr.mxu0 0.0
        %2177 = vmatpush1.msra.mxu0 0.0
        %2178 = vmatprep.subr.mxu0 0.0
        %2179 = vmatpush1.msra.mxu0 0.0
        %2180 = vmatprep.subr.mxu0 0.0
        %2181 = vmatpush1.msra.mxu0 0.0
        %2182 = vmatprep.subr.mxu0 0.0
        %2183 = vmatpush1.msra.mxu0 0.0
        %2184 = vmatprep.subr.mxu0 0.0
        %2185 = vmatpush1.msra.mxu0 0.0
        %2186 = vmatprep.subr.mxu0 0.0
        %2187 = vmatpush1.msra.mxu0 0.0
        %2188 = vmatprep.subr.mxu0 0.0
        %2189 = vmatpush1.msra.mxu0 0.0
        %2190 = vmatprep.subr.mxu0 0.0
        %2191 = vmatpush1.msra.mxu0 0.0
        %2192 = vmatprep.subr.mxu0 0.0
        %2193 = vmatpush1.msra.mxu0 0.0
        %2194 = vmatprep.subr.mxu0 0.0
        %2195 = vmatpush1.msra.mxu0 0.0
        %2196 = vmatprep.subr.mxu0 0.0
        %2197 = vmatpush1.msra.mxu0 0.0
        %2198 = vmatprep.subr.mxu0 0.0
        %2199 = vmatpush1.msra.mxu0 0.0
        %2200 = vmatprep.subr.mxu0 0.0
        %2201 = vmatpush1.msra.mxu0 0.0
        %2202 = vmatprep.subr.mxu0 %v822
        %2203 = vmatpush1.msra.mxu0 %v821
        %2204 = vmatprep.subr.mxu0 %v820
        %2205 = vmatpush1.msra.mxu0 %v819
        %2206 = vmatprep.subr.mxu0 %v818
        %2207 = vmatpush1.msra.mxu0 %v817
        %2208 = vmatprep.subr.mxu0 0.0
        %2209 = vmatpush2.msra.mxu0 0.0
        %2210 = vmatprep.subr.mxu0 0.0
        %2211 = vmatpush2.msra.mxu0 0.0
        %2212 = vmatprep.subr.mxu0 0.0
        %2213 = vmatpush2.msra.mxu0 0.0
        %2214 = vmatprep.subr.mxu0 0.0
        %2215 = vmatpush2.msra.mxu0 0.0
        %2216 = vmatprep.subr.mxu0 0.0
        %2217 = vmatpush2.msra.mxu0 0.0
        %2218 = vmatprep.subr.mxu0 0.0
        %2219 = vmatpush2.msra.mxu0 0.0
        %2220 = vmatprep.subr.mxu0 0.0
        %2221 = vmatpush2.msra.mxu0 0.0
        %2222 = vmatprep.subr.mxu0 0.0
        %2223 = vmatpush2.msra.mxu0 0.0
        %2224 = vmatprep.subr.mxu0 0.0
        %2225 = vmatpush2.msra.mxu0 0.0
        %2226 = vmatprep.subr.mxu0 0.0
        %2227 = vmatpush2.msra.mxu0 0.0
        %2228 = vmatprep.subr.mxu0 0.0
        %2229 = vmatpush2.msra.mxu0 0.0
        %2230 = vmatprep.subr.mxu0 0.0
        %2231 = vmatpush2.msra.mxu0 0.0
        %2232 = vmatprep.subr.mxu0 0.0
        %2233 = vmatpush2.msra.mxu0 0.0
        %2234 = vmatprep.subr.mxu0 0.0
        %2235 = vmatpush2.msra.mxu0 0.0
        %2236 = vmatprep.subr.mxu0 0.0
        %2237 = vmatpush2.msra.mxu0 0.0
        %2238 = vmatprep.subr.mxu0 0.0
        %2239 = vmatpush2.msra.mxu0 0.0
        %2240 = vmatprep.mubr.f32.mxu0 0.0
        %2241 = vmatmul.mubr.f32.gmra.mxu0 %v2174
        %v2242 = vpop.f32.mrf.mxu0
        %v2243 = vadd.f32 0.0, %v2242
        %v2244 = vpop.f32.mrf.mxu0
        %v2245 = vadd.f32 0.0, %v2244
        %2246 = vdwg.mxu0
        %v2247 = vmul.f32 %v2015, %v1083
        %v2248 = vmul.f32 %v2017, %v1085
        %v2249 = vmul.f32 %v2091, %v1310
        %v2250 = vmul.f32 %v2093, %v1312
        %v2251 = vadd.f32 %v2247, %v2249
        %v2252 = vadd.f32 %v2248, %v2250
        %v2253 = vmul.f32 %v2167, %v1537
        %v2254 = vmul.f32 %v2169, %v1539
        %v2255 = vadd.f32 %v2251, %v2253
        %v2256 = vadd.f32 %v2252, %v2254
        %v2257 = vadd.f32 %v2255, %v2243
        %v2258 = vadd.f32 %v2256, %v2245
        %v2261 = vcombine.low %v2257, %v2258
        %v2263 = vunpack.c.l.s4 1983009808
        %v2264 = vunpack.c.0.s8 %v2263
        %v2265 = vlaneseq
        %v2266 = vshrl.u32 %v2265, 7
        %v2267 = vsub.s32 %v2264, %v2266
        %v2268 = vrot.slane %v2261, %v2267
        %s2270 = scalar_lea.vmem %s789, 4 [#allocation5]
        %2271 = vst [vmem:[%s2270] sm:$0xf] %v2268
        %2272 = vmatprep.subr.mxu0 0.0
        %2273 = vmatpush1.xpose.msra.mxu0 0.0
        %2274 = vmatprep.subr.mxu0 0.0
        %2275 = vmatpush1.xpose.msra.mxu0 0.0
        %2276 = vmatprep.subr.mxu0 0.0
        %2277 = vmatpush1.xpose.msra.mxu0 0.0
        %2278 = vmatprep.subr.mxu0 0.0
        %2279 = vmatpush1.xpose.msra.mxu0 0.0
        %2280 = vmatprep.subr.mxu0 0.0
        %2281 = vmatpush1.xpose.msra.mxu0 0.0
        %2282 = vmatprep.subr.mxu0 0.0
        %2283 = vmatpush1.xpose.msra.mxu0 0.0
        %2284 = vmatprep.subr.mxu0 0.0
        %2285 = vmatpush1.xpose.msra.mxu0 0.0
        %2286 = vmatprep.subr.mxu0 0.0
        %2287 = vmatpush1.xpose.msra.mxu0 0.0
        %2288 = vmatprep.subr.mxu0 0.0
        %2289 = vmatpush1.xpose.msra.mxu0 0.0
        %2290 = vmatprep.subr.mxu0 0.0
        %2291 = vmatpush1.xpose.msra.mxu0 0.0
        %2292 = vmatprep.subr.mxu0 0.0
        %2293 = vmatpush1.xpose.msra.mxu0 0.0
        %2294 = vmatprep.subr.mxu0 0.0
        %2295 = vmatpush1.xpose.msra.mxu0 0.0
        %2296 = vmatprep.subr.mxu0 0.0
        %2297 = vmatpush1.xpose.msra.mxu0 0.0
        %2298 = vmatprep.subr.mxu0 %v831
        %2299 = vmatpush1.xpose.msra.mxu0 %v830
        %2300 = vmatprep.subr.mxu0 %v829
        %2301 = vmatpush1.xpose.msra.mxu0 %v828
        %2302 = vmatprep.subr.mxu0 %v827
        %2303 = vmatpush1.xpose.msra.mxu0 %v826
        %2304 = vmatprep.subr.mxu0 0.0
        %2305 = vmatpush2.xpose.msra.mxu0 0.0
        %2306 = vmatprep.subr.mxu0 0.0
        %2307 = vmatpush2.xpose.msra.mxu0 0.0
        %2308 = vmatprep.subr.mxu0 0.0
        %2309 = vmatpush2.xpose.msra.mxu0 0.0
        %2310 = vmatprep.subr.mxu0 0.0
        %2311 = vmatpush2.xpose.msra.mxu0 0.0
        %2312 = vmatprep.subr.mxu0 0.0
        %2313 = vmatpush2.xpose.msra.mxu0 0.0
        %2314 = vmatprep.subr.mxu0 0.0
        %2315 = vmatpush2.xpose.msra.mxu0 0.0
        %2316 = vmatprep.subr.mxu0 0.0
        %2317 = vmatpush2.xpose.msra.mxu0 0.0
        %2318 = vmatprep.subr.mxu0 0.0
        %2319 = vmatpush2.xpose.msra.mxu0 0.0
        %2320 = vmatprep.subr.mxu0 0.0
        %2321 = vmatpush2.xpose.msra.mxu0 0.0
        %2322 = vmatprep.subr.mxu0 0.0
        %2323 = vmatpush2.xpose.msra.mxu0 0.0
        %2324 = vmatprep.subr.mxu0 0.0
        %2325 = vmatpush2.xpose.msra.mxu0 0.0
        %2326 = vmatprep.subr.mxu0 0.0
        %2327 = vmatpush2.xpose.msra.mxu0 0.0
        %2328 = vmatprep.subr.mxu0 0.0
        %2329 = vmatpush2.xpose.msra.mxu0 0.0
        %2330 = vmatprep.subr.mxu0 0.0
        %2331 = vmatpush2.xpose.msra.mxu0 0.0
        %2332 = vmatprep.subr.mxu0 0.0
        %2333 = vmatpush2.xpose.msra.mxu0 0.0
        %2334 = vmatprep.subr.mxu0 0.0
        %2335 = vmatpush2.xpose.msra.mxu0 0.0
        %2336 = vmatprep.mubr.f32.mxu0 %v2258
        %2337 = vmatmul.mubr.f32.gmra.mxu0 %v2257
        %v2338 = vpop.f32.mrf.mxu0
        %v2339 = vadd.f32 0.0, %v2338
        %v2340 = vpop.f32.mrf.mxu0
        %2341 = vdwg.mxu0
        %s2342 = scalar_lea.vmem %s811, 2
        %2343 = vst.msk [vmem:[%s2342] sm:$0x3] %vm1941, %v2339
        %s2344 = scalar_lea.vmem %s3, 16
        %v2345 = vld [vmem:[%s2344] sm:$0x3]
        %v2347 = vsel %vm1544, %v2345, 0
        %2349 = vmatprep.subr.mxu0 0.0
        %2350 = vmatpush1.msra.mxu0 0.0
        %2351 = vmatprep.subr.mxu0 0.0
        %2352 = vmatpush1.msra.mxu0 0.0
        %2353 = vmatprep.subr.mxu0 0.0
        %2354 = vmatpush1.msra.mxu0 0.0
        %2355 = vmatprep.subr.mxu0 0.0
        %2356 = vmatpush1.msra.mxu0 0.0
        %2357 = vmatprep.subr.mxu0 0.0
        %2358 = vmatpush1.msra.mxu0 0.0
        %2359 = vmatprep.subr.mxu0 0.0
        %2360 = vmatpush1.msra.mxu0 0.0
        %2361 = vmatprep.subr.mxu0 0.0
        %2362 = vmatpush1.msra.mxu0 0.0
        %2363 = vmatprep.subr.mxu0 0.0
        %2364 = vmatpush1.msra.mxu0 0.0
        %2365 = vmatprep.subr.mxu0 0.0
        %2366 = vmatpush1.msra.mxu0 0.0
        %2367 = vmatprep.subr.mxu0 0.0
        %2368 = vmatpush1.msra.mxu0 0.0
        %2369 = vmatprep.subr.mxu0 0.0
        %2370 = vmatpush1.msra.mxu0 0.0
        %2371 = vmatprep.subr.mxu0 0.0
        %2372 = vmatpush1.msra.mxu0 0.0
        %2373 = vmatprep.subr.mxu0 0.0
        %2374 = vmatpush1.msra.mxu0 0.0
        %2375 = vmatprep.subr.mxu0 %v822
        %2376 = vmatpush1.msra.mxu0 %v821
        %2377 = vmatprep.subr.mxu0 %v820
        %2378 = vmatpush1.msra.mxu0 %v819
        %2379 = vmatprep.subr.mxu0 %v818
        %2380 = vmatpush1.msra.mxu0 %v817
        %2381 = vmatprep.subr.mxu0 0.0
        %2382 = vmatpush2.msra.mxu0 0.0
        %2383 = vmatprep.subr.mxu0 0.0
        %2384 = vmatpush2.msra.mxu0 0.0
        %2385 = vmatprep.subr.mxu0 0.0
        %2386 = vmatpush2.msra.mxu0 0.0
        %2387 = vmatprep.subr.mxu0 0.0
        %2388 = vmatpush2.msra.mxu0 0.0
        %2389 = vmatprep.subr.mxu0 0.0
        %2390 = vmatpush2.msra.mxu0 0.0
        %2391 = vmatprep.subr.mxu0 0.0
        %2392 = vmatpush2.msra.mxu0 0.0
        %2393 = vmatprep.subr.mxu0 0.0
        %2394 = vmatpush2.msra.mxu0 0.0
        %2395 = vmatprep.subr.mxu0 0.0
        %2396 = vmatpush2.msra.mxu0 0.0
        %2397 = vmatprep.subr.mxu0 0.0
        %2398 = vmatpush2.msra.mxu0 0.0
        %2399 = vmatprep.subr.mxu0 0.0
        %2400 = vmatpush2.msra.mxu0 0.0
        %2401 = vmatprep.subr.mxu0 0.0
        %2402 = vmatpush2.msra.mxu0 0.0
        %2403 = vmatprep.subr.mxu0 0.0
        %2404 = vmatpush2.msra.mxu0 0.0
        %2405 = vmatprep.subr.mxu0 0.0
        %2406 = vmatpush2.msra.mxu0 0.0
        %2407 = vmatprep.subr.mxu0 0.0
        %2408 = vmatpush2.msra.mxu0 0.0
        %2409 = vmatprep.subr.mxu0 0.0
        %2410 = vmatpush2.msra.mxu0 0.0
        %2411 = vmatprep.subr.mxu0 0.0
        %2412 = vmatpush2.msra.mxu0 0.0
        %2413 = vmatprep.mubr.f32.mxu0 0.0
        %2414 = vmatmul.mubr.f32.gmra.mxu0 %v2347
        %v2415 = vpop.f32.mrf.mxu0
        %v2416 = vadd.f32 0.0, %v2415
        %v2417 = vpop.f32.mrf.mxu0
        %v2418 = vadd.f32 0.0, %v2417
        %2419 = vdwg.mxu0
        %s2420 = scalar_lea.vmem %s3, 18
        %v2421 = vld [vmem:[%s2420] sm:$0x3]
        %v2423 = vsel %vm1544, %v2421, 0
        %2425 = vmatprep.subr.mxu0 0.0
        %2426 = vmatpush1.msra.mxu0 0.0
        %2427 = vmatprep.subr.mxu0 0.0
        %2428 = vmatpush1.msra.mxu0 0.0
        %2429 = vmatprep.subr.mxu0 0.0
        %2430 = vmatpush1.msra.mxu0 0.0
        %2431 = vmatprep.subr.mxu0 0.0
        %2432 = vmatpush1.msra.mxu0 0.0
        %2433 = vmatprep.subr.mxu0 0.0
        %2434 = vmatpush1.msra.mxu0 0.0
        %2435 = vmatprep.subr.mxu0 0.0
        %2436 = vmatpush1.msra.mxu0 0.0
        %2437 = vmatprep.subr.mxu0 0.0
        %2438 = vmatpush1.msra.mxu0 0.0
        %2439 = vmatprep.subr.mxu0 0.0
        %2440 = vmatpush1.msra.mxu0 0.0
        %2441 = vmatprep.subr.mxu0 0.0
        %2442 = vmatpush1.msra.mxu0 0.0
        %2443 = vmatprep.subr.mxu0 0.0
        %2444 = vmatpush1.msra.mxu0 0.0
        %2445 = vmatprep.subr.mxu0 0.0
        %2446 = vmatpush1.msra.mxu0 0.0
        %2447 = vmatprep.subr.mxu0 0.0
        %2448 = vmatpush1.msra.mxu0 0.0
        %2449 = vmatprep.subr.mxu0 0.0
        %2450 = vmatpush1.msra.mxu0 0.0
        %2451 = vmatprep.subr.mxu0 %v822
        %2452 = vmatpush1.msra.mxu0 %v821
        %2453 = vmatprep.subr.mxu0 %v820
        %2454 = vmatpush1.msra.mxu0 %v819
        %2455 = vmatprep.subr.mxu0 %v818
        %2456 = vmatpush1.msra.mxu0 %v817
        %2457 = vmatprep.subr.mxu0 0.0
        %2458 = vmatpush2.msra.mxu0 0.0
        %2459 = vmatprep.subr.mxu0 0.0
        %2460 = vmatpush2.msra.mxu0 0.0
        %2461 = vmatprep.subr.mxu0 0.0
        %2462 = vmatpush2.msra.mxu0 0.0
        %2463 = vmatprep.subr.mxu0 0.0
        %2464 = vmatpush2.msra.mxu0 0.0
        %2465 = vmatprep.subr.mxu0 0.0
        %2466 = vmatpush2.msra.mxu0 0.0
        %2467 = vmatprep.subr.mxu0 0.0
        %2468 = vmatpush2.msra.mxu0 0.0
        %2469 = vmatprep.subr.mxu0 0.0
        %2470 = vmatpush2.msra.mxu0 0.0
        %2471 = vmatprep.subr.mxu0 0.0
        %2472 = vmatpush2.msra.mxu0 0.0
        %2473 = vmatprep.subr.mxu0 0.0
        %2474 = vmatpush2.msra.mxu0 0.0
        %2475 = vmatprep.subr.mxu0 0.0
        %2476 = vmatpush2.msra.mxu0 0.0
        %2477 = vmatprep.subr.mxu0 0.0
        %2478 = vmatpush2.msra.mxu0 0.0
        %2479 = vmatprep.subr.mxu0 0.0
        %2480 = vmatpush2.msra.mxu0 0.0
        %2481 = vmatprep.subr.mxu0 0.0
        %2482 = vmatpush2.msra.mxu0 0.0
        %2483 = vmatprep.subr.mxu0 0.0
        %2484 = vmatpush2.msra.mxu0 0.0
        %2485 = vmatprep.subr.mxu0 0.0
        %2486 = vmatpush2.msra.mxu0 0.0
        %2487 = vmatprep.subr.mxu0 0.0
        %2488 = vmatpush2.msra.mxu0 0.0
        %2489 = vmatprep.mubr.f32.mxu0 0.0
        %2490 = vmatmul.mubr.f32.gmra.mxu0 %v2423
        %v2491 = vpop.f32.mrf.mxu0
        %v2492 = vadd.f32 0.0, %v2491
        %v2493 = vpop.f32.mrf.mxu0
        %v2494 = vadd.f32 0.0, %v2493
        %2495 = vdwg.mxu0
        %s2496 = scalar_lea.vmem %s3, 20
        %v2497 = vld [vmem:[%s2496] sm:$0x3]
        %v2499 = vsel %vm1544, %v2497, 0
        %2501 = vmatprep.subr.mxu0 0.0
        %2502 = vmatpush1.msra.mxu0 0.0
        %2503 = vmatprep.subr.mxu0 0.0
        %2504 = vmatpush1.msra.mxu0 0.0
        %2505 = vmatprep.subr.mxu0 0.0
        %2506 = vmatpush1.msra.mxu0 0.0
        %2507 = vmatprep.subr.mxu0 0.0
        %2508 = vmatpush1.msra.mxu0 0.0
        %2509 = vmatprep.subr.mxu0 0.0
        %2510 = vmatpush1.msra.mxu0 0.0
        %2511 = vmatprep.subr.mxu0 0.0
        %2512 = vmatpush1.msra.mxu0 0.0
        %2513 = vmatprep.subr.mxu0 0.0
        %2514 = vmatpush1.msra.mxu0 0.0
        %2515 = vmatprep.subr.mxu0 0.0
        %2516 = vmatpush1.msra.mxu0 0.0
        %2517 = vmatprep.subr.mxu0 0.0
        %2518 = vmatpush1.msra.mxu0 0.0
        %2519 = vmatprep.subr.mxu0 0.0
        %2520 = vmatpush1.msra.mxu0 0.0
        %2521 = vmatprep.subr.mxu0 0.0
        %2522 = vmatpush1.msra.mxu0 0.0
        %2523 = vmatprep.subr.mxu0 0.0
        %2524 = vmatpush1.msra.mxu0 0.0
        %2525 = vmatprep.subr.mxu0 0.0
        %2526 = vmatpush1.msra.mxu0 0.0
        %2527 = vmatprep.subr.mxu0 %v822
        %2528 = vmatpush1.msra.mxu0 %v821
        %2529 = vmatprep.subr.mxu0 %v820
        %2530 = vmatpush1.msra.mxu0 %v819
        %2531 = vmatprep.subr.mxu0 %v818
        %2532 = vmatpush1.msra.mxu0 %v817
        %2533 = vmatprep.subr.mxu0 0.0
        %2534 = vmatpush2.msra.mxu0 0.0
        %2535 = vmatprep.subr.mxu0 0.0
        %2536 = vmatpush2.msra.mxu0 0.0
        %2537 = vmatprep.subr.mxu0 0.0
        %2538 = vmatpush2.msra.mxu0 0.0
        %2539 = vmatprep.subr.mxu0 0.0
        %2540 = vmatpush2.msra.mxu0 0.0
        %2541 = vmatprep.subr.mxu0 0.0
        %2542 = vmatpush2.msra.mxu0 0.0
        %2543 = vmatprep.subr.mxu0 0.0
        %2544 = vmatpush2.msra.mxu0 0.0
        %2545 = vmatprep.subr.mxu0 0.0
        %2546 = vmatpush2.msra.mxu0 0.0
        %2547 = vmatprep.subr.mxu0 0.0
        %2548 = vmatpush2.msra.mxu0 0.0
        %2549 = vmatprep.subr.mxu0 0.0
        %2550 = vmatpush2.msra.mxu0 0.0
        %2551 = vmatprep.subr.mxu0 0.0
        %2552 = vmatpush2.msra.mxu0 0.0
        %2553 = vmatprep.subr.mxu0 0.0
        %2554 = vmatpush2.msra.mxu0 0.0
        %2555 = vmatprep.subr.mxu0 0.0
        %2556 = vmatpush2.msra.mxu0 0.0
        %2557 = vmatprep.subr.mxu0 0.0
        %2558 = vmatpush2.msra.mxu0 0.0
        %2559 = vmatprep.subr.mxu0 0.0
        %2560 = vmatpush2.msra.mxu0 0.0
        %2561 = vmatprep.subr.mxu0 0.0
        %2562 = vmatpush2.msra.mxu0 0.0
        %2563 = vmatprep.subr.mxu0 0.0
        %2564 = vmatpush2.msra.mxu0 0.0
        %2565 = vmatprep.mubr.f32.mxu0 0.0
        %2566 = vmatmul.mubr.f32.gmra.mxu0 %v2499
        %v2567 = vpop.f32.mrf.mxu0
        %v2568 = vadd.f32 0.0, %v2567
        %v2569 = vpop.f32.mrf.mxu0
        %v2570 = vadd.f32 0.0, %v2569
        %2571 = vdwg.mxu0
        %s2572 = scalar_lea.vmem %s3, 22
        %v2573 = vld [vmem:[%s2572] sm:$0x3]
        %v2575 = vsel %vm1544, %v2573, 0
        %2577 = vmatprep.subr.mxu0 0.0
        %2578 = vmatpush1.msra.mxu0 0.0
        %2579 = vmatprep.subr.mxu0 0.0
        %2580 = vmatpush1.msra.mxu0 0.0
        %2581 = vmatprep.subr.mxu0 0.0
        %2582 = vmatpush1.msra.mxu0 0.0
        %2583 = vmatprep.subr.mxu0 0.0
        %2584 = vmatpush1.msra.mxu0 0.0
        %2585 = vmatprep.subr.mxu0 0.0
        %2586 = vmatpush1.msra.mxu0 0.0
        %2587 = vmatprep.subr.mxu0 0.0
        %2588 = vmatpush1.msra.mxu0 0.0
        %2589 = vmatprep.subr.mxu0 0.0
        %2590 = vmatpush1.msra.mxu0 0.0
        %2591 = vmatprep.subr.mxu0 0.0
        %2592 = vmatpush1.msra.mxu0 0.0
        %2593 = vmatprep.subr.mxu0 0.0
        %2594 = vmatpush1.msra.mxu0 0.0
        %2595 = vmatprep.subr.mxu0 0.0
        %2596 = vmatpush1.msra.mxu0 0.0
        %2597 = vmatprep.subr.mxu0 0.0
        %2598 = vmatpush1.msra.mxu0 0.0
        %2599 = vmatprep.subr.mxu0 0.0
        %2600 = vmatpush1.msra.mxu0 0.0
        %2601 = vmatprep.subr.mxu0 0.0
        %2602 = vmatpush1.msra.mxu0 0.0
        %2603 = vmatprep.subr.mxu0 %v822
        %2604 = vmatpush1.msra.mxu0 %v821
        %2605 = vmatprep.subr.mxu0 %v820
        %2606 = vmatpush1.msra.mxu0 %v819
        %2607 = vmatprep.subr.mxu0 %v818
        %2608 = vmatpush1.msra.mxu0 %v817
        %2609 = vmatprep.subr.mxu0 0.0
        %2610 = vmatpush2.msra.mxu0 0.0
        %2611 = vmatprep.subr.mxu0 0.0
        %2612 = vmatpush2.msra.mxu0 0.0
        %2613 = vmatprep.subr.mxu0 0.0
        %2614 = vmatpush2.msra.mxu0 0.0
        %2615 = vmatprep.subr.mxu0 0.0
        %2616 = vmatpush2.msra.mxu0 0.0
        %2617 = vmatprep.subr.mxu0 0.0
        %2618 = vmatpush2.msra.mxu0 0.0
        %2619 = vmatprep.subr.mxu0 0.0
        %2620 = vmatpush2.msra.mxu0 0.0
        %2621 = vmatprep.subr.mxu0 0.0
        %2622 = vmatpush2.msra.mxu0 0.0
        %2623 = vmatprep.subr.mxu0 0.0
        %2624 = vmatpush2.msra.mxu0 0.0
        %2625 = vmatprep.subr.mxu0 0.0
        %2626 = vmatpush2.msra.mxu0 0.0
        %2627 = vmatprep.subr.mxu0 0.0
        %2628 = vmatpush2.msra.mxu0 0.0
        %2629 = vmatprep.subr.mxu0 0.0
        %2630 = vmatpush2.msra.mxu0 0.0
        %2631 = vmatprep.subr.mxu0 0.0
        %2632 = vmatpush2.msra.mxu0 0.0
        %2633 = vmatprep.subr.mxu0 0.0
        %2634 = vmatpush2.msra.mxu0 0.0
        %2635 = vmatprep.subr.mxu0 0.0
        %2636 = vmatpush2.msra.mxu0 0.0
        %2637 = vmatprep.subr.mxu0 0.0
        %2638 = vmatpush2.msra.mxu0 0.0
        %2639 = vmatprep.subr.mxu0 0.0
        %2640 = vmatpush2.msra.mxu0 0.0
        %2641 = vmatprep.mubr.f32.mxu0 0.0
        %2642 = vmatmul.mubr.f32.gmra.mxu0 %v2575
        %v2643 = vpop.f32.mrf.mxu0
        %v2644 = vadd.f32 0.0, %v2643
        %v2645 = vpop.f32.mrf.mxu0
        %v2646 = vadd.f32 0.0, %v2645
        %2647 = vdwg.mxu0
        %v2648 = vmul.f32 %v2416, %v1083
        %v2649 = vmul.f32 %v2418, %v1085
        %v2650 = vmul.f32 %v2492, %v1310
        %v2651 = vmul.f32 %v2494, %v1312
        %v2652 = vadd.f32 %v2648, %v2650
        %v2653 = vadd.f32 %v2649, %v2651
        %v2654 = vmul.f32 %v2568, %v1537
        %v2655 = vmul.f32 %v2570, %v1539
        %v2656 = vadd.f32 %v2652, %v2654
        %v2657 = vadd.f32 %v2653, %v2655
        %v2658 = vadd.f32 %v2656, %v2644
        %v2659 = vadd.f32 %v2657, %v2646
        %v2662 = vcombine.low %v2658, %v2659
        %v2664 = vunpack.c.l.s4 1983009808
        %v2665 = vunpack.c.0.s8 %v2664
        %v2666 = vlaneseq
        %v2667 = vshrl.u32 %v2666, 7
        %v2668 = vsub.s32 %v2665, %v2667
        %v2669 = vrot.slane %v2662, %v2668
        %s2671 = scalar_lea.vmem %s789, 8 [#allocation5]
        %2672 = vst [vmem:[%s2671] sm:$0xf] %v2669
        %2673 = vmatprep.subr.mxu0 0.0
        %2674 = vmatpush1.xpose.msra.mxu0 0.0
        %2675 = vmatprep.subr.mxu0 0.0
        %2676 = vmatpush1.xpose.msra.mxu0 0.0
        %2677 = vmatprep.subr.mxu0 0.0
        %2678 = vmatpush1.xpose.msra.mxu0 0.0
        %2679 = vmatprep.subr.mxu0 0.0
        %2680 = vmatpush1.xpose.msra.mxu0 0.0
        %2681 = vmatprep.subr.mxu0 0.0
        %2682 = vmatpush1.xpose.msra.mxu0 0.0
        %2683 = vmatprep.subr.mxu0 0.0
        %2684 = vmatpush1.xpose.msra.mxu0 0.0
        %2685 = vmatprep.subr.mxu0 0.0
        %2686 = vmatpush1.xpose.msra.mxu0 0.0
        %2687 = vmatprep.subr.mxu0 0.0
        %2688 = vmatpush1.xpose.msra.mxu0 0.0
        %2689 = vmatprep.subr.mxu0 0.0
        %2690 = vmatpush1.xpose.msra.mxu0 0.0
        %2691 = vmatprep.subr.mxu0 0.0
        %2692 = vmatpush1.xpose.msra.mxu0 0.0
        %2693 = vmatprep.subr.mxu0 0.0
        %2694 = vmatpush1.xpose.msra.mxu0 0.0
        %2695 = vmatprep.subr.mxu0 0.0
        %2696 = vmatpush1.xpose.msra.mxu0 0.0
        %2697 = vmatprep.subr.mxu0 0.0
        %2698 = vmatpush1.xpose.msra.mxu0 0.0
        %2699 = vmatprep.subr.mxu0 %v831
        %2700 = vmatpush1.xpose.msra.mxu0 %v830
        %2701 = vmatprep.subr.mxu0 %v829
        %2702 = vmatpush1.xpose.msra.mxu0 %v828
        %2703 = vmatprep.subr.mxu0 %v827
        %2704 = vmatpush1.xpose.msra.mxu0 %v826
        %2705 = vmatprep.subr.mxu0 0.0
        %2706 = vmatpush2.xpose.msra.mxu0 0.0
        %2707 = vmatprep.subr.mxu0 0.0
        %2708 = vmatpush2.xpose.msra.mxu0 0.0
        %2709 = vmatprep.subr.mxu0 0.0
        %2710 = vmatpush2.xpose.msra.mxu0 0.0
        %2711 = vmatprep.subr.mxu0 0.0
        %2712 = vmatpush2.xpose.msra.mxu0 0.0
        %2713 = vmatprep.subr.mxu0 0.0
        %2714 = vmatpush2.xpose.msra.mxu0 0.0
        %2715 = vmatprep.subr.mxu0 0.0
        %2716 = vmatpush2.xpose.msra.mxu0 0.0
        %2717 = vmatprep.subr.mxu0 0.0
        %2718 = vmatpush2.xpose.msra.mxu0 0.0
        %2719 = vmatprep.subr.mxu0 0.0
        %2720 = vmatpush2.xpose.msra.mxu0 0.0
        %2721 = vmatprep.subr.mxu0 0.0
        %2722 = vmatpush2.xpose.msra.mxu0 0.0
        %2723 = vmatprep.subr.mxu0 0.0
        %2724 = vmatpush2.xpose.msra.mxu0 0.0
        %2725 = vmatprep.subr.mxu0 0.0
        %2726 = vmatpush2.xpose.msra.mxu0 0.0
        %2727 = vmatprep.subr.mxu0 0.0
        %2728 = vmatpush2.xpose.msra.mxu0 0.0
        %2729 = vmatprep.subr.mxu0 0.0
        %2730 = vmatpush2.xpose.msra.mxu0 0.0
        %2731 = vmatprep.subr.mxu0 0.0
        %2732 = vmatpush2.xpose.msra.mxu0 0.0
        %2733 = vmatprep.subr.mxu0 0.0
        %2734 = vmatpush2.xpose.msra.mxu0 0.0
        %2735 = vmatprep.subr.mxu0 0.0
        %2736 = vmatpush2.xpose.msra.mxu0 0.0
        %2737 = vmatprep.mubr.f32.mxu0 %v2659
        %2738 = vmatmul.mubr.f32.gmra.mxu0 %v2658
        %v2739 = vpop.f32.mrf.mxu0
        %v2740 = vadd.f32 0.0, %v2739
        %v2741 = vpop.f32.mrf.mxu0
        %2742 = vdwg.mxu0
        %s2743 = scalar_lea.vmem %s811, 4
        %2744 = vst.msk [vmem:[%s2743] sm:$0x3] %vm1941, %v2740
        %s2745 = sand.u32 %s176, 1
        %s2746 = scalar_lea.sflag [#allocation6], %s2745
        %s2747 = sand.u32 %s176, 1
        %s2748 = smul.addr %s2747, 12
        %s2749 = scalar_lea.vmem [#allocation5], %s2748
        %p2750 = scmp.lt.s32.totalorder %s22, 1
        %s2751 = scalar_select %p2750, %s22, 1
        %s2752 = smul.addr %s2751, 3
        %s2753 = smul.addr %s2752, 2
        %s2754 = scalar_lea.vmem %s7, %s2753
        // Predicated region
        $region159: #{fwd.3} parent=145 // pred_check
          %p2755 = pneg %p186
        $region160: #{fwd.3} parent=145 // pred_check_branch
          %2757 = sbr.rel (%p2755) target = $region162
        $region161: #{fwd.3} parent=145 // pred_region
          %s2758 = smul.u32 2, %s22
          %s2760 = ssub.s32 192, 192
          %2761 = vsyncadd %s2746, %s2760
          %s2762 = smul.addr %s2758, 32
          %s2763 = scalar_lea.hbm %s6, %s2762
          %s2764 = sshll.u32 %s2749, 4
          %s2765 = int_to_ptr.vmem [resolvable:$true] %s2764
          %2770 = dma.vmem_to_hbm [thread:$0]  %s2765, 192, %s2763, %s2746, 64, 128, 4
        $region162: #{fwd.3} parent=145 // pred_fallthru
          _
        // Predicated region
        $region163: #{fwd.3} parent=145 // pred_check
          %p2771 = pneg %p212
        $region164: #{fwd.3} parent=145 // pred_check_branch
          %2773 = sbr.rel (%p2771) target = $region166
        $region165: #{fwd.3} parent=145 // pred_region
          _
        $region166: #{fwd.3} parent=145 // pred_fallthru
          _
      $region146: #{fwd.3} parent=5 // pred_fallthru
        _
      %p2774 = scmp.le.s32.totalorder 2, %s17
      // Predicated region
      $region167: #{fwd.3} parent=5 // pred_check
        %p2775 = pneg %p2774
      $region168: #{fwd.3} parent=5 // pred_check_branch
        %2777 = sbr.rel (%p2775) target = $region170
      $region169: #{fwd.3} parent=5 // pred_region
        %s2778 = ssub.s32 %s17, 2
        // Predicated region
        $region171: #{fwd.3} parent=169 // pred_check
          %p2779 = pneg %p192
        $region172: #{fwd.3} parent=169 // pred_check_branch
          %2781 = sbr.rel (%p2779) target = $region174
        $region173: #{fwd.3} parent=169 // pred_region
          %s2782 = sand.u32 %s177, 1
          %s2783 = scalar_lea.sflag [#allocation6], %s2782
          %s2784 = sand.u32 %s177, 1
          %s2785 = smul.addr %s2784, 12
          %s2786 = scalar_lea.vmem [#allocation5], %s2785
          %2787 = dma.done %s2783, 192
        $region174: #{fwd.3} parent=169 // pred_fallthru
          _
        // Predicated region
        $region175: #{fwd.3} parent=169 // pred_check
          %p2788 = pneg %p218
        $region176: #{fwd.3} parent=169 // pred_check_branch
          %2790 = sbr.rel (%p2788) target = $region178
        $region177: #{fwd.3} parent=169 // pred_region
          %p2791 = scmp.lt.s32.totalorder %s23, 1
          %s2792 = scalar_select %p2791, %s23, 1
          %s2793 = smul.addr %s2792, 3
          %s2794 = smul.addr %s2793, 2
          %s2795 = scalar_lea.vmem %s7, %s2794
        $region178: #{fwd.3} parent=169 // pred_fallthru
          _
      $region170: #{fwd.3} parent=5 // pred_fallthru
        _
    $region6: #{fwd.3} parent=1 // loop_footer
      %s21 = sadd.s32 1, %s17
    $region7: #{fwd.3} parent=1 // loop_footer_branch
      %16 = sbr.rel target = $region3
    $region8: #{fwd.3} parent=1 // loop_exit
      _
    %2796 = vsyncpa [#allocation6], 1
    %s2797 = scalar_lea.sflag [#allocation6], 1
    %2798 = vsyncpa %s2797, 1

</llo_original>
